<compile_context>
chip_gen: v7x
topology: tpu7x:2x2x1
jax: 0.10.0
libtpu: 0.0.40
codegen_flags: <defaults>
</compile_context>

<pallas_src>
import numpy as np
import jax
import jax.numpy as jnp
from jax import lax
from jax.experimental import pallas as pl
from jax.experimental.pallas import tpu as pltpu

# ----- static problem sizes -----
N = 2              # batch
H = W = 20         # input spatial
C1, K1 = 10, 6     # conv1 out channels / kernel
C2, K2 = 20, 4     # conv2 out channels / kernel
H1 = H - K1 + 1    # 15  (conv1 output)
P1 = H1 // 2       # 7   (pool1 output, floor -> row/col 14 dropped)
H2 = P1 - K2 + 1   # 4   (conv2 output)
P2 = H2 // 2       # 2   (pool2 output)
F = C2 * P2 * P2   # 80
D1, D2, D3 = 32, 16, 1

# Row layout of the pool1 activation matrix: row r = y*SY + x*SX + n.
SY = P1 * N                              # 14 (stride of y)
SX = N                                   # 2  (stride of x)
R1 = P1 * P1 * N                         # 98 rows per pooling phase
R2 = (H2 - 1) * (SY + SX) + N            # 50 rows of conv2 that are ever read
PHASE = 104                              # R1 padded to a multiple of 8
NPHASE = 4
TAPS1 = K1 * K1                          # 36
TAPS2 = K2 * K2                          # 16

# ----- weight-slab row offsets (all 8-aligned so in-kernel slices stay
#       sublane-aligned); lane width = 32 -----
W1_OFF = 0        # (36, 10)  conv1 weight, cols = out channels
B1_OFF = 40       # (1, 10)
W2_OFF = 48       # (160, 20) conv2 weight, rows = (kh*4+kw)*10 + c_in
B2_OFF = 208      # (1, 20)
FC1W_OFF = 216    # (80, 32)  rows = (i*2+j)*20 + c
FC1B_OFF = 296    # (1, 32)
FC2W_OFF = 304    # (32, 16)
FC2B_OFF = 336    # (1, 16)
FC3W_OFF = 344    # (16, 1)
FC3B_OFF = 360    # (1, 1)
SLAB_ROWS = 368
SLAB_COLS = 32

PREC = lax.Precision.HIGHEST


def slidenet_kernel(xcol_ref, w_ref, out_ref):
    f32 = jnp.float32

    # ---- conv1 + maxpool(2) + relu: one matmul over the 4 stacked phases ----
    # xcol rows: p*104 + (y*14 + x*2 + n), columns: kh*6 + kw taps.
    c1 = jnp.dot(xcol_ref[...], w_ref[W1_OFF:W1_OFF + TAPS1, 0:C1],
                 precision=PREC, preferred_element_type=f32)          # (416, 10)
    p1 = jnp.maximum(
        jnp.maximum(c1[0 * PHASE:1 * PHASE], c1[1 * PHASE:2 * PHASE]),
        jnp.maximum(c1[2 * PHASE:3 * PHASE], c1[3 * PHASE:4 * PHASE]))
    p1 = jnp.maximum(p1 + w_ref[B1_OFF:B1_OFF + 1, 0:C1], 0.0)        # (104, 10)
    # Rows 98..103 are zero-pad garbage and are provably never read below
    # (max row read by conv2 is 48 + 50 - 1 = 97).

    # ---- conv2: one matmul on the lane-concat of the 16 row-shifted taps ----
    # Shifting the 4x4 window by (kh, kw) is a contiguous row offset kh*SY+kw*SX.
    lhs2 = jnp.concatenate(
        [p1[kh * SY + kw * SX: kh * SY + kw * SX + R2, :]
         for kh in range(K2) for kw in range(K2)], axis=1)            # (50, 160)
    # Note: on v5e a 2x K=80 split would avoid the unbalanced 128+32 weight tile.
    c2 = jnp.dot(lhs2, w_ref[W2_OFF:W2_OFF + TAPS2 * C1, 0:C2],
                 precision=PREC, preferred_element_type=f32)          # (50, 20)
    # c2 row u*SY + v*SX + n holds conv2[n, :, u, v]; other rows are never read.

    # ---- maxpool(2) + bias + relu, lane-concat, one fc1 matmul --------------
    b2 = w_ref[B2_OFF:B2_OFF + 1, 0:C2]                               # (1, 20)
    blocks = []
    for i in range(P2):
        for j in range(P2):
            base = 2 * i * SY + 2 * j * SX
            m = jnp.maximum(c2[base:base + 2 * N, :],                 # a = 0 rows
                            c2[base + SY:base + SY + 2 * N, :])       # a = 1 rows
            m = jnp.maximum(m[0:N, :], m[N:2 * N, :])                 # max over b
            blocks.append(jnp.maximum(m + b2, 0.0))                   # (2, 20)
    flat = jnp.concatenate(blocks, axis=1)                            # (2, 80)
    h1 = jnp.maximum(
        jnp.dot(flat, w_ref[FC1W_OFF:FC1W_OFF + P2 * P2 * C2, 0:D1],
                precision=PREC, preferred_element_type=f32)
        + w_ref[FC1B_OFF:FC1B_OFF + 1, 0:D1], 0.0)                    # (2, 32)

    # ---- fc2 + relu, fc3 ----------------------------------------------------
    h2 = jnp.maximum(
        jnp.dot(h1, w_ref[FC2W_OFF:FC2W_OFF + D1, 0:D2],
                precision=PREC, preferred_element_type=f32)
        + w_ref[FC2B_OFF:FC2B_OFF + 1, 0:D2], 0.0)                    # (2, 16)
    out_ref[...] = (jnp.dot(h2, w_ref[FC3W_OFF:FC3W_OFF + D2, 0:D3],
                            precision=PREC, preferred_element_type=f32)
                    + w_ref[FC3B_OFF:FC3B_OFF + 1, 0:D3])             # (2, 1)


def pack_weights(params):
    """Pack all weights/biases into one pre-padded f32 slab, ONCE at init."""
    slab = np.zeros((SLAB_ROWS, SLAB_COLS), np.float32)

    def put(off, arr):
        a = np.asarray(arr, np.float32)
        slab[off:off + a.shape[0], 0:a.shape[1]] = a

    put(W1_OFF, np.asarray(params['conv1_w']).reshape(C1, TAPS1).T)          # (36,10)
    put(B1_OFF, np.asarray(params['conv1_b']).reshape(1, C1))
    put(W2_OFF, np.transpose(np.asarray(params['conv2_w']),
                             (2, 3, 1, 0)).reshape(TAPS2 * C1, C2))          # (160,20)
    put(B2_OFF, np.asarray(params['conv2_b']).reshape(1, C2))
    # fc1.weight (32, 80) with PyTorch flatten order f = c*4 + i*2 + j;
    # kernel consumes rows ordered (i*2+j)*20 + c.
    put(FC1W_OFF, np.transpose(np.asarray(params['fc1_w']).reshape(D1, C2, P2, P2),
                               (2, 3, 1, 0)).reshape(P2 * P2 * C2, D1))      # (80,32)
    put(FC1B_OFF, np.asarray(params['fc1_b']).reshape(1, D1))
    put(FC2W_OFF, np.asarray(params['fc2_w']).T)                             # (32,16)
    put(FC2B_OFF, np.asarray(params['fc2_b']).reshape(1, D2))
    put(FC3W_OFF, np.asarray(params['fc3_w']).T)                             # (16,1)
    put(FC3B_OFF, np.asarray(params['fc3_b']).reshape(1, D3))
    return jnp.asarray(slab)


@jax.jit
def slidenet_forward(x_nchw, wslab):
    xs = x_nchw.astype(jnp.float32)                                  # (N,1,20,20)
    # One patch-extraction op: patches[n, kh*6+kw, i, j] = x[n, 0, i+kh, j+kw].
    patches = lax.conv_general_dilated_patches(
        xs, (K1, K1), (1, 1), 'VALID',
        dimension_numbers=('NCHW', 'OIHW', 'NCHW'),
        precision=PREC)                                              # (N,36,15,15)
    # Split into the four 2x2 pooling phases with rows r = y*14 + x*2 + n,
    # each phase zero-padded from 98 to 104 rows so the in-kernel phase-max
    # slices stay sublane-aligned.  Conv1 row/col 14 is dropped by the pool.
    ph = patches[:, :, :2 * P1, :2 * P1].reshape(N, TAPS1, P1, 2, P1, 2)
    ph = jnp.transpose(ph, (3, 5, 2, 4, 0, 1)).reshape(NPHASE, R1, TAPS1)
    xcol = jnp.pad(ph, ((0, 0), (0, PHASE - R1), (0, 0))).reshape(
        NPHASE * PHASE, TAPS1)                                       # (416, 36)

    vmem = lambda: pl.BlockSpec(memory_space=pltpu.MemorySpace.VMEM)
    # Gridless single call: the whole working set is << 1 MiB.  For real
    # throughput, grow N and add a "parallel" batch grid axis (v7x 2nd TC).
    return pl.pallas_call(
        slidenet_kernel,
        out_shape=jax.ShapeDtypeStruct((N, D3), jnp.float32),
        in_specs=[vmem(), vmem()],
        out_specs=vmem(),
    )(xcol, wslab)


def init_params(key):
    # Deterministic init mimicking PyTorch default bounds (+-1/sqrt(fan_in)).
    ks = jax.random.split(key, 10)

    def u(k, shape, fan_in):
        b = 1.0 / np.sqrt(fan_in)
        return jax.random.uniform(k, shape, jnp.float32, -b, b)

    return {
        'conv1_w': u(ks[0], (C1, 1, K1, K1), 1 * K1 * K1),
        'conv1_b': u(ks[1], (C1,), 1 * K1 * K1),
        'conv2_w': u(ks[2], (C2, C1, K2, K2), C1 * K2 * K2),
        'conv2_b': u(ks[3], (C2,), C1 * K2 * K2),
        'fc1_w': u(ks[4], (D1, F), F),
        'fc1_b': u(ks[5], (D1,), F),
        'fc2_w': u(ks[6], (D2, D1), D1),
        'fc2_b': u(ks[7], (D2,), D1),
        'fc3_w': u(ks[8], (D3, D2), D2),
        'fc3_b': u(ks[9], (D3,), D2),
    }


def ref_forward(x, p):
    # Pure-JAX reference (matches the PyTorch forward exactly).
    dn = ('NCHW', 'OIHW', 'NCHW')
    y = lax.conv_general_dilated(x, p['conv1_w'], (1, 1), 'VALID',
                                 dimension_numbers=dn, precision=PREC)
    y = y + p['conv1_b'][None, :, None, None]
    y = lax.reduce_window(y, -jnp.inf, lax.max, (1, 1, 2, 2), (1, 1, 2, 2), 'VALID')
    y = jnp.maximum(y, 0.0)
    y = lax.conv_general_dilated(y, p['conv2_w'], (1, 1), 'VALID',
                                 dimension_numbers=dn, precision=PREC)
    y = y + p['conv2_b'][None, :, None, None]
    y = lax.reduce_window(y, -jnp.inf, lax.max, (1, 1, 2, 2), (1, 1, 2, 2), 'VALID')
    y = jnp.maximum(y, 0.0)
    y = y.reshape(-1, F)
    y = jnp.maximum(jnp.dot(y, p['fc1_w'].T, precision=PREC) + p['fc1_b'], 0.0)
    y = jnp.maximum(jnp.dot(y, p['fc2_w'].T, precision=PREC) + p['fc2_b'], 0.0)
    return jnp.dot(y, p['fc3_w'].T, precision=PREC) + p['fc3_b']


if __name__ == "__main__":
    key = jax.random.PRNGKey(0)
    kx, kp = jax.random.split(key)
    x = jax.random.normal(kx, (N, 1, H, W), jnp.float32)   # NCHW, like PyTorch
    params = init_params(kp)
    wslab = pack_weights(params)                           # built once at init

    out = slidenet_forward(x, wslab)
    out = jax.block_until_ready(out)

    ref = ref_forward(x, params)
    assert out.shape == (N, D3), out.shape
    np.testing.assert_allclose(np.asarray(out), np.asarray(ref),
                               rtol=1e-3, atol=1e-3)
    print("KERNEL_OK")
</pallas_src>

<mosaic_0001>
module attributes {stable_mosaic.version = 11 : i64} {
  func.func @slidenet_kernel(%arg0: memref<416x36xf32, #tpu.memory_space<vmem>>, %arg1: memref<368x32xf32, #tpu.memory_space<vmem>>, %arg2: memref<2x1xf32, #tpu.memory_space<vmem>>) attributes {dimension_semantics = [], scalar_prefetch = 0 : i64, scratch_operands = 0 : i64, tpu.core_type = #tpu.core_type<tc>} {
    %c0 = arith.constant 0 : index
    %c0_0 = arith.constant 0 : index
    %0 = vector.load %arg0[%c0, %c0_0] : memref<416x36xf32, #tpu.memory_space<vmem>>, vector<416x36xf32>
    %c0_1 = arith.constant 0 : index
    %c0_2 = arith.constant 0 : index
    %1 = vector.load %arg1[%c0_1, %c0_2] : memref<368x32xf32, #tpu.memory_space<vmem>>, vector<36x10xf32>
    %cst = arith.constant dense<0.000000e+00> : vector<416x10xf32>
    %2 = tpu.matmul %0, %1, %cst {dimension_numbers = #tpu.dot_dimension_numbers<[1], [0], [0], [1], [0, 0, 1, 1], [], []>, precision = #tpu.contract_precision<fp32>} : vector<416x36xf32>, vector<36x10xf32>, vector<416x10xf32> -> vector<416x10xf32>
    %3 = vector.extract_strided_slice %2 {offsets = [0, 0], sizes = [104, 10], strides = [1, 1]} : vector<416x10xf32> to vector<104x10xf32>
    %4 = vector.extract_strided_slice %2 {offsets = [104, 0], sizes = [104, 10], strides = [1, 1]} : vector<416x10xf32> to vector<104x10xf32>
    %5 = arith.maximumf %3, %4 : vector<104x10xf32>
    %6 = vector.extract_strided_slice %2 {offsets = [208, 0], sizes = [104, 10], strides = [1, 1]} : vector<416x10xf32> to vector<104x10xf32>
    %7 = vector.extract_strided_slice %2 {offsets = [312, 0], sizes = [104, 10], strides = [1, 1]} : vector<416x10xf32> to vector<104x10xf32>
    %8 = arith.maximumf %6, %7 : vector<104x10xf32>
    %9 = arith.maximumf %5, %8 : vector<104x10xf32>
    %c40 = arith.constant 40 : index
    %c0_3 = arith.constant 0 : index
    %10 = vector.load %arg1[%c40, %c0_3] : memref<368x32xf32, #tpu.memory_space<vmem>>, vector<1x10xf32>
    %11 = vector.broadcast %10 : vector<1x10xf32> to vector<104x10xf32>
    %12 = arith.addf %9, %11 : vector<104x10xf32>
    %cst_4 = arith.constant 0.000000e+00 : f32
    %13 = vector.broadcast %cst_4 : f32 to vector<104x10xf32>
    %14 = arith.maximumf %12, %13 : vector<104x10xf32>
    %15 = vector.extract_strided_slice %14 {offsets = [0, 0], sizes = [50, 10], strides = [1, 1]} : vector<104x10xf32> to vector<50x10xf32>
    %16 = vector.extract_strided_slice %14 {offsets = [2, 0], sizes = [50, 10], strides = [1, 1]} : vector<104x10xf32> to vector<50x10xf32>
    %17 = vector.extract_strided_slice %14 {offsets = [4, 0], sizes = [50, 10], strides = [1, 1]} : vector<104x10xf32> to vector<50x10xf32>
    %18 = vector.extract_strided_slice %14 {offsets = [6, 0], sizes = [50, 10], strides = [1, 1]} : vector<104x10xf32> to vector<50x10xf32>
    %19 = vector.extract_strided_slice %14 {offsets = [14, 0], sizes = [50, 10], strides = [1, 1]} : vector<104x10xf32> to vector<50x10xf32>
    %20 = vector.extract_strided_slice %14 {offsets = [16, 0], sizes = [50, 10], strides = [1, 1]} : vector<104x10xf32> to vector<50x10xf32>
    %21 = vector.extract_strided_slice %14 {offsets = [18, 0], sizes = [50, 10], strides = [1, 1]} : vector<104x10xf32> to vector<50x10xf32>
    %22 = vector.extract_strided_slice %14 {offsets = [20, 0], sizes = [50, 10], strides = [1, 1]} : vector<104x10xf32> to vector<50x10xf32>
    %23 = vector.extract_strided_slice %14 {offsets = [28, 0], sizes = [50, 10], strides = [1, 1]} : vector<104x10xf32> to vector<50x10xf32>
    %24 = vector.extract_strided_slice %14 {offsets = [30, 0], sizes = [50, 10], strides = [1, 1]} : vector<104x10xf32> to vector<50x10xf32>
    %25 = vector.extract_strided_slice %14 {offsets = [32, 0], sizes = [50, 10], strides = [1, 1]} : vector<104x10xf32> to vector<50x10xf32>
    %26 = vector.extract_strided_slice %14 {offsets = [34, 0], sizes = [50, 10], strides = [1, 1]} : vector<104x10xf32> to vector<50x10xf32>
    %27 = vector.extract_strided_slice %14 {offsets = [42, 0], sizes = [50, 10], strides = [1, 1]} : vector<104x10xf32> to vector<50x10xf32>
    %28 = vector.extract_strided_slice %14 {offsets = [44, 0], sizes = [50, 10], strides = [1, 1]} : vector<104x10xf32> to vector<50x10xf32>
    %29 = vector.extract_strided_slice %14 {offsets = [46, 0], sizes = [50, 10], strides = [1, 1]} : vector<104x10xf32> to vector<50x10xf32>
    %30 = vector.extract_strided_slice %14 {offsets = [48, 0], sizes = [50, 10], strides = [1, 1]} : vector<104x10xf32> to vector<50x10xf32>
    %31 = tpu.concatenate %15, %16, %17, %18, %19, %20, %21, %22, %23, %24, %25, %26, %27, %28, %29, %30 in 1 : vector<50x10xf32>, vector<50x10xf32>, vector<50x10xf32>, vector<50x10xf32>, vector<50x10xf32>, vector<50x10xf32>, vector<50x10xf32>, vector<50x10xf32>, vector<50x10xf32>, vector<50x10xf32>, vector<50x10xf32>, vector<50x10xf32>, vector<50x10xf32>, vector<50x10xf32>, vector<50x10xf32>, vector<50x10xf32> -> vector<50x160xf32>
    %c48 = arith.constant 48 : index
    %c0_5 = arith.constant 0 : index
    %32 = vector.load %arg1[%c48, %c0_5] : memref<368x32xf32, #tpu.memory_space<vmem>>, vector<160x20xf32>
    %cst_6 = arith.constant dense<0.000000e+00> : vector<50x20xf32>
    %33 = tpu.matmul %31, %32, %cst_6 {dimension_numbers = #tpu.dot_dimension_numbers<[1], [0], [0], [1], [0, 0, 1, 1], [], []>, precision = #tpu.contract_precision<fp32>} : vector<50x160xf32>, vector<160x20xf32>, vector<50x20xf32> -> vector<50x20xf32>
    %c208 = arith.constant 208 : index
    %c0_7 = arith.constant 0 : index
    %34 = vector.load %arg1[%c208, %c0_7] : memref<368x32xf32, #tpu.memory_space<vmem>>, vector<1x20xf32>
    %35 = vector.extract_strided_slice %33 {offsets = [0, 0], sizes = [4, 20], strides = [1, 1]} : vector<50x20xf32> to vector<4x20xf32>
    %36 = vector.extract_strided_slice %33 {offsets = [14, 0], sizes = [4, 20], strides = [1, 1]} : vector<50x20xf32> to vector<4x20xf32>
    %37 = arith.maximumf %35, %36 : vector<4x20xf32>
    %38 = vector.extract_strided_slice %37 {offsets = [0, 0], sizes = [2, 20], strides = [1, 1]} : vector<4x20xf32> to vector<2x20xf32>
    %39 = vector.extract_strided_slice %37 {offsets = [2, 0], sizes = [2, 20], strides = [1, 1]} : vector<4x20xf32> to vector<2x20xf32>
    %40 = arith.maximumf %38, %39 : vector<2x20xf32>
    %41 = vector.broadcast %34 : vector<1x20xf32> to vector<2x20xf32>
    %42 = arith.addf %40, %41 : vector<2x20xf32>
    %cst_8 = arith.constant 0.000000e+00 : f32
    %43 = vector.broadcast %cst_8 : f32 to vector<2x20xf32>
    %44 = arith.maximumf %42, %43 : vector<2x20xf32>
    %45 = vector.extract_strided_slice %33 {offsets = [4, 0], sizes = [4, 20], strides = [1, 1]} : vector<50x20xf32> to vector<4x20xf32>
    %46 = vector.extract_strided_slice %33 {offsets = [18, 0], sizes = [4, 20], strides = [1, 1]} : vector<50x20xf32> to vector<4x20xf32>
    %47 = arith.maximumf %45, %46 : vector<4x20xf32>
    %48 = vector.extract_strided_slice %47 {offsets = [0, 0], sizes = [2, 20], strides = [1, 1]} : vector<4x20xf32> to vector<2x20xf32>
    %49 = vector.extract_strided_slice %47 {offsets = [2, 0], sizes = [2, 20], strides = [1, 1]} : vector<4x20xf32> to vector<2x20xf32>
    %50 = arith.maximumf %48, %49 : vector<2x20xf32>
    %51 = vector.broadcast %34 : vector<1x20xf32> to vector<2x20xf32>
    %52 = arith.addf %50, %51 : vector<2x20xf32>
    %cst_9 = arith.constant 0.000000e+00 : f32
    %53 = vector.broadcast %cst_9 : f32 to vector<2x20xf32>
    %54 = arith.maximumf %52, %53 : vector<2x20xf32>
    %55 = vector.extract_strided_slice %33 {offsets = [28, 0], sizes = [4, 20], strides = [1, 1]} : vector<50x20xf32> to vector<4x20xf32>
    %56 = vector.extract_strided_slice %33 {offsets = [42, 0], sizes = [4, 20], strides = [1, 1]} : vector<50x20xf32> to vector<4x20xf32>
    %57 = arith.maximumf %55, %56 : vector<4x20xf32>
    %58 = vector.extract_strided_slice %57 {offsets = [0, 0], sizes = [2, 20], strides = [1, 1]} : vector<4x20xf32> to vector<2x20xf32>
    %59 = vector.extract_strided_slice %57 {offsets = [2, 0], sizes = [2, 20], strides = [1, 1]} : vector<4x20xf32> to vector<2x20xf32>
    %60 = arith.maximumf %58, %59 : vector<2x20xf32>
    %61 = vector.broadcast %34 : vector<1x20xf32> to vector<2x20xf32>
    %62 = arith.addf %60, %61 : vector<2x20xf32>
    %cst_10 = arith.constant 0.000000e+00 : f32
    %63 = vector.broadcast %cst_10 : f32 to vector<2x20xf32>
    %64 = arith.maximumf %62, %63 : vector<2x20xf32>
    %65 = vector.extract_strided_slice %33 {offsets = [32, 0], sizes = [4, 20], strides = [1, 1]} : vector<50x20xf32> to vector<4x20xf32>
    %66 = vector.extract_strided_slice %33 {offsets = [46, 0], sizes = [4, 20], strides = [1, 1]} : vector<50x20xf32> to vector<4x20xf32>
    %67 = arith.maximumf %65, %66 : vector<4x20xf32>
    %68 = vector.extract_strided_slice %67 {offsets = [0, 0], sizes = [2, 20], strides = [1, 1]} : vector<4x20xf32> to vector<2x20xf32>
    %69 = vector.extract_strided_slice %67 {offsets = [2, 0], sizes = [2, 20], strides = [1, 1]} : vector<4x20xf32> to vector<2x20xf32>
    %70 = arith.maximumf %68, %69 : vector<2x20xf32>
    %71 = vector.broadcast %34 : vector<1x20xf32> to vector<2x20xf32>
    %72 = arith.addf %70, %71 : vector<2x20xf32>
    %cst_11 = arith.constant 0.000000e+00 : f32
    %73 = vector.broadcast %cst_11 : f32 to vector<2x20xf32>
    %74 = arith.maximumf %72, %73 : vector<2x20xf32>
    %75 = tpu.concatenate %44, %54, %64, %74 in 1 : vector<2x20xf32>, vector<2x20xf32>, vector<2x20xf32>, vector<2x20xf32> -> vector<2x80xf32>
    %c216 = arith.constant 216 : index
    %c0_12 = arith.constant 0 : index
    %76 = vector.load %arg1[%c216, %c0_12] : memref<368x32xf32, #tpu.memory_space<vmem>>, vector<80x32xf32>
    %cst_13 = arith.constant dense<0.000000e+00> : vector<2x32xf32>
    %77 = tpu.matmul %75, %76, %cst_13 {dimension_numbers = #tpu.dot_dimension_numbers<[1], [0], [0], [1], [0, 0, 1, 1], [], []>, precision = #tpu.contract_precision<fp32>} : vector<2x80xf32>, vector<80x32xf32>, vector<2x32xf32> -> vector<2x32xf32>
    %c296 = arith.constant 296 : index
    %c0_14 = arith.constant 0 : index
    %78 = vector.load %arg1[%c296, %c0_14] : memref<368x32xf32, #tpu.memory_space<vmem>>, vector<1x32xf32>
    %79 = vector.broadcast %78 : vector<1x32xf32> to vector<2x32xf32>
    %80 = arith.addf %77, %79 : vector<2x32xf32>
    %cst_15 = arith.constant 0.000000e+00 : f32
    %81 = vector.broadcast %cst_15 : f32 to vector<2x32xf32>
    %82 = arith.maximumf %80, %81 : vector<2x32xf32>
    %c304 = arith.constant 304 : index
    %c0_16 = arith.constant 0 : index
    %83 = vector.load %arg1[%c304, %c0_16] : memref<368x32xf32, #tpu.memory_space<vmem>>, vector<32x16xf32>
    %cst_17 = arith.constant dense<0.000000e+00> : vector<2x16xf32>
    %84 = tpu.matmul %82, %83, %cst_17 {dimension_numbers = #tpu.dot_dimension_numbers<[1], [0], [0], [1], [0, 0, 1, 1], [], []>, precision = #tpu.contract_precision<fp32>} : vector<2x32xf32>, vector<32x16xf32>, vector<2x16xf32> -> vector<2x16xf32>
    %c336 = arith.constant 336 : index
    %c0_18 = arith.constant 0 : index
    %85 = vector.load %arg1[%c336, %c0_18] : memref<368x32xf32, #tpu.memory_space<vmem>>, vector<1x16xf32>
    %86 = vector.broadcast %85 : vector<1x16xf32> to vector<2x16xf32>
    %87 = arith.addf %84, %86 : vector<2x16xf32>
    %cst_19 = arith.constant 0.000000e+00 : f32
    %88 = vector.broadcast %cst_19 : f32 to vector<2x16xf32>
    %89 = arith.maximumf %87, %88 : vector<2x16xf32>
    %c344 = arith.constant 344 : index
    %c0_20 = arith.constant 0 : index
    %90 = vector.load %arg1[%c344, %c0_20] : memref<368x32xf32, #tpu.memory_space<vmem>>, vector<16x1xf32>
    %cst_21 = arith.constant dense<0.000000e+00> : vector<2x1xf32>
    %91 = tpu.matmul %89, %90, %cst_21 {dimension_numbers = #tpu.dot_dimension_numbers<[1], [0], [0], [1], [0, 0, 1, 1], [], []>, precision = #tpu.contract_precision<fp32>} : vector<2x16xf32>, vector<16x1xf32>, vector<2x1xf32> -> vector<2x1xf32>
    %c360 = arith.constant 360 : index
    %c0_22 = arith.constant 0 : index
    %92 = vector.load %arg1[%c360, %c0_22] : memref<368x32xf32, #tpu.memory_space<vmem>>, vector<1x1xf32>
    %93 = vector.broadcast %92 : vector<1x1xf32> to vector<2x1xf32>
    %94 = arith.addf %91, %93 : vector<2x1xf32>
    %c0_23 = arith.constant 0 : index
    %c0_24 = arith.constant 0 : index
    %95 = vector.load %arg2[%c0_23, %c0_24] : memref<2x1xf32, #tpu.memory_space<vmem>>, vector<2x1xf32>
    tpu.vector_store %arg2[%c0_23, %c0_24], %94 {strides = array<i32>} : memref<2x1xf32, #tpu.memory_space<vmem>>, vector<2x1xf32>,
    return
  }
}

</mosaic_0001>

<llo_original>
// kernel: slidenet_forward.1
$region0: #{slidenet_forward.1}
  #allocation0 [shape = 'u32[]', space=smem, size = 0x4, offset = 0x4, fixed_abs, tag = 'smem constant byte address 0x4 - core index']
  #allocation1 [shape = 'u32[144,128]{1,0:T(1,128)}', space=vmem, size = 0x12000, scoped, tag = 'internal scratch']
  %s0 = inlined_call_operand.vmem [shape: f32[416,36], index: 0, kind: input, shape index: {}]
  %s1 = inlined_call_operand.vmem [shape: f32[368,32], index: 1, kind: input, shape index: {}]
  %s2 = inlined_call_operand.vmem [shape: f32[2,1], index: 2, kind: output, shape index: {}]
  %s3 = sld [smem:[#allocation0]]
  $region18: #{slidenet_forward.1} parent=0
    _
  %s5 = ssub.s32 1, %s3
  %s6 = scalar_select 0, %s5, %s3
  // Predicated region
  $region2: #{slidenet_forward.1} parent=0 // pred_check
    _
  $region3: #{slidenet_forward.1} parent=0 // pred_check_branch
    %8 = sbr.rel (0) target = $region5
  $region4: #{slidenet_forward.1} parent=0 // pred_region
    _
  $region5: #{slidenet_forward.1} parent=0 // pred_fallthru
    _
  // Predicated region
  $region6: #{slidenet_forward.1} parent=0 // pred_check
    _
  $region7: #{slidenet_forward.1} parent=0 // pred_check_branch
    %10 = sbr.rel (0) target = $region9
  $region8: #{slidenet_forward.1} parent=0 // pred_region
    _
  $region9: #{slidenet_forward.1} parent=0 // pred_fallthru
    _
  %v11 = vld [vmem:[%s0] sm:$0xff]
  %v12 = vld [vmem:[%s0 + $0x8] sm:$0xff]
  %v13 = vld [vmem:[%s0 + $0x10] sm:$0xff]
  %v14 = vld [vmem:[%s0 + $0x18] sm:$0xff]
  %v15 = vld [vmem:[%s0 + $0x20] sm:$0xff]
  %v16 = vld [vmem:[%s0 + $0x28] sm:$0xff]
  %v17 = vld [vmem:[%s0 + $0x30] sm:$0xff]
  %v18 = vld [vmem:[%s0 + $0x38] sm:$0xff]
  %v19 = vld [vmem:[%s0 + $0x40] sm:$0xff]
  %v20 = vld [vmem:[%s0 + $0x48] sm:$0xff]
  %v21 = vld [vmem:[%s0 + $0x50] sm:$0xff]
  %v22 = vld [vmem:[%s0 + $0x58] sm:$0xff]
  %v23 = vld [vmem:[%s0 + $0x60] sm:$0xff]
  %v24 = vld [vmem:[%s0 + $0x68] sm:$0xff]
  %v25 = vld [vmem:[%s0 + $0x70] sm:$0xff]
  %v26 = vld [vmem:[%s0 + $0x78] sm:$0xff]
  %v27 = vld [vmem:[%s0 + $0x80] sm:$0xff]
  %v28 = vld [vmem:[%s0 + $0x88] sm:$0xff]
  %v29 = vld [vmem:[%s0 + $0x90] sm:$0xff]
  %v30 = vld [vmem:[%s0 + $0x98] sm:$0xff]
  %v31 = vld [vmem:[%s0 + $0xa0] sm:$0xff]
  %v32 = vld [vmem:[%s0 + $0xa8] sm:$0xff]
  %v33 = vld [vmem:[%s0 + $0xb0] sm:$0xff]
  %v34 = vld [vmem:[%s0 + $0xb8] sm:$0xff]
  %v35 = vld [vmem:[%s0 + $0xc0] sm:$0xff]
  %v36 = vld [vmem:[%s0 + $0xc8] sm:$0xff]
  %v37 = vld [vmem:[%s0 + $0xd0] sm:$0xff]
  %v38 = vld [vmem:[%s0 + $0xd8] sm:$0xff]
  %v39 = vld [vmem:[%s0 + $0xe0] sm:$0xff]
  %v40 = vld [vmem:[%s0 + $0xe8] sm:$0xff]
  %v41 = vld [vmem:[%s0 + $0xf0] sm:$0xff]
  %v42 = vld [vmem:[%s0 + $0xf8] sm:$0xff]
  %v43 = vld [vmem:[%s0 + $0x100] sm:$0xff]
  %v44 = vld [vmem:[%s0 + $0x108] sm:$0xff]
  %v45 = vld [vmem:[%s0 + $0x110] sm:$0xff]
  %v46 = vld [vmem:[%s0 + $0x118] sm:$0xff]
  %v47 = vld [vmem:[%s0 + $0x120] sm:$0xff]
  %v48 = vld [vmem:[%s0 + $0x128] sm:$0xff]
  %v49 = vld [vmem:[%s0 + $0x130] sm:$0xff]
  %v50 = vld [vmem:[%s0 + $0x138] sm:$0xff]
  %v51 = vld [vmem:[%s0 + $0x140] sm:$0xff]
  %v52 = vld [vmem:[%s0 + $0x148] sm:$0xff]
  %v53 = vld [vmem:[%s0 + $0x150] sm:$0xff]
  %v54 = vld [vmem:[%s0 + $0x158] sm:$0xff]
  %v55 = vld [vmem:[%s0 + $0x160] sm:$0xff]
  %v56 = vld [vmem:[%s0 + $0x168] sm:$0xff]
  %v57 = vld [vmem:[%s0 + $0x170] sm:$0xff]
  %v58 = vld [vmem:[%s0 + $0x178] sm:$0xff]
  %v59 = vld [vmem:[%s0 + $0x180] sm:$0xff]
  %v60 = vld [vmem:[%s0 + $0x188] sm:$0xff]
  %v61 = vld [vmem:[%s0 + $0x190] sm:$0xff]
  %v62 = vld [vmem:[%s0 + $0x198] sm:$0xff]
  %v63 = vld [vmem:[%s1] sm:$0xff]
  %v64 = vld [vmem:[%s1 + $0x8] sm:$0xff]
  %v65 = vld [vmem:[%s1 + $0x10] sm:$0xff]
  %v66 = vld [vmem:[%s1 + $0x18] sm:$0xff]
  %v67 = vld [vmem:[%s1 + $0x20] sm:$0xf]
  %vm68 = vcmask 293888
  %v70 = vsel %vm68, %v11, 0
  %v73 = vsel %vm68, %v12, 0
  %v76 = vsel %vm68, %v13, 0
  %v79 = vsel %vm68, %v14, 0
  %v82 = vsel %vm68, %v15, 0
  %v85 = vsel %vm68, %v16, 0
  %v88 = vsel %vm68, %v17, 0
  %v91 = vsel %vm68, %v18, 0
  %v94 = vsel %vm68, %v19, 0
  %v97 = vsel %vm68, %v20, 0
  %v100 = vsel %vm68, %v21, 0
  %v103 = vsel %vm68, %v22, 0
  %v106 = vsel %vm68, %v23, 0
  %v109 = vsel %vm68, %v24, 0
  %v112 = vsel %vm68, %v25, 0
  %v115 = vsel %vm68, %v26, 0
  %v118 = vsel %vm68, %v27, 0
  %v121 = vsel %vm68, %v28, 0
  %v124 = vsel %vm68, %v29, 0
  %v127 = vsel %vm68, %v30, 0
  %v130 = vsel %vm68, %v31, 0
  %v133 = vsel %vm68, %v32, 0
  %v136 = vsel %vm68, %v33, 0
  %v139 = vsel %vm68, %v34, 0
  %v142 = vsel %vm68, %v35, 0
  %v145 = vsel %vm68, %v36, 0
  %v148 = vsel %vm68, %v37, 0
  %v151 = vsel %vm68, %v38, 0
  %v154 = vsel %vm68, %v39, 0
  %v157 = vsel %vm68, %v40, 0
  %v160 = vsel %vm68, %v41, 0
  %v163 = vsel %vm68, %v42, 0
  %v166 = vsel %vm68, %v43, 0
  %v169 = vsel %vm68, %v44, 0
  %v172 = vsel %vm68, %v45, 0
  %v175 = vsel %vm68, %v46, 0
  %v178 = vsel %vm68, %v47, 0
  %v181 = vsel %vm68, %v48, 0
  %v184 = vsel %vm68, %v49, 0
  %v187 = vsel %vm68, %v50, 0
  %v190 = vsel %vm68, %v51, 0
  %v193 = vsel %vm68, %v52, 0
  %v196 = vsel %vm68, %v53, 0
  %v199 = vsel %vm68, %v54, 0
  %v202 = vsel %vm68, %v55, 0
  %v205 = vsel %vm68, %v56, 0
  %v208 = vsel %vm68, %v57, 0
  %v211 = vsel %vm68, %v58, 0
  %v214 = vsel %vm68, %v59, 0
  %v217 = vsel %vm68, %v60, 0
  %v220 = vsel %vm68, %v61, 0
  %v223 = vsel %vm68, %v62, 0
  %vm225 = vcmask 1043456
  %v227 = vsel %vm225, %v67, 0
  %229 = vmatprep.subr.mxu0 0.0
  %v230 = vand.u32 %v63, 4294901760
  %231 = vmatpush1.msra.mxu0 %v230
  %232 = vmatprep.subr.mxu0 0.0
  %v233 = vand.u32 %v64, 4294901760
  %234 = vmatpush1.msra.mxu0 %v233
  %235 = vmatprep.subr.mxu0 0.0
  %v236 = vand.u32 %v65, 4294901760
  %237 = vmatpush1.msra.mxu0 %v236
  %238 = vmatprep.subr.mxu0 0.0
  %v239 = vand.u32 %v66, 4294901760
  %240 = vmatpush1.msra.mxu0 %v239
  %241 = vmatprep.subr.mxu0 0.0
  %v242 = vand.u32 %v227, 4294901760
  %243 = vmatpush1.msra.mxu0 %v242
  %244 = vmatprep.subr.mxu0 0.0
  %245 = vmatpush1.msra.mxu0 0.0
  %246 = vmatprep.subr.mxu0 0.0
  %247 = vmatpush1.msra.mxu0 0.0
  %248 = vmatprep.subr.mxu0 0.0
  %249 = vmatpush1.msra.mxu0 0.0
  %250 = vmatprep.subr.mxu0 0.0
  %251 = vmatpush1.msra.mxu0 0.0
  %252 = vmatprep.subr.mxu0 0.0
  %253 = vmatpush1.msra.mxu0 0.0
  %254 = vmatprep.subr.mxu0 0.0
  %255 = vmatpush1.msra.mxu0 0.0
  %256 = vmatprep.subr.mxu0 0.0
  %257 = vmatpush1.msra.mxu0 0.0
  %258 = vmatprep.subr.mxu0 0.0
  %259 = vmatpush1.msra.mxu0 0.0
  %260 = vmatprep.subr.mxu0 0.0
  %261 = vmatpush1.msra.mxu0 0.0
  %262 = vmatprep.subr.mxu0 0.0
  %263 = vmatpush1.msra.mxu0 0.0
  %264 = vmatprep.subr.mxu0 0.0
  %265 = vmatpush1.msra.mxu0 0.0
  %266 = vmatprep.subr.mxu0 0.0
  %267 = vmatpush1.msra.mxu0 0.0
  %268 = vmatprep.subr.mxu0 0.0
  %269 = vmatpush1.msra.mxu0 0.0
  %270 = vmatprep.subr.mxu0 0.0
  %271 = vmatpush1.msra.mxu0 0.0
  %272 = vmatprep.subr.mxu0 0.0
  %273 = vmatpush1.msra.mxu0 0.0
  %274 = vmatprep.subr.mxu0 0.0
  %275 = vmatpush1.msra.mxu0 0.0
  %276 = vmatprep.subr.mxu0 0.0
  %277 = vmatpush1.msra.mxu0 0.0
  %278 = vmatprep.subr.mxu0 0.0
  %279 = vmatpush1.msra.mxu0 0.0
  %280 = vmatprep.subr.mxu0 0.0
  %281 = vmatpush1.msra.mxu0 0.0
  %282 = vmatprep.subr.mxu0 0.0
  %283 = vmatpush1.msra.mxu0 0.0
  %284 = vmatprep.subr.mxu0 0.0
  %285 = vmatpush1.msra.mxu0 0.0
  %286 = vmatprep.subr.mxu0 0.0
  %287 = vmatpush1.msra.mxu0 0.0
  %288 = vmatprep.subr.mxu0 0.0
  %289 = vmatpush1.msra.mxu0 0.0
  %290 = vmatprep.subr.mxu0 0.0
  %291 = vmatpush1.msra.mxu0 0.0
  %292 = vmatprep.subr.mxu0 0.0
  %293 = vmatpush1.msra.mxu0 0.0
  %294 = vmatprep.subr.mxu0 0.0
  %295 = vmatpush1.msra.mxu0 0.0
  %296 = vmatprep.subr.mxu0 0.0
  %297 = vmatpush1.msra.mxu0 0.0
  %298 = vmatprep.mubr.f32.mxu0 0.0
  %v299 = vand.u32 %v70, 4294901760
  %v300 = vsub.f32 %v70, %v299
  %v301 = vand.u32 %v300, 4294901760
  %v302 = vsub.f32 %v300, %v301
  %v303 = vand.u32 %v302, 4294901760
  %304 = vmatmul.mubr.f32.gmra.mrb[0].mxu0 %v303
  %v305 = vpop.f32.mrb[0].mxu0
  %v306 = vadd.f32 0.0, %v305
  %v307 = vpop.f32.mrb[0].mxu0
  %308 = vmatprep.mubr.f32.mxu0 0.0
  %v309 = vand.u32 %v73, 4294901760
  %v310 = vsub.f32 %v73, %v309
  %v311 = vand.u32 %v310, 4294901760
  %v312 = vsub.f32 %v310, %v311
  %v313 = vand.u32 %v312, 4294901760
  %314 = vmatmul.mubr.f32.gmra.mrb[0].mxu0 %v313
  %v315 = vpop.f32.mrb[0].mxu0
  %v316 = vadd.f32 0.0, %v315
  %v317 = vpop.f32.mrb[0].mxu0
  %318 = vmatprep.mubr.f32.mxu0 0.0
  %v319 = vand.u32 %v76, 4294901760
  %v320 = vsub.f32 %v76, %v319
  %v321 = vand.u32 %v320, 4294901760
  %v322 = vsub.f32 %v320, %v321
  %v323 = vand.u32 %v322, 4294901760
  %324 = vmatmul.mubr.f32.gmra.mrb[0].mxu0 %v323
  %v325 = vpop.f32.mrb[0].mxu0
  %v326 = vadd.f32 0.0, %v325
  %v327 = vpop.f32.mrb[0].mxu0
  %328 = vmatprep.mubr.f32.mxu0 0.0
  %v329 = vand.u32 %v79, 4294901760
  %v330 = vsub.f32 %v79, %v329
  %v331 = vand.u32 %v330, 4294901760
  %v332 = vsub.f32 %v330, %v331
  %v333 = vand.u32 %v332, 4294901760
  %334 = vmatmul.mubr.f32.gmra.mrb[0].mxu0 %v333
  %v335 = vpop.f32.mrb[0].mxu0
  %v336 = vadd.f32 0.0, %v335
  %v337 = vpop.f32.mrb[0].mxu0
  %338 = vmatprep.mubr.f32.mxu0 0.0
  %v339 = vand.u32 %v82, 4294901760
  %v340 = vsub.f32 %v82, %v339
  %v341 = vand.u32 %v340, 4294901760
  %v342 = vsub.f32 %v340, %v341
  %v343 = vand.u32 %v342, 4294901760
  %344 = vmatmul.mubr.f32.gmra.mrb[0].mxu0 %v343
  %v345 = vpop.f32.mrb[0].mxu0
  %v346 = vadd.f32 0.0, %v345
  %v347 = vpop.f32.mrb[0].mxu0
  %348 = vmatprep.mubr.f32.mxu0 0.0
  %v349 = vand.u32 %v85, 4294901760
  %v350 = vsub.f32 %v85, %v349
  %v351 = vand.u32 %v350, 4294901760
  %v352 = vsub.f32 %v350, %v351
  %v353 = vand.u32 %v352, 4294901760
  %354 = vmatmul.mubr.f32.gmra.mrb[0].mxu0 %v353
  %v355 = vpop.f32.mrb[0].mxu0
  %v356 = vadd.f32 0.0, %v355
  %v357 = vpop.f32.mrb[0].mxu0
  %358 = vmatprep.mubr.f32.mxu0 0.0
  %v359 = vand.u32 %v88, 4294901760
  %v360 = vsub.f32 %v88, %v359
  %v361 = vand.u32 %v360, 4294901760
  %v362 = vsub.f32 %v360, %v361
  %v363 = vand.u32 %v362, 4294901760
  %364 = vmatmul.mubr.f32.gmra.mrb[0].mxu0 %v363
  %v365 = vpop.f32.mrb[0].mxu0
  %v366 = vadd.f32 0.0, %v365
  %v367 = vpop.f32.mrb[0].mxu0
  %368 = vmatprep.mubr.f32.mxu0 0.0
  %v369 = vand.u32 %v91, 4294901760
  %v370 = vsub.f32 %v91, %v369
  %v371 = vand.u32 %v370, 4294901760
  %v372 = vsub.f32 %v370, %v371
  %v373 = vand.u32 %v372, 4294901760
  %374 = vmatmul.mubr.f32.gmra.mrb[0].mxu0 %v373
  %v375 = vpop.f32.mrb[0].mxu0
  %v376 = vadd.f32 0.0, %v375
  %v377 = vpop.f32.mrb[0].mxu0
  %378 = vmatprep.mubr.f32.mxu0 0.0
  %v379 = vand.u32 %v94, 4294901760
  %v380 = vsub.f32 %v94, %v379
  %v381 = vand.u32 %v380, 4294901760
  %v382 = vsub.f32 %v380, %v381
  %v383 = vand.u32 %v382, 4294901760
  %384 = vmatmul.mubr.f32.gmra.mrb[0].mxu0 %v383
  %v385 = vpop.f32.mrb[0].mxu0
  %v386 = vadd.f32 0.0, %v385
  %v387 = vpop.f32.mrb[0].mxu0
  %388 = vmatprep.mubr.f32.mxu0 0.0
  %v389 = vand.u32 %v97, 4294901760
  %v390 = vsub.f32 %v97, %v389
  %v391 = vand.u32 %v390, 4294901760
  %v392 = vsub.f32 %v390, %v391
  %v393 = vand.u32 %v392, 4294901760
  %394 = vmatmul.mubr.f32.gmra.mrb[0].mxu0 %v393
  %v395 = vpop.f32.mrb[0].mxu0
  %v396 = vadd.f32 0.0, %v395
  %v397 = vpop.f32.mrb[0].mxu0
  %398 = vmatprep.mubr.f32.mxu0 0.0
  %v399 = vand.u32 %v100, 4294901760
  %v400 = vsub.f32 %v100, %v399
  %v401 = vand.u32 %v400, 4294901760
  %v402 = vsub.f32 %v400, %v401
  %v403 = vand.u32 %v402, 4294901760
  %404 = vmatmul.mubr.f32.gmra.mrb[0].mxu0 %v403
  %v405 = vpop.f32.mrb[0].mxu0
  %v406 = vadd.f32 0.0, %v405
  %v407 = vpop.f32.mrb[0].mxu0
  %408 = vmatprep.mubr.f32.mxu0 0.0
  %v409 = vand.u32 %v103, 4294901760
  %v410 = vsub.f32 %v103, %v409
  %v411 = vand.u32 %v410, 4294901760
  %v412 = vsub.f32 %v410, %v411
  %v413 = vand.u32 %v412, 4294901760
  %414 = vmatmul.mubr.f32.gmra.mrb[0].mxu0 %v413
  %v415 = vpop.f32.mrb[0].mxu0
  %v416 = vadd.f32 0.0, %v415
  %v417 = vpop.f32.mrb[0].mxu0
  %418 = vmatprep.mubr.f32.mxu0 0.0
  %v419 = vand.u32 %v106, 4294901760
  %v420 = vsub.f32 %v106, %v419
  %v421 = vand.u32 %v420, 4294901760
  %v422 = vsub.f32 %v420, %v421
  %v423 = vand.u32 %v422, 4294901760
  %424 = vmatmul.mubr.f32.gmra.mrb[0].mxu0 %v423
  %v425 = vpop.f32.mrb[0].mxu0
  %v426 = vadd.f32 0.0, %v425
  %v427 = vpop.f32.mrb[0].mxu0
  %428 = vmatprep.mubr.f32.mxu0 0.0
  %v429 = vand.u32 %v109, 4294901760
  %v430 = vsub.f32 %v109, %v429
  %v431 = vand.u32 %v430, 4294901760
  %v432 = vsub.f32 %v430, %v431
  %v433 = vand.u32 %v432, 4294901760
  %434 = vmatmul.mubr.f32.gmra.mrb[0].mxu0 %v433
  %v435 = vpop.f32.mrb[0].mxu0
  %v436 = vadd.f32 0.0, %v435
  %v437 = vpop.f32.mrb[0].mxu0
  %438 = vmatprep.mubr.f32.mxu0 0.0
  %v439 = vand.u32 %v112, 4294901760
  %v440 = vsub.f32 %v112, %v439
  %v441 = vand.u32 %v440, 4294901760
  %v442 = vsub.f32 %v440, %v441
  %v443 = vand.u32 %v442, 4294901760
  %444 = vmatmul.mubr.f32.gmra.mrb[0].mxu0 %v443
  %v445 = vpop.f32.mrb[0].mxu0
  %v446 = vadd.f32 0.0, %v445
  %v447 = vpop.f32.mrb[0].mxu0
  %448 = vmatprep.mubr.f32.mxu0 0.0
  %v449 = vand.u32 %v115, 4294901760
  %v450 = vsub.f32 %v115, %v449
  %v451 = vand.u32 %v450, 4294901760
  %v452 = vsub.f32 %v450, %v451
  %v453 = vand.u32 %v452, 4294901760
  %454 = vmatmul.mubr.f32.gmra.mrb[0].mxu0 %v453
  %v455 = vpop.f32.mrb[0].mxu0
  %v456 = vadd.f32 0.0, %v455
  %v457 = vpop.f32.mrb[0].mxu0
  %458 = vmatprep.mubr.f32.mxu0 0.0
  %v459 = vand.u32 %v118, 4294901760
  %v460 = vsub.f32 %v118, %v459
  %v461 = vand.u32 %v460, 4294901760
  %v462 = vsub.f32 %v460, %v461
  %v463 = vand.u32 %v462, 4294901760
  %464 = vmatmul.mubr.f32.gmra.mrb[0].mxu0 %v463
  %v465 = vpop.f32.mrb[0].mxu0
  %v466 = vadd.f32 0.0, %v465
  %v467 = vpop.f32.mrb[0].mxu0
  %468 = vmatprep.mubr.f32.mxu0 0.0
  %v469 = vand.u32 %v121, 4294901760
  %v470 = vsub.f32 %v121, %v469
  %v471 = vand.u32 %v470, 4294901760
  %v472 = vsub.f32 %v470, %v471
  %v473 = vand.u32 %v472, 4294901760
  %474 = vmatmul.mubr.f32.gmra.mrb[0].mxu0 %v473
  %v475 = vpop.f32.mrb[0].mxu0
  %v476 = vadd.f32 0.0, %v475
  %v477 = vpop.f32.mrb[0].mxu0
  %478 = vmatprep.mubr.f32.mxu0 0.0
  %v479 = vand.u32 %v124, 4294901760
  %v480 = vsub.f32 %v124, %v479
  %v481 = vand.u32 %v480, 4294901760
  %v482 = vsub.f32 %v480, %v481
  %v483 = vand.u32 %v482, 4294901760
  %484 = vmatmul.mubr.f32.gmra.mrb[0].mxu0 %v483
  %v485 = vpop.f32.mrb[0].mxu0
  %v486 = vadd.f32 0.0, %v485
  %v487 = vpop.f32.mrb[0].mxu0
  %488 = vmatprep.mubr.f32.mxu0 0.0
  %v489 = vand.u32 %v127, 4294901760
  %v490 = vsub.f32 %v127, %v489
  %v491 = vand.u32 %v490, 4294901760
  %v492 = vsub.f32 %v490, %v491
  %v493 = vand.u32 %v492, 4294901760
  %494 = vmatmul.mubr.f32.gmra.mrb[0].mxu0 %v493
  %v495 = vpop.f32.mrb[0].mxu0
  %v496 = vadd.f32 0.0, %v495
  %v497 = vpop.f32.mrb[0].mxu0
  %498 = vmatprep.mubr.f32.mxu0 0.0
  %v499 = vand.u32 %v130, 4294901760
  %v500 = vsub.f32 %v130, %v499
  %v501 = vand.u32 %v500, 4294901760
  %v502 = vsub.f32 %v500, %v501
  %v503 = vand.u32 %v502, 4294901760
  %504 = vmatmul.mubr.f32.gmra.mrb[0].mxu0 %v503
  %v505 = vpop.f32.mrb[0].mxu0
  %v506 = vadd.f32 0.0, %v505
  %v507 = vpop.f32.mrb[0].mxu0
  %508 = vmatprep.mubr.f32.mxu0 0.0
  %v509 = vand.u32 %v133, 4294901760
  %v510 = vsub.f32 %v133, %v509
  %v511 = vand.u32 %v510, 4294901760
  %v512 = vsub.f32 %v510, %v511
  %v513 = vand.u32 %v512, 4294901760
  %514 = vmatmul.mubr.f32.gmra.mrb[0].mxu0 %v513
  %v515 = vpop.f32.mrb[0].mxu0
  %v516 = vadd.f32 0.0, %v515
  %v517 = vpop.f32.mrb[0].mxu0
  %518 = vmatprep.mubr.f32.mxu0 0.0
  %v519 = vand.u32 %v136, 4294901760
  %v520 = vsub.f32 %v136, %v519
  %v521 = vand.u32 %v520, 4294901760
  %v522 = vsub.f32 %v520, %v521
  %v523 = vand.u32 %v522, 4294901760
  %524 = vmatmul.mubr.f32.gmra.mrb[0].mxu0 %v523
  %v525 = vpop.f32.mrb[0].mxu0
  %v526 = vadd.f32 0.0, %v525
  %v527 = vpop.f32.mrb[0].mxu0
  %528 = vmatprep.mubr.f32.mxu0 0.0
  %v529 = vand.u32 %v139, 4294901760
  %v530 = vsub.f32 %v139, %v529
  %v531 = vand.u32 %v530, 4294901760
  %v532 = vsub.f32 %v530, %v531
  %v533 = vand.u32 %v532, 4294901760
  %534 = vmatmul.mubr.f32.gmra.mrb[0].mxu0 %v533
  %v535 = vpop.f32.mrb[0].mxu0
  %v536 = vadd.f32 0.0, %v535
  %v537 = vpop.f32.mrb[0].mxu0
  %538 = vmatprep.mubr.f32.mxu0 0.0
  %v539 = vand.u32 %v142, 4294901760
  %v540 = vsub.f32 %v142, %v539
  %v541 = vand.u32 %v540, 4294901760
  %v542 = vsub.f32 %v540, %v541
  %v543 = vand.u32 %v542, 4294901760
  %544 = vmatmul.mubr.f32.gmra.mrb[0].mxu0 %v543
  %v545 = vpop.f32.mrb[0].mxu0
  %v546 = vadd.f32 0.0, %v545
  %v547 = vpop.f32.mrb[0].mxu0
  %548 = vmatprep.mubr.f32.mxu0 0.0
  %v549 = vand.u32 %v145, 4294901760
  %v550 = vsub.f32 %v145, %v549
  %v551 = vand.u32 %v550, 4294901760
  %v552 = vsub.f32 %v550, %v551
  %v553 = vand.u32 %v552, 4294901760
  %554 = vmatmul.mubr.f32.gmra.mrb[0].mxu0 %v553
  %v555 = vpop.f32.mrb[0].mxu0
  %v556 = vadd.f32 0.0, %v555
  %v557 = vpop.f32.mrb[0].mxu0
  %558 = vmatprep.mubr.f32.mxu0 0.0
  %v559 = vand.u32 %v148, 4294901760
  %v560 = vsub.f32 %v148, %v559
  %v561 = vand.u32 %v560, 4294901760
  %v562 = vsub.f32 %v560, %v561
  %v563 = vand.u32 %v562, 4294901760
  %564 = vmatmul.mubr.f32.gmra.mrb[0].mxu0 %v563
  %v565 = vpop.f32.mrb[0].mxu0
  %v566 = vadd.f32 0.0, %v565
  %v567 = vpop.f32.mrb[0].mxu0
  %568 = vmatprep.mubr.f32.mxu0 0.0
  %v569 = vand.u32 %v151, 4294901760
  %v570 = vsub.f32 %v151, %v569
  %v571 = vand.u32 %v570, 4294901760
  %v572 = vsub.f32 %v570, %v571
  %v573 = vand.u32 %v572, 4294901760
  %574 = vmatmul.mubr.f32.gmra.mrb[0].mxu0 %v573
  %v575 = vpop.f32.mrb[0].mxu0
  %v576 = vadd.f32 0.0, %v575
  %v577 = vpop.f32.mrb[0].mxu0
  %578 = vmatprep.mubr.f32.mxu0 0.0
  %v579 = vand.u32 %v154, 4294901760
  %v580 = vsub.f32 %v154, %v579
  %v581 = vand.u32 %v580, 4294901760
  %v582 = vsub.f32 %v580, %v581
  %v583 = vand.u32 %v582, 4294901760
  %584 = vmatmul.mubr.f32.gmra.mrb[0].mxu0 %v583
  %v585 = vpop.f32.mrb[0].mxu0
  %v586 = vadd.f32 0.0, %v585
  %v587 = vpop.f32.mrb[0].mxu0
  %588 = vmatprep.mubr.f32.mxu0 0.0
  %v589 = vand.u32 %v157, 4294901760
  %v590 = vsub.f32 %v157, %v589
  %v591 = vand.u32 %v590, 4294901760
  %v592 = vsub.f32 %v590, %v591
  %v593 = vand.u32 %v592, 4294901760
  %594 = vmatmul.mubr.f32.gmra.mrb[0].mxu0 %v593
  %v595 = vpop.f32.mrb[0].mxu0
  %v596 = vadd.f32 0.0, %v595
  %v597 = vpop.f32.mrb[0].mxu0
  %598 = vmatprep.mubr.f32.mxu0 0.0
  %v599 = vand.u32 %v160, 4294901760
  %v600 = vsub.f32 %v160, %v599
  %v601 = vand.u32 %v600, 4294901760
  %v602 = vsub.f32 %v600, %v601
  %v603 = vand.u32 %v602, 4294901760
  %604 = vmatmul.mubr.f32.gmra.mrb[0].mxu0 %v603
  %v605 = vpop.f32.mrb[0].mxu0
  %v606 = vadd.f32 0.0, %v605
  %v607 = vpop.f32.mrb[0].mxu0
  %608 = vmatprep.mubr.f32.mxu0 0.0
  %v609 = vand.u32 %v163, 4294901760
  %v610 = vsub.f32 %v163, %v609
  %v611 = vand.u32 %v610, 4294901760
  %v612 = vsub.f32 %v610, %v611
  %v613 = vand.u32 %v612, 4294901760
  %614 = vmatmul.mubr.f32.gmra.mrb[0].mxu0 %v613
  %v615 = vpop.f32.mrb[0].mxu0
  %v616 = vadd.f32 0.0, %v615
  %v617 = vpop.f32.mrb[0].mxu0
  %618 = vmatprep.mubr.f32.mxu0 0.0
  %v619 = vand.u32 %v166, 4294901760
  %v620 = vsub.f32 %v166, %v619
  %v621 = vand.u32 %v620, 4294901760
  %v622 = vsub.f32 %v620, %v621
  %v623 = vand.u32 %v622, 4294901760
  %624 = vmatmul.mubr.f32.gmra.mrb[0].mxu0 %v623
  %v625 = vpop.f32.mrb[0].mxu0
  %v626 = vadd.f32 0.0, %v625
  %v627 = vpop.f32.mrb[0].mxu0
  %628 = vmatprep.mubr.f32.mxu0 0.0
  %v629 = vand.u32 %v169, 4294901760
  %v630 = vsub.f32 %v169, %v629
  %v631 = vand.u32 %v630, 4294901760
  %v632 = vsub.f32 %v630, %v631
  %v633 = vand.u32 %v632, 4294901760
  %634 = vmatmul.mubr.f32.gmra.mrb[0].mxu0 %v633
  %v635 = vpop.f32.mrb[0].mxu0
  %v636 = vadd.f32 0.0, %v635
  %v637 = vpop.f32.mrb[0].mxu0
  %638 = vmatprep.mubr.f32.mxu0 0.0
  %v639 = vand.u32 %v172, 4294901760
  %v640 = vsub.f32 %v172, %v639
  %v641 = vand.u32 %v640, 4294901760
  %v642 = vsub.f32 %v640, %v641
  %v643 = vand.u32 %v642, 4294901760
  %644 = vmatmul.mubr.f32.gmra.mrb[0].mxu0 %v643
  %v645 = vpop.f32.mrb[0].mxu0
  %v646 = vadd.f32 0.0, %v645
  %v647 = vpop.f32.mrb[0].mxu0
  %648 = vmatprep.mubr.f32.mxu0 0.0
  %v649 = vand.u32 %v175, 4294901760
  %v650 = vsub.f32 %v175, %v649
  %v651 = vand.u32 %v650, 4294901760
  %v652 = vsub.f32 %v650, %v651
  %v653 = vand.u32 %v652, 4294901760
  %654 = vmatmul.mubr.f32.gmra.mrb[0].mxu0 %v653
  %v655 = vpop.f32.mrb[0].mxu0
  %v656 = vadd.f32 0.0, %v655
  %v657 = vpop.f32.mrb[0].mxu0
  %658 = vmatprep.mubr.f32.mxu0 0.0
  %v659 = vand.u32 %v178, 4294901760
  %v660 = vsub.f32 %v178, %v659
  %v661 = vand.u32 %v660, 4294901760
  %v662 = vsub.f32 %v660, %v661
  %v663 = vand.u32 %v662, 4294901760
  %664 = vmatmul.mubr.f32.gmra.mrb[0].mxu0 %v663
  %v665 = vpop.f32.mrb[0].mxu0
  %v666 = vadd.f32 0.0, %v665
  %v667 = vpop.f32.mrb[0].mxu0
  %668 = vmatprep.mubr.f32.mxu0 0.0
  %v669 = vand.u32 %v181, 4294901760
  %v670 = vsub.f32 %v181, %v669
  %v671 = vand.u32 %v670, 4294901760
  %v672 = vsub.f32 %v670, %v671
  %v673 = vand.u32 %v672, 4294901760
  %674 = vmatmul.mubr.f32.gmra.mrb[0].mxu0 %v673
  %v675 = vpop.f32.mrb[0].mxu0
  %v676 = vadd.f32 0.0, %v675
  %v677 = vpop.f32.mrb[0].mxu0
  %678 = vmatprep.mubr.f32.mxu0 0.0
  %v679 = vand.u32 %v184, 4294901760
  %v680 = vsub.f32 %v184, %v679
  %v681 = vand.u32 %v680, 4294901760
  %v682 = vsub.f32 %v680, %v681
  %v683 = vand.u32 %v682, 4294901760
  %684 = vmatmul.mubr.f32.gmra.mrb[0].mxu0 %v683
  %v685 = vpop.f32.mrb[0].mxu0
  %v686 = vadd.f32 0.0, %v685
  %v687 = vpop.f32.mrb[0].mxu0
  %688 = vmatprep.mubr.f32.mxu0 0.0
  %v689 = vand.u32 %v187, 4294901760
  %v690 = vsub.f32 %v187, %v689
  %v691 = vand.u32 %v690, 4294901760
  %v692 = vsub.f32 %v690, %v691
  %v693 = vand.u32 %v692, 4294901760
  %694 = vmatmul.mubr.f32.gmra.mrb[0].mxu0 %v693
  %v695 = vpop.f32.mrb[0].mxu0
  %v696 = vadd.f32 0.0, %v695
  %v697 = vpop.f32.mrb[0].mxu0
  %698 = vmatprep.mubr.f32.mxu0 0.0
  %v699 = vand.u32 %v190, 4294901760
  %v700 = vsub.f32 %v190, %v699
  %v701 = vand.u32 %v700, 4294901760
  %v702 = vsub.f32 %v700, %v701
  %v703 = vand.u32 %v702, 4294901760
  %704 = vmatmul.mubr.f32.gmra.mrb[0].mxu0 %v703
  %v705 = vpop.f32.mrb[0].mxu0
  %v706 = vadd.f32 0.0, %v705
  %v707 = vpop.f32.mrb[0].mxu0
  %708 = vmatprep.mubr.f32.mxu0 0.0
  %v709 = vand.u32 %v193, 4294901760
  %v710 = vsub.f32 %v193, %v709
  %v711 = vand.u32 %v710, 4294901760
  %v712 = vsub.f32 %v710, %v711
  %v713 = vand.u32 %v712, 4294901760
  %714 = vmatmul.mubr.f32.gmra.mrb[0].mxu0 %v713
  %v715 = vpop.f32.mrb[0].mxu0
  %v716 = vadd.f32 0.0, %v715
  %v717 = vpop.f32.mrb[0].mxu0
  %718 = vmatprep.mubr.f32.mxu0 0.0
  %v719 = vand.u32 %v196, 4294901760
  %v720 = vsub.f32 %v196, %v719
  %v721 = vand.u32 %v720, 4294901760
  %v722 = vsub.f32 %v720, %v721
  %v723 = vand.u32 %v722, 4294901760
  %724 = vmatmul.mubr.f32.gmra.mrb[0].mxu0 %v723
  %v725 = vpop.f32.mrb[0].mxu0
  %v726 = vadd.f32 0.0, %v725
  %v727 = vpop.f32.mrb[0].mxu0
  %728 = vmatprep.mubr.f32.mxu0 0.0
  %v729 = vand.u32 %v199, 4294901760
  %v730 = vsub.f32 %v199, %v729
  %v731 = vand.u32 %v730, 4294901760
  %v732 = vsub.f32 %v730, %v731
  %v733 = vand.u32 %v732, 4294901760
  %734 = vmatmul.mubr.f32.gmra.mrb[0].mxu0 %v733
  %v735 = vpop.f32.mrb[0].mxu0
  %v736 = vadd.f32 0.0, %v735
  %v737 = vpop.f32.mrb[0].mxu0
  %738 = vmatprep.mubr.f32.mxu0 0.0
  %v739 = vand.u32 %v202, 4294901760
  %v740 = vsub.f32 %v202, %v739
  %v741 = vand.u32 %v740, 4294901760
  %v742 = vsub.f32 %v740, %v741
  %v743 = vand.u32 %v742, 4294901760
  %744 = vmatmul.mubr.f32.gmra.mrb[0].mxu0 %v743
  %v745 = vpop.f32.mrb[0].mxu0
  %v746 = vadd.f32 0.0, %v745
  %v747 = vpop.f32.mrb[0].mxu0
  %748 = vmatprep.mubr.f32.mxu0 0.0
  %v749 = vand.u32 %v205, 4294901760
  %v750 = vsub.f32 %v205, %v749
  %v751 = vand.u32 %v750, 4294901760
  %v752 = vsub.f32 %v750, %v751
  %v753 = vand.u32 %v752, 4294901760
  %754 = vmatmul.mubr.f32.gmra.mrb[0].mxu0 %v753
  %v755 = vpop.f32.mrb[0].mxu0
  %v756 = vadd.f32 0.0, %v755
  %v757 = vpop.f32.mrb[0].mxu0
  %758 = vmatprep.mubr.f32.mxu0 0.0
  %v759 = vand.u32 %v208, 4294901760
  %v760 = vsub.f32 %v208, %v759
  %v761 = vand.u32 %v760, 4294901760
  %v762 = vsub.f32 %v760, %v761
  %v763 = vand.u32 %v762, 4294901760
  %764 = vmatmul.mubr.f32.gmra.mrb[0].mxu0 %v763
  %v765 = vpop.f32.mrb[0].mxu0
  %v766 = vadd.f32 0.0, %v765
  %v767 = vpop.f32.mrb[0].mxu0
  %768 = vmatprep.mubr.f32.mxu0 0.0
  %v769 = vand.u32 %v211, 4294901760
  %v770 = vsub.f32 %v211, %v769
  %v771 = vand.u32 %v770, 4294901760
  %v772 = vsub.f32 %v770, %v771
  %v773 = vand.u32 %v772, 4294901760
  %774 = vmatmul.mubr.f32.gmra.mrb[0].mxu0 %v773
  %v775 = vpop.f32.mrb[0].mxu0
  %v776 = vadd.f32 0.0, %v775
  %v777 = vpop.f32.mrb[0].mxu0
  %778 = vmatprep.mubr.f32.mxu0 0.0
  %v779 = vand.u32 %v214, 4294901760
  %v780 = vsub.f32 %v214, %v779
  %v781 = vand.u32 %v780, 4294901760
  %v782 = vsub.f32 %v780, %v781
  %v783 = vand.u32 %v782, 4294901760
  %784 = vmatmul.mubr.f32.gmra.mrb[0].mxu0 %v783
  %v785 = vpop.f32.mrb[0].mxu0
  %v786 = vadd.f32 0.0, %v785
  %v787 = vpop.f32.mrb[0].mxu0
  %788 = vmatprep.mubr.f32.mxu0 0.0
  %v789 = vand.u32 %v217, 4294901760
  %v790 = vsub.f32 %v217, %v789
  %v791 = vand.u32 %v790, 4294901760
  %v792 = vsub.f32 %v790, %v791
  %v793 = vand.u32 %v792, 4294901760
  %794 = vmatmul.mubr.f32.gmra.mrb[0].mxu0 %v793
  %v795 = vpop.f32.mrb[0].mxu0
  %v796 = vadd.f32 0.0, %v795
  %v797 = vpop.f32.mrb[0].mxu0
  %798 = vmatprep.mubr.f32.mxu0 0.0
  %v799 = vand.u32 %v220, 4294901760
  %v800 = vsub.f32 %v220, %v799
  %v801 = vand.u32 %v800, 4294901760
  %v802 = vsub.f32 %v800, %v801
  %v803 = vand.u32 %v802, 4294901760
  %804 = vmatmul.mubr.f32.gmra.mrb[0].mxu0 %v803
  %v805 = vpop.f32.mrb[0].mxu0
  %v806 = vadd.f32 0.0, %v805
  %v807 = vpop.f32.mrb[0].mxu0
  %808 = vmatprep.mubr.f32.mxu0 0.0
  %v809 = vand.u32 %v223, 4294901760
  %v810 = vsub.f32 %v223, %v809
  %v811 = vand.u32 %v810, 4294901760
  %v812 = vsub.f32 %v810, %v811
  %v813 = vand.u32 %v812, 4294901760
  %814 = vmatmul.mubr.f32.gmra.mrb[0].mxu0 %v813
  %v815 = vpop.f32.mrb[0].mxu0
  %v816 = vadd.f32 0.0, %v815
  %v817 = vpop.f32.mrb[0].mxu0
  %818 = vdwg.mxu0
  %819 = vmatprep.subr.mxu0 0.0
  %v820 = vand.u32 %v63, 4294901760
  %v821 = vsub.f32 %v63, %v820
  %v822 = vand.u32 %v821, 4294901760
  %v823 = vsub.f32 %v821, %v822
  %v824 = vand.u32 %v823, 4294901760
  %825 = vmatpush1.msra.mxu0 %v824
  %826 = vmatprep.subr.mxu0 0.0
  %v827 = vand.u32 %v64, 4294901760
  %v828 = vsub.f32 %v64, %v827
  %v829 = vand.u32 %v828, 4294901760
  %v830 = vsub.f32 %v828, %v829
  %v831 = vand.u32 %v830, 4294901760
  %832 = vmatpush1.msra.mxu0 %v831
  %833 = vmatprep.subr.mxu0 0.0
  %v834 = vand.u32 %v65, 4294901760
  %v835 = vsub.f32 %v65, %v834
  %v836 = vand.u32 %v835, 4294901760
  %v837 = vsub.f32 %v835, %v836
  %v838 = vand.u32 %v837, 4294901760
  %839 = vmatpush1.msra.mxu0 %v838
  %840 = vmatprep.subr.mxu0 0.0
  %v841 = vand.u32 %v66, 4294901760
  %v842 = vsub.f32 %v66, %v841
  %v843 = vand.u32 %v842, 4294901760
  %v844 = vsub.f32 %v842, %v843
  %v845 = vand.u32 %v844, 4294901760
  %846 = vmatpush1.msra.mxu0 %v845
  %847 = vmatprep.subr.mxu0 0.0
  %v848 = vand.u32 %v227, 4294901760
  %v849 = vsub.f32 %v227, %v848
  %v850 = vand.u32 %v849, 4294901760
  %v851 = vsub.f32 %v849, %v850
  %v852 = vand.u32 %v851, 4294901760
  %853 = vmatpush1.msra.mxu0 %v852
  %854 = vmatprep.subr.mxu0 0.0
  %855 = vmatpush1.msra.mxu0 0.0
  %856 = vmatprep.subr.mxu0 0.0
  %857 = vmatpush1.msra.mxu0 0.0
  %858 = vmatprep.subr.mxu0 0.0
  %859 = vmatpush1.msra.mxu0 0.0
  %860 = vmatprep.subr.mxu0 0.0
  %861 = vmatpush1.msra.mxu0 0.0
  %862 = vmatprep.subr.mxu0 0.0
  %863 = vmatpush1.msra.mxu0 0.0
  %864 = vmatprep.subr.mxu0 0.0
  %865 = vmatpush1.msra.mxu0 0.0
  %866 = vmatprep.subr.mxu0 0.0
  %867 = vmatpush1.msra.mxu0 0.0
  %868 = vmatprep.subr.mxu0 0.0
  %869 = vmatpush1.msra.mxu0 0.0
  %870 = vmatprep.subr.mxu0 0.0
  %871 = vmatpush1.msra.mxu0 0.0
  %872 = vmatprep.subr.mxu0 0.0
  %873 = vmatpush1.msra.mxu0 0.0
  %874 = vmatprep.subr.mxu0 0.0
  %875 = vmatpush1.msra.mxu0 0.0
  %876 = vmatprep.subr.mxu0 0.0
  %877 = vmatpush1.msra.mxu0 0.0
  %878 = vmatprep.subr.mxu0 0.0
  %879 = vmatpush1.msra.mxu0 0.0
  %880 = vmatprep.subr.mxu0 0.0
  %881 = vmatpush1.msra.mxu0 0.0
  %882 = vmatprep.subr.mxu0 0.0
  %883 = vmatpush1.msra.mxu0 0.0
  %884 = vmatprep.subr.mxu0 0.0
  %885 = vmatpush1.msra.mxu0 0.0
  %886 = vmatprep.subr.mxu0 0.0
  %887 = vmatpush1.msra.mxu0 0.0
  %888 = vmatprep.subr.mxu0 0.0
  %889 = vmatpush1.msra.mxu0 0.0
  %890 = vmatprep.subr.mxu0 0.0
  %891 = vmatpush1.msra.mxu0 0.0
  %892 = vmatprep.subr.mxu0 0.0
  %893 = vmatpush1.msra.mxu0 0.0
  %894 = vmatprep.subr.mxu0 0.0
  %895 = vmatpush1.msra.mxu0 0.0
  %896 = vmatprep.subr.mxu0 0.0
  %897 = vmatpush1.msra.mxu0 0.0
  %898 = vmatprep.subr.mxu0 0.0
  %899 = vmatpush1.msra.mxu0 0.0
  %900 = vmatprep.subr.mxu0 0.0
  %901 = vmatpush1.msra.mxu0 0.0
  %902 = vmatprep.subr.mxu0 0.0
  %903 = vmatpush1.msra.mxu0 0.0
  %904 = vmatprep.subr.mxu0 0.0
  %905 = vmatpush1.msra.mxu0 0.0
  %906 = vmatprep.subr.mxu0 0.0
  %907 = vmatpush1.msra.mxu0 0.0
  %908 = vmatprep.mubr.f32.mxu0 0.0
  %v909 = vand.u32 %v70, 4294901760
  %910 = vmatmul.mubr.f32.gmra.mrb[0].mxu0 %v909
  %v911 = vpop.f32.mrb[0].mxu0
  %v912 = vadd.f32 %v306, %v911
  %v913 = vpop.f32.mrb[0].mxu0
  %914 = vmatprep.mubr.f32.mxu0 0.0
  %v915 = vand.u32 %v73, 4294901760
  %916 = vmatmul.mubr.f32.gmra.mrb[0].mxu0 %v915
  %v917 = vpop.f32.mrb[0].mxu0
  %v918 = vadd.f32 %v316, %v917
  %v919 = vpop.f32.mrb[0].mxu0
  %920 = vmatprep.mubr.f32.mxu0 0.0
  %v921 = vand.u32 %v76, 4294901760
  %922 = vmatmul.mubr.f32.gmra.mrb[0].mxu0 %v921
  %v923 = vpop.f32.mrb[0].mxu0
  %v924 = vadd.f32 %v326, %v923
  %v925 = vpop.f32.mrb[0].mxu0
  %926 = vmatprep.mubr.f32.mxu0 0.0
  %v927 = vand.u32 %v79, 4294901760
  %928 = vmatmul.mubr.f32.gmra.mrb[0].mxu0 %v927
  %v929 = vpop.f32.mrb[0].mxu0
  %v930 = vadd.f32 %v336, %v929
  %v931 = vpop.f32.mrb[0].mxu0
  %932 = vmatprep.mubr.f32.mxu0 0.0
  %v933 = vand.u32 %v82, 4294901760
  %934 = vmatmul.mubr.f32.gmra.mrb[0].mxu0 %v933
  %v935 = vpop.f32.mrb[0].mxu0
  %v936 = vadd.f32 %v346, %v935
  %v937 = vpop.f32.mrb[0].mxu0
  %938 = vmatprep.mubr.f32.mxu0 0.0
  %v939 = vand.u32 %v85, 4294901760
  %940 = vmatmul.mubr.f32.gmra.mrb[0].mxu0 %v939
  %v941 = vpop.f32.mrb[0].mxu0
  %v942 = vadd.f32 %v356, %v941
  %v943 = vpop.f32.mrb[0].mxu0
  %944 = vmatprep.mubr.f32.mxu0 0.0
  %v945 = vand.u32 %v88, 4294901760
  %946 = vmatmul.mubr.f32.gmra.mrb[0].mxu0 %v945
  %v947 = vpop.f32.mrb[0].mxu0
  %v948 = vadd.f32 %v366, %v947
  %v949 = vpop.f32.mrb[0].mxu0
  %950 = vmatprep.mubr.f32.mxu0 0.0
  %v951 = vand.u32 %v91, 4294901760
  %952 = vmatmul.mubr.f32.gmra.mrb[0].mxu0 %v951
  %v953 = vpop.f32.mrb[0].mxu0
  %v954 = vadd.f32 %v376, %v953
  %v955 = vpop.f32.mrb[0].mxu0
  %956 = vmatprep.mubr.f32.mxu0 0.0
  %v957 = vand.u32 %v94, 4294901760
  %958 = vmatmul.mubr.f32.gmra.mrb[0].mxu0 %v957
  %v959 = vpop.f32.mrb[0].mxu0
  %v960 = vadd.f32 %v386, %v959
  %v961 = vpop.f32.mrb[0].mxu0
  %962 = vmatprep.mubr.f32.mxu0 0.0
  %v963 = vand.u32 %v97, 4294901760
  %964 = vmatmul.mubr.f32.gmra.mrb[0].mxu0 %v963
  %v965 = vpop.f32.mrb[0].mxu0
  %v966 = vadd.f32 %v396, %v965
  %v967 = vpop.f32.mrb[0].mxu0
  %968 = vmatprep.mubr.f32.mxu0 0.0
  %v969 = vand.u32 %v100, 4294901760
  %970 = vmatmul.mubr.f32.gmra.mrb[0].mxu0 %v969
  %v971 = vpop.f32.mrb[0].mxu0
  %v972 = vadd.f32 %v406, %v971
  %v973 = vpop.f32.mrb[0].mxu0
  %974 = vmatprep.mubr.f32.mxu0 0.0
  %v975 = vand.u32 %v103, 4294901760
  %976 = vmatmul.mubr.f32.gmra.mrb[0].mxu0 %v975
  %v977 = vpop.f32.mrb[0].mxu0
  %v978 = vadd.f32 %v416, %v977
  %v979 = vpop.f32.mrb[0].mxu0
  %980 = vmatprep.mubr.f32.mxu0 0.0
  %v981 = vand.u32 %v106, 4294901760
  %982 = vmatmul.mubr.f32.gmra.mrb[0].mxu0 %v981
  %v983 = vpop.f32.mrb[0].mxu0
  %v984 = vadd.f32 %v426, %v983
  %v985 = vpop.f32.mrb[0].mxu0
  %986 = vmatprep.mubr.f32.mxu0 0.0
  %v987 = vand.u32 %v109, 4294901760
  %988 = vmatmul.mubr.f32.gmra.mrb[0].mxu0 %v987
  %v989 = vpop.f32.mrb[0].mxu0
  %v990 = vadd.f32 %v436, %v989
  %v991 = vpop.f32.mrb[0].mxu0
  %992 = vmatprep.mubr.f32.mxu0 0.0
  %v993 = vand.u32 %v112, 4294901760
  %994 = vmatmul.mubr.f32.gmra.mrb[0].mxu0 %v993
  %v995 = vpop.f32.mrb[0].mxu0
  %v996 = vadd.f32 %v446, %v995
  %v997 = vpop.f32.mrb[0].mxu0
  %998 = vmatprep.mubr.f32.mxu0 0.0
  %v999 = vand.u32 %v115, 4294901760
  %1000 = vmatmul.mubr.f32.gmra.mrb[0].mxu0 %v999
  %v1001 = vpop.f32.mrb[0].mxu0
  %v1002 = vadd.f32 %v456, %v1001
  %v1003 = vpop.f32.mrb[0].mxu0
  %1004 = vmatprep.mubr.f32.mxu0 0.0
  %v1005 = vand.u32 %v118, 4294901760
  %1006 = vmatmul.mubr.f32.gmra.mrb[0].mxu0 %v1005
  %v1007 = vpop.f32.mrb[0].mxu0
  %v1008 = vadd.f32 %v466, %v1007
  %v1009 = vpop.f32.mrb[0].mxu0
  %1010 = vmatprep.mubr.f32.mxu0 0.0
  %v1011 = vand.u32 %v121, 4294901760
  %1012 = vmatmul.mubr.f32.gmra.mrb[0].mxu0 %v1011
  %v1013 = vpop.f32.mrb[0].mxu0
  %v1014 = vadd.f32 %v476, %v1013
  %v1015 = vpop.f32.mrb[0].mxu0
  %1016 = vmatprep.mubr.f32.mxu0 0.0
  %v1017 = vand.u32 %v124, 4294901760
  %1018 = vmatmul.mubr.f32.gmra.mrb[0].mxu0 %v1017
  %v1019 = vpop.f32.mrb[0].mxu0
  %v1020 = vadd.f32 %v486, %v1019
  %v1021 = vpop.f32.mrb[0].mxu0
  %1022 = vmatprep.mubr.f32.mxu0 0.0
  %v1023 = vand.u32 %v127, 4294901760
  %1024 = vmatmul.mubr.f32.gmra.mrb[0].mxu0 %v1023
  %v1025 = vpop.f32.mrb[0].mxu0
  %v1026 = vadd.f32 %v496, %v1025
  %v1027 = vpop.f32.mrb[0].mxu0
  %1028 = vmatprep.mubr.f32.mxu0 0.0
  %v1029 = vand.u32 %v130, 4294901760
  %1030 = vmatmul.mubr.f32.gmra.mrb[0].mxu0 %v1029
  %v1031 = vpop.f32.mrb[0].mxu0
  %v1032 = vadd.f32 %v506, %v1031
  %v1033 = vpop.f32.mrb[0].mxu0
  %1034 = vmatprep.mubr.f32.mxu0 0.0
  %v1035 = vand.u32 %v133, 4294901760
  %1036 = vmatmul.mubr.f32.gmra.mrb[0].mxu0 %v1035
  %v1037 = vpop.f32.mrb[0].mxu0
  %v1038 = vadd.f32 %v516, %v1037
  %v1039 = vpop.f32.mrb[0].mxu0
  %1040 = vmatprep.mubr.f32.mxu0 0.0
  %v1041 = vand.u32 %v136, 4294901760
  %1042 = vmatmul.mubr.f32.gmra.mrb[0].mxu0 %v1041
  %v1043 = vpop.f32.mrb[0].mxu0
  %v1044 = vadd.f32 %v526, %v1043
  %v1045 = vpop.f32.mrb[0].mxu0
  %1046 = vmatprep.mubr.f32.mxu0 0.0
  %v1047 = vand.u32 %v139, 4294901760
  %1048 = vmatmul.mubr.f32.gmra.mrb[0].mxu0 %v1047
  %v1049 = vpop.f32.mrb[0].mxu0
  %v1050 = vadd.f32 %v536, %v1049
  %v1051 = vpop.f32.mrb[0].mxu0
  %1052 = vmatprep.mubr.f32.mxu0 0.0
  %v1053 = vand.u32 %v142, 4294901760
  %1054 = vmatmul.mubr.f32.gmra.mrb[0].mxu0 %v1053
  %v1055 = vpop.f32.mrb[0].mxu0
  %v1056 = vadd.f32 %v546, %v1055
  %v1057 = vpop.f32.mrb[0].mxu0
  %1058 = vmatprep.mubr.f32.mxu0 0.0
  %v1059 = vand.u32 %v145, 4294901760
  %1060 = vmatmul.mubr.f32.gmra.mrb[0].mxu0 %v1059
  %v1061 = vpop.f32.mrb[0].mxu0
  %v1062 = vadd.f32 %v556, %v1061
  %v1063 = vpop.f32.mrb[0].mxu0
  %1064 = vmatprep.mubr.f32.mxu0 0.0
  %v1065 = vand.u32 %v148, 4294901760
  %1066 = vmatmul.mubr.f32.gmra.mrb[0].mxu0 %v1065
  %v1067 = vpop.f32.mrb[0].mxu0
  %v1068 = vadd.f32 %v566, %v1067
  %v1069 = vpop.f32.mrb[0].mxu0
  %1070 = vmatprep.mubr.f32.mxu0 0.0
  %v1071 = vand.u32 %v151, 4294901760
  %1072 = vmatmul.mubr.f32.gmra.mrb[0].mxu0 %v1071
  %v1073 = vpop.f32.mrb[0].mxu0
  %v1074 = vadd.f32 %v576, %v1073
  %v1075 = vpop.f32.mrb[0].mxu0
  %1076 = vmatprep.mubr.f32.mxu0 0.0
  %v1077 = vand.u32 %v154, 4294901760
  %1078 = vmatmul.mubr.f32.gmra.mrb[0].mxu0 %v1077
  %v1079 = vpop.f32.mrb[0].mxu0
  %v1080 = vadd.f32 %v586, %v1079
  %v1081 = vpop.f32.mrb[0].mxu0
  %1082 = vmatprep.mubr.f32.mxu0 0.0
  %v1083 = vand.u32 %v157, 4294901760
  %1084 = vmatmul.mubr.f32.gmra.mrb[0].mxu0 %v1083
  %v1085 = vpop.f32.mrb[0].mxu0
  %v1086 = vadd.f32 %v596, %v1085
  %v1087 = vpop.f32.mrb[0].mxu0
  %1088 = vmatprep.mubr.f32.mxu0 0.0
  %v1089 = vand.u32 %v160, 4294901760
  %1090 = vmatmul.mubr.f32.gmra.mrb[0].mxu0 %v1089
  %v1091 = vpop.f32.mrb[0].mxu0
  %v1092 = vadd.f32 %v606, %v1091
  %v1093 = vpop.f32.mrb[0].mxu0
  %1094 = vmatprep.mubr.f32.mxu0 0.0
  %v1095 = vand.u32 %v163, 4294901760
  %1096 = vmatmul.mubr.f32.gmra.mrb[0].mxu0 %v1095
  %v1097 = vpop.f32.mrb[0].mxu0
  %v1098 = vadd.f32 %v616, %v1097
  %v1099 = vpop.f32.mrb[0].mxu0
  %1100 = vmatprep.mubr.f32.mxu0 0.0
  %v1101 = vand.u32 %v166, 4294901760
  %1102 = vmatmul.mubr.f32.gmra.mrb[0].mxu0 %v1101
  %v1103 = vpop.f32.mrb[0].mxu0
  %v1104 = vadd.f32 %v626, %v1103
  %v1105 = vpop.f32.mrb[0].mxu0
  %1106 = vmatprep.mubr.f32.mxu0 0.0
  %v1107 = vand.u32 %v169, 4294901760
  %1108 = vmatmul.mubr.f32.gmra.mrb[0].mxu0 %v1107
  %v1109 = vpop.f32.mrb[0].mxu0
  %v1110 = vadd.f32 %v636, %v1109
  %v1111 = vpop.f32.mrb[0].mxu0
  %1112 = vmatprep.mubr.f32.mxu0 0.0
  %v1113 = vand.u32 %v172, 4294901760
  %1114 = vmatmul.mubr.f32.gmra.mrb[0].mxu0 %v1113
  %v1115 = vpop.f32.mrb[0].mxu0
  %v1116 = vadd.f32 %v646, %v1115
  %v1117 = vpop.f32.mrb[0].mxu0
  %1118 = vmatprep.mubr.f32.mxu0 0.0
  %v1119 = vand.u32 %v175, 4294901760
  %1120 = vmatmul.mubr.f32.gmra.mrb[0].mxu0 %v1119
  %v1121 = vpop.f32.mrb[0].mxu0
  %v1122 = vadd.f32 %v656, %v1121
  %v1123 = vpop.f32.mrb[0].mxu0
  %1124 = vmatprep.mubr.f32.mxu0 0.0
  %v1125 = vand.u32 %v178, 4294901760
  %1126 = vmatmul.mubr.f32.gmra.mrb[0].mxu0 %v1125
  %v1127 = vpop.f32.mrb[0].mxu0
  %v1128 = vadd.f32 %v666, %v1127
  %v1129 = vpop.f32.mrb[0].mxu0
  %1130 = vmatprep.mubr.f32.mxu0 0.0
  %v1131 = vand.u32 %v181, 4294901760
  %1132 = vmatmul.mubr.f32.gmra.mrb[0].mxu0 %v1131
  %v1133 = vpop.f32.mrb[0].mxu0
  %v1134 = vadd.f32 %v676, %v1133
  %v1135 = vpop.f32.mrb[0].mxu0
  %1136 = vmatprep.mubr.f32.mxu0 0.0
  %v1137 = vand.u32 %v184, 4294901760
  %1138 = vmatmul.mubr.f32.gmra.mrb[0].mxu0 %v1137
  %v1139 = vpop.f32.mrb[0].mxu0
  %v1140 = vadd.f32 %v686, %v1139
  %v1141 = vpop.f32.mrb[0].mxu0
  %1142 = vmatprep.mubr.f32.mxu0 0.0
  %v1143 = vand.u32 %v187, 4294901760
  %1144 = vmatmul.mubr.f32.gmra.mrb[0].mxu0 %v1143
  %v1145 = vpop.f32.mrb[0].mxu0
  %v1146 = vadd.f32 %v696, %v1145
  %v1147 = vpop.f32.mrb[0].mxu0
  %1148 = vmatprep.mubr.f32.mxu0 0.0
  %v1149 = vand.u32 %v190, 4294901760
  %1150 = vmatmul.mubr.f32.gmra.mrb[0].mxu0 %v1149
  %v1151 = vpop.f32.mrb[0].mxu0
  %v1152 = vadd.f32 %v706, %v1151
  %v1153 = vpop.f32.mrb[0].mxu0
  %1154 = vmatprep.mubr.f32.mxu0 0.0
  %v1155 = vand.u32 %v193, 4294901760
  %1156 = vmatmul.mubr.f32.gmra.mrb[0].mxu0 %v1155
  %v1157 = vpop.f32.mrb[0].mxu0
  %v1158 = vadd.f32 %v716, %v1157
  %v1159 = vpop.f32.mrb[0].mxu0
  %1160 = vmatprep.mubr.f32.mxu0 0.0
  %v1161 = vand.u32 %v196, 4294901760
  %1162 = vmatmul.mubr.f32.gmra.mrb[0].mxu0 %v1161
  %v1163 = vpop.f32.mrb[0].mxu0
  %v1164 = vadd.f32 %v726, %v1163
  %v1165 = vpop.f32.mrb[0].mxu0
  %1166 = vmatprep.mubr.f32.mxu0 0.0
  %v1167 = vand.u32 %v199, 4294901760
  %1168 = vmatmul.mubr.f32.gmra.mrb[0].mxu0 %v1167
  %v1169 = vpop.f32.mrb[0].mxu0
  %v1170 = vadd.f32 %v736, %v1169
  %v1171 = vpop.f32.mrb[0].mxu0
  %1172 = vmatprep.mubr.f32.mxu0 0.0
  %v1173 = vand.u32 %v202, 4294901760
  %1174 = vmatmul.mubr.f32.gmra.mrb[0].mxu0 %v1173
  %v1175 = vpop.f32.mrb[0].mxu0
  %v1176 = vadd.f32 %v746, %v1175
  %v1177 = vpop.f32.mrb[0].mxu0
  %1178 = vmatprep.mubr.f32.mxu0 0.0
  %v1179 = vand.u32 %v205, 4294901760
  %1180 = vmatmul.mubr.f32.gmra.mrb[0].mxu0 %v1179
  %v1181 = vpop.f32.mrb[0].mxu0
  %v1182 = vadd.f32 %v756, %v1181
  %v1183 = vpop.f32.mrb[0].mxu0
  %1184 = vmatprep.mubr.f32.mxu0 0.0
  %v1185 = vand.u32 %v208, 4294901760
  %1186 = vmatmul.mubr.f32.gmra.mrb[0].mxu0 %v1185
  %v1187 = vpop.f32.mrb[0].mxu0
  %v1188 = vadd.f32 %v766, %v1187
  %v1189 = vpop.f32.mrb[0].mxu0
  %1190 = vmatprep.mubr.f32.mxu0 0.0
  %v1191 = vand.u32 %v211, 4294901760
  %1192 = vmatmul.mubr.f32.gmra.mrb[0].mxu0 %v1191
  %v1193 = vpop.f32.mrb[0].mxu0
  %v1194 = vadd.f32 %v776, %v1193
  %v1195 = vpop.f32.mrb[0].mxu0
  %1196 = vmatprep.mubr.f32.mxu0 0.0
  %v1197 = vand.u32 %v214, 4294901760
  %1198 = vmatmul.mubr.f32.gmra.mrb[0].mxu0 %v1197
  %v1199 = vpop.f32.mrb[0].mxu0
  %v1200 = vadd.f32 %v786, %v1199
  %v1201 = vpop.f32.mrb[0].mxu0
  %1202 = vmatprep.mubr.f32.mxu0 0.0
  %v1203 = vand.u32 %v217, 4294901760
  %1204 = vmatmul.mubr.f32.gmra.mrb[0].mxu0 %v1203
  %v1205 = vpop.f32.mrb[0].mxu0
  %v1206 = vadd.f32 %v796, %v1205
  %v1207 = vpop.f32.mrb[0].mxu0
  %1208 = vmatprep.mubr.f32.mxu0 0.0
  %v1209 = vand.u32 %v220, 4294901760
  %1210 = vmatmul.mubr.f32.gmra.mrb[0].mxu0 %v1209
  %v1211 = vpop.f32.mrb[0].mxu0
  %v1212 = vadd.f32 %v806, %v1211
  %v1213 = vpop.f32.mrb[0].mxu0
  %1214 = vmatprep.mubr.f32.mxu0 0.0
  %v1215 = vand.u32 %v223, 4294901760
  %1216 = vmatmul.mubr.f32.gmra.mrb[0].mxu0 %v1215
  %v1217 = vpop.f32.mrb[0].mxu0
  %v1218 = vadd.f32 %v816, %v1217
  %v1219 = vpop.f32.mrb[0].mxu0
  %1220 = vdwg.mxu0
  %1221 = vmatprep.subr.mxu0 0.0
  %v1222 = vand.u32 %v63, 4294901760
  %v1223 = vsub.f32 %v63, %v1222
  %1224 = vmatpush1.msra.mxu0 %v1223
  %1225 = vmatprep.subr.mxu0 0.0
  %v1226 = vand.u32 %v64, 4294901760
  %v1227 = vsub.f32 %v64, %v1226
  %1228 = vmatpush1.msra.mxu0 %v1227
  %1229 = vmatprep.subr.mxu0 0.0
  %v1230 = vand.u32 %v65, 4294901760
  %v1231 = vsub.f32 %v65, %v1230
  %1232 = vmatpush1.msra.mxu0 %v1231
  %1233 = vmatprep.subr.mxu0 0.0
  %v1234 = vand.u32 %v66, 4294901760
  %v1235 = vsub.f32 %v66, %v1234
  %1236 = vmatpush1.msra.mxu0 %v1235
  %1237 = vmatprep.subr.mxu0 0.0
  %v1238 = vand.u32 %v227, 4294901760
  %v1239 = vsub.f32 %v227, %v1238
  %1240 = vmatpush1.msra.mxu0 %v1239
  %1241 = vmatprep.subr.mxu0 0.0
  %1242 = vmatpush1.msra.mxu0 0.0
  %1243 = vmatprep.subr.mxu0 0.0
  %1244 = vmatpush1.msra.mxu0 0.0
  %1245 = vmatprep.subr.mxu0 0.0
  %1246 = vmatpush1.msra.mxu0 0.0
  %1247 = vmatprep.subr.mxu0 0.0
  %1248 = vmatpush1.msra.mxu0 0.0
  %1249 = vmatprep.subr.mxu0 0.0
  %1250 = vmatpush1.msra.mxu0 0.0
  %1251 = vmatprep.subr.mxu0 0.0
  %1252 = vmatpush1.msra.mxu0 0.0
  %1253 = vmatprep.subr.mxu0 0.0
  %1254 = vmatpush1.msra.mxu0 0.0
  %1255 = vmatprep.subr.mxu0 0.0
  %1256 = vmatpush1.msra.mxu0 0.0
  %1257 = vmatprep.subr.mxu0 0.0
  %1258 = vmatpush1.msra.mxu0 0.0
  %1259 = vmatprep.subr.mxu0 0.0
  %1260 = vmatpush1.msra.mxu0 0.0
  %1261 = vmatprep.subr.mxu0 0.0
  %1262 = vmatpush1.msra.mxu0 0.0
  %1263 = vmatprep.subr.mxu0 0.0
  %1264 = vmatpush1.msra.mxu0 0.0
  %1265 = vmatprep.subr.mxu0 0.0
  %1266 = vmatpush1.msra.mxu0 0.0
  %1267 = vmatprep.subr.mxu0 0.0
  %1268 = vmatpush1.msra.mxu0 0.0
  %1269 = vmatprep.subr.mxu0 0.0
  %1270 = vmatpush1.msra.mxu0 0.0
  %1271 = vmatprep.subr.mxu0 0.0
  %1272 = vmatpush1.msra.mxu0 0.0
  %1273 = vmatprep.subr.mxu0 0.0
  %1274 = vmatpush1.msra.mxu0 0.0
  %1275 = vmatprep.subr.mxu0 0.0
  %1276 = vmatpush1.msra.mxu0 0.0
  %1277 = vmatprep.subr.mxu0 0.0
  %1278 = vmatpush1.msra.mxu0 0.0
  %1279 = vmatprep.subr.mxu0 0.0
  %1280 = vmatpush1.msra.mxu0 0.0
  %1281 = vmatprep.subr.mxu0 0.0
  %1282 = vmatpush1.msra.mxu0 0.0
  %1283 = vmatprep.subr.mxu0 0.0
  %1284 = vmatpush1.msra.mxu0 0.0
  %1285 = vmatprep.subr.mxu0 0.0
  %1286 = vmatpush1.msra.mxu0 0.0
  %1287 = vmatprep.subr.mxu0 0.0
  %1288 = vmatpush1.msra.mxu0 0.0
  %1289 = vmatprep.subr.mxu0 0.0
  %1290 = vmatpush1.msra.mxu0 0.0
  %1291 = vmatprep.subr.mxu0 0.0
  %1292 = vmatpush1.msra.mxu0 0.0
  %1293 = vmatprep.subr.mxu0 0.0
  %1294 = vmatpush1.msra.mxu0 0.0
  %1295 = vmatprep.mubr.f32.mxu0 0.0
  %v1296 = vand.u32 %v70, 4294901760
  %v1297 = vsub.f32 %v70, %v1296
  %1298 = vmatmul.mubr.f32.gmra.mrb[0].mxu0 %v1297
  %v1299 = vpop.f32.mrb[0].mxu0
  %v1300 = vadd.f32 %v912, %v1299
  %v1301 = vpop.f32.mrb[0].mxu0
  %1302 = vmatprep.mubr.f32.mxu0 0.0
  %v1303 = vand.u32 %v73, 4294901760
  %v1304 = vsub.f32 %v73, %v1303
  %1305 = vmatmul.mubr.f32.gmra.mrb[0].mxu0 %v1304
  %v1306 = vpop.f32.mrb[0].mxu0
  %v1307 = vadd.f32 %v918, %v1306
  %v1308 = vpop.f32.mrb[0].mxu0
  %1309 = vmatprep.mubr.f32.mxu0 0.0
  %v1310 = vand.u32 %v76, 4294901760
  %v1311 = vsub.f32 %v76, %v1310
  %1312 = vmatmul.mubr.f32.gmra.mrb[0].mxu0 %v1311
  %v1313 = vpop.f32.mrb[0].mxu0
  %v1314 = vadd.f32 %v924, %v1313
  %v1315 = vpop.f32.mrb[0].mxu0
  %1316 = vmatprep.mubr.f32.mxu0 0.0
  %v1317 = vand.u32 %v79, 4294901760
  %v1318 = vsub.f32 %v79, %v1317
  %1319 = vmatmul.mubr.f32.gmra.mrb[0].mxu0 %v1318
  %v1320 = vpop.f32.mrb[0].mxu0
  %v1321 = vadd.f32 %v930, %v1320
  %v1322 = vpop.f32.mrb[0].mxu0
  %1323 = vmatprep.mubr.f32.mxu0 0.0
  %v1324 = vand.u32 %v82, 4294901760
  %v1325 = vsub.f32 %v82, %v1324
  %1326 = vmatmul.mubr.f32.gmra.mrb[0].mxu0 %v1325
  %v1327 = vpop.f32.mrb[0].mxu0
  %v1328 = vadd.f32 %v936, %v1327
  %v1329 = vpop.f32.mrb[0].mxu0
  %1330 = vmatprep.mubr.f32.mxu0 0.0
  %v1331 = vand.u32 %v85, 4294901760
  %v1332 = vsub.f32 %v85, %v1331
  %1333 = vmatmul.mubr.f32.gmra.mrb[0].mxu0 %v1332
  %v1334 = vpop.f32.mrb[0].mxu0
  %v1335 = vadd.f32 %v942, %v1334
  %v1336 = vpop.f32.mrb[0].mxu0
  %1337 = vmatprep.mubr.f32.mxu0 0.0
  %v1338 = vand.u32 %v88, 4294901760
  %v1339 = vsub.f32 %v88, %v1338
  %1340 = vmatmul.mubr.f32.gmra.mrb[0].mxu0 %v1339
  %v1341 = vpop.f32.mrb[0].mxu0
  %v1342 = vadd.f32 %v948, %v1341
  %v1343 = vpop.f32.mrb[0].mxu0
  %1344 = vmatprep.mubr.f32.mxu0 0.0
  %v1345 = vand.u32 %v91, 4294901760
  %v1346 = vsub.f32 %v91, %v1345
  %1347 = vmatmul.mubr.f32.gmra.mrb[0].mxu0 %v1346
  %v1348 = vpop.f32.mrb[0].mxu0
  %v1349 = vadd.f32 %v954, %v1348
  %v1350 = vpop.f32.mrb[0].mxu0
  %1351 = vmatprep.mubr.f32.mxu0 0.0
  %v1352 = vand.u32 %v94, 4294901760
  %v1353 = vsub.f32 %v94, %v1352
  %1354 = vmatmul.mubr.f32.gmra.mrb[0].mxu0 %v1353
  %v1355 = vpop.f32.mrb[0].mxu0
  %v1356 = vadd.f32 %v960, %v1355
  %v1357 = vpop.f32.mrb[0].mxu0
  %1358 = vmatprep.mubr.f32.mxu0 0.0
  %v1359 = vand.u32 %v97, 4294901760
  %v1360 = vsub.f32 %v97, %v1359
  %1361 = vmatmul.mubr.f32.gmra.mrb[0].mxu0 %v1360
  %v1362 = vpop.f32.mrb[0].mxu0
  %v1363 = vadd.f32 %v966, %v1362
  %v1364 = vpop.f32.mrb[0].mxu0
  %1365 = vmatprep.mubr.f32.mxu0 0.0
  %v1366 = vand.u32 %v100, 4294901760
  %v1367 = vsub.f32 %v100, %v1366
  %1368 = vmatmul.mubr.f32.gmra.mrb[0].mxu0 %v1367
  %v1369 = vpop.f32.mrb[0].mxu0
  %v1370 = vadd.f32 %v972, %v1369
  %v1371 = vpop.f32.mrb[0].mxu0
  %1372 = vmatprep.mubr.f32.mxu0 0.0
  %v1373 = vand.u32 %v103, 4294901760
  %v1374 = vsub.f32 %v103, %v1373
  %1375 = vmatmul.mubr.f32.gmra.mrb[0].mxu0 %v1374
  %v1376 = vpop.f32.mrb[0].mxu0
  %v1377 = vadd.f32 %v978, %v1376
  %v1378 = vpop.f32.mrb[0].mxu0
  %1379 = vmatprep.mubr.f32.mxu0 0.0
  %v1380 = vand.u32 %v106, 4294901760
  %v1381 = vsub.f32 %v106, %v1380
  %1382 = vmatmul.mubr.f32.gmra.mrb[0].mxu0 %v1381
  %v1383 = vpop.f32.mrb[0].mxu0
  %v1384 = vadd.f32 %v984, %v1383
  %v1385 = vpop.f32.mrb[0].mxu0
  %1386 = vmatprep.mubr.f32.mxu0 0.0
  %v1387 = vand.u32 %v109, 4294901760
  %v1388 = vsub.f32 %v109, %v1387
  %1389 = vmatmul.mubr.f32.gmra.mrb[0].mxu0 %v1388
  %v1390 = vpop.f32.mrb[0].mxu0
  %v1391 = vadd.f32 %v990, %v1390
  %v1392 = vpop.f32.mrb[0].mxu0
  %1393 = vmatprep.mubr.f32.mxu0 0.0
  %v1394 = vand.u32 %v112, 4294901760
  %v1395 = vsub.f32 %v112, %v1394
  %1396 = vmatmul.mubr.f32.gmra.mrb[0].mxu0 %v1395
  %v1397 = vpop.f32.mrb[0].mxu0
  %v1398 = vadd.f32 %v996, %v1397
  %v1399 = vpop.f32.mrb[0].mxu0
  %1400 = vmatprep.mubr.f32.mxu0 0.0
  %v1401 = vand.u32 %v115, 4294901760
  %v1402 = vsub.f32 %v115, %v1401
  %1403 = vmatmul.mubr.f32.gmra.mrb[0].mxu0 %v1402
  %v1404 = vpop.f32.mrb[0].mxu0
  %v1405 = vadd.f32 %v1002, %v1404
  %v1406 = vpop.f32.mrb[0].mxu0
  %1407 = vmatprep.mubr.f32.mxu0 0.0
  %v1408 = vand.u32 %v118, 4294901760
  %v1409 = vsub.f32 %v118, %v1408
  %1410 = vmatmul.mubr.f32.gmra.mrb[0].mxu0 %v1409
  %v1411 = vpop.f32.mrb[0].mxu0
  %v1412 = vadd.f32 %v1008, %v1411
  %v1413 = vpop.f32.mrb[0].mxu0
  %1414 = vmatprep.mubr.f32.mxu0 0.0
  %v1415 = vand.u32 %v121, 4294901760
  %v1416 = vsub.f32 %v121, %v1415
  %1417 = vmatmul.mubr.f32.gmra.mrb[0].mxu0 %v1416
  %v1418 = vpop.f32.mrb[0].mxu0
  %v1419 = vadd.f32 %v1014, %v1418
  %v1420 = vpop.f32.mrb[0].mxu0
  %1421 = vmatprep.mubr.f32.mxu0 0.0
  %v1422 = vand.u32 %v124, 4294901760
  %v1423 = vsub.f32 %v124, %v1422
  %1424 = vmatmul.mubr.f32.gmra.mrb[0].mxu0 %v1423
  %v1425 = vpop.f32.mrb[0].mxu0
  %v1426 = vadd.f32 %v1020, %v1425
  %v1427 = vpop.f32.mrb[0].mxu0
  %1428 = vmatprep.mubr.f32.mxu0 0.0
  %v1429 = vand.u32 %v127, 4294901760
  %v1430 = vsub.f32 %v127, %v1429
  %1431 = vmatmul.mubr.f32.gmra.mrb[0].mxu0 %v1430
  %v1432 = vpop.f32.mrb[0].mxu0
  %v1433 = vadd.f32 %v1026, %v1432
  %v1434 = vpop.f32.mrb[0].mxu0
  %1435 = vmatprep.mubr.f32.mxu0 0.0
  %v1436 = vand.u32 %v130, 4294901760
  %v1437 = vsub.f32 %v130, %v1436
  %1438 = vmatmul.mubr.f32.gmra.mrb[0].mxu0 %v1437
  %v1439 = vpop.f32.mrb[0].mxu0
  %v1440 = vadd.f32 %v1032, %v1439
  %v1441 = vpop.f32.mrb[0].mxu0
  %1442 = vmatprep.mubr.f32.mxu0 0.0
  %v1443 = vand.u32 %v133, 4294901760
  %v1444 = vsub.f32 %v133, %v1443
  %1445 = vmatmul.mubr.f32.gmra.mrb[0].mxu0 %v1444
  %v1446 = vpop.f32.mrb[0].mxu0
  %v1447 = vadd.f32 %v1038, %v1446
  %v1448 = vpop.f32.mrb[0].mxu0
  %1449 = vmatprep.mubr.f32.mxu0 0.0
  %v1450 = vand.u32 %v136, 4294901760
  %v1451 = vsub.f32 %v136, %v1450
  %1452 = vmatmul.mubr.f32.gmra.mrb[0].mxu0 %v1451
  %v1453 = vpop.f32.mrb[0].mxu0
  %v1454 = vadd.f32 %v1044, %v1453
  %v1455 = vpop.f32.mrb[0].mxu0
  %1456 = vmatprep.mubr.f32.mxu0 0.0
  %v1457 = vand.u32 %v139, 4294901760
  %v1458 = vsub.f32 %v139, %v1457
  %1459 = vmatmul.mubr.f32.gmra.mrb[0].mxu0 %v1458
  %v1460 = vpop.f32.mrb[0].mxu0
  %v1461 = vadd.f32 %v1050, %v1460
  %v1462 = vpop.f32.mrb[0].mxu0
  %1463 = vmatprep.mubr.f32.mxu0 0.0
  %v1464 = vand.u32 %v142, 4294901760
  %v1465 = vsub.f32 %v142, %v1464
  %1466 = vmatmul.mubr.f32.gmra.mrb[0].mxu0 %v1465
  %v1467 = vpop.f32.mrb[0].mxu0
  %v1468 = vadd.f32 %v1056, %v1467
  %v1469 = vpop.f32.mrb[0].mxu0
  %1470 = vmatprep.mubr.f32.mxu0 0.0
  %v1471 = vand.u32 %v145, 4294901760
  %v1472 = vsub.f32 %v145, %v1471
  %1473 = vmatmul.mubr.f32.gmra.mrb[0].mxu0 %v1472
  %v1474 = vpop.f32.mrb[0].mxu0
  %v1475 = vadd.f32 %v1062, %v1474
  %v1476 = vpop.f32.mrb[0].mxu0
  %1477 = vmatprep.mubr.f32.mxu0 0.0
  %v1478 = vand.u32 %v148, 4294901760
  %v1479 = vsub.f32 %v148, %v1478
  %1480 = vmatmul.mubr.f32.gmra.mrb[0].mxu0 %v1479
  %v1481 = vpop.f32.mrb[0].mxu0
  %v1482 = vadd.f32 %v1068, %v1481
  %v1483 = vpop.f32.mrb[0].mxu0
  %1484 = vmatprep.mubr.f32.mxu0 0.0
  %v1485 = vand.u32 %v151, 4294901760
  %v1486 = vsub.f32 %v151, %v1485
  %1487 = vmatmul.mubr.f32.gmra.mrb[0].mxu0 %v1486
  %v1488 = vpop.f32.mrb[0].mxu0
  %v1489 = vadd.f32 %v1074, %v1488
  %v1490 = vpop.f32.mrb[0].mxu0
  %1491 = vmatprep.mubr.f32.mxu0 0.0
  %v1492 = vand.u32 %v154, 4294901760
  %v1493 = vsub.f32 %v154, %v1492
  %1494 = vmatmul.mubr.f32.gmra.mrb[0].mxu0 %v1493
  %v1495 = vpop.f32.mrb[0].mxu0
  %v1496 = vadd.f32 %v1080, %v1495
  %v1497 = vpop.f32.mrb[0].mxu0
  %1498 = vmatprep.mubr.f32.mxu0 0.0
  %v1499 = vand.u32 %v157, 4294901760
  %v1500 = vsub.f32 %v157, %v1499
  %1501 = vmatmul.mubr.f32.gmra.mrb[0].mxu0 %v1500
  %v1502 = vpop.f32.mrb[0].mxu0
  %v1503 = vadd.f32 %v1086, %v1502
  %v1504 = vpop.f32.mrb[0].mxu0
  %1505 = vmatprep.mubr.f32.mxu0 0.0
  %v1506 = vand.u32 %v160, 4294901760
  %v1507 = vsub.f32 %v160, %v1506
  %1508 = vmatmul.mubr.f32.gmra.mrb[0].mxu0 %v1507
  %v1509 = vpop.f32.mrb[0].mxu0
  %v1510 = vadd.f32 %v1092, %v1509
  %v1511 = vpop.f32.mrb[0].mxu0
  %1512 = vmatprep.mubr.f32.mxu0 0.0
  %v1513 = vand.u32 %v163, 4294901760
  %v1514 = vsub.f32 %v163, %v1513
  %1515 = vmatmul.mubr.f32.gmra.mrb[0].mxu0 %v1514
  %v1516 = vpop.f32.mrb[0].mxu0
  %v1517 = vadd.f32 %v1098, %v1516
  %v1518 = vpop.f32.mrb[0].mxu0
  %1519 = vmatprep.mubr.f32.mxu0 0.0
  %v1520 = vand.u32 %v166, 4294901760
  %v1521 = vsub.f32 %v166, %v1520
  %1522 = vmatmul.mubr.f32.gmra.mrb[0].mxu0 %v1521
  %v1523 = vpop.f32.mrb[0].mxu0
  %v1524 = vadd.f32 %v1104, %v1523
  %v1525 = vpop.f32.mrb[0].mxu0
  %1526 = vmatprep.mubr.f32.mxu0 0.0
  %v1527 = vand.u32 %v169, 4294901760
  %v1528 = vsub.f32 %v169, %v1527
  %1529 = vmatmul.mubr.f32.gmra.mrb[0].mxu0 %v1528
  %v1530 = vpop.f32.mrb[0].mxu0
  %v1531 = vadd.f32 %v1110, %v1530
  %v1532 = vpop.f32.mrb[0].mxu0
  %1533 = vmatprep.mubr.f32.mxu0 0.0
  %v1534 = vand.u32 %v172, 4294901760
  %v1535 = vsub.f32 %v172, %v1534
  %1536 = vmatmul.mubr.f32.gmra.mrb[0].mxu0 %v1535
  %v1537 = vpop.f32.mrb[0].mxu0
  %v1538 = vadd.f32 %v1116, %v1537
  %v1539 = vpop.f32.mrb[0].mxu0
  %1540 = vmatprep.mubr.f32.mxu0 0.0
  %v1541 = vand.u32 %v175, 4294901760
  %v1542 = vsub.f32 %v175, %v1541
  %1543 = vmatmul.mubr.f32.gmra.mrb[0].mxu0 %v1542
  %v1544 = vpop.f32.mrb[0].mxu0
  %v1545 = vadd.f32 %v1122, %v1544
  %v1546 = vpop.f32.mrb[0].mxu0
  %1547 = vmatprep.mubr.f32.mxu0 0.0
  %v1548 = vand.u32 %v178, 4294901760
  %v1549 = vsub.f32 %v178, %v1548
  %1550 = vmatmul.mubr.f32.gmra.mrb[0].mxu0 %v1549
  %v1551 = vpop.f32.mrb[0].mxu0
  %v1552 = vadd.f32 %v1128, %v1551
  %v1553 = vpop.f32.mrb[0].mxu0
  %1554 = vmatprep.mubr.f32.mxu0 0.0
  %v1555 = vand.u32 %v181, 4294901760
  %v1556 = vsub.f32 %v181, %v1555
  %1557 = vmatmul.mubr.f32.gmra.mrb[0].mxu0 %v1556
  %v1558 = vpop.f32.mrb[0].mxu0
  %v1559 = vadd.f32 %v1134, %v1558
  %v1560 = vpop.f32.mrb[0].mxu0
  %1561 = vmatprep.mubr.f32.mxu0 0.0
  %v1562 = vand.u32 %v184, 4294901760
  %v1563 = vsub.f32 %v184, %v1562
  %1564 = vmatmul.mubr.f32.gmra.mrb[0].mxu0 %v1563
  %v1565 = vpop.f32.mrb[0].mxu0
  %v1566 = vadd.f32 %v1140, %v1565
  %v1567 = vpop.f32.mrb[0].mxu0
  %1568 = vmatprep.mubr.f32.mxu0 0.0
  %v1569 = vand.u32 %v187, 4294901760
  %v1570 = vsub.f32 %v187, %v1569
  %1571 = vmatmul.mubr.f32.gmra.mrb[0].mxu0 %v1570
  %v1572 = vpop.f32.mrb[0].mxu0
  %v1573 = vadd.f32 %v1146, %v1572
  %v1574 = vpop.f32.mrb[0].mxu0
  %1575 = vmatprep.mubr.f32.mxu0 0.0
  %v1576 = vand.u32 %v190, 4294901760
  %v1577 = vsub.f32 %v190, %v1576
  %1578 = vmatmul.mubr.f32.gmra.mrb[0].mxu0 %v1577
  %v1579 = vpop.f32.mrb[0].mxu0
  %v1580 = vadd.f32 %v1152, %v1579
  %v1581 = vpop.f32.mrb[0].mxu0
  %1582 = vmatprep.mubr.f32.mxu0 0.0
  %v1583 = vand.u32 %v193, 4294901760
  %v1584 = vsub.f32 %v193, %v1583
  %1585 = vmatmul.mubr.f32.gmra.mrb[0].mxu0 %v1584
  %v1586 = vpop.f32.mrb[0].mxu0
  %v1587 = vadd.f32 %v1158, %v1586
  %v1588 = vpop.f32.mrb[0].mxu0
  %1589 = vmatprep.mubr.f32.mxu0 0.0
  %v1590 = vand.u32 %v196, 4294901760
  %v1591 = vsub.f32 %v196, %v1590
  %1592 = vmatmul.mubr.f32.gmra.mrb[0].mxu0 %v1591
  %v1593 = vpop.f32.mrb[0].mxu0
  %v1594 = vadd.f32 %v1164, %v1593
  %v1595 = vpop.f32.mrb[0].mxu0
  %1596 = vmatprep.mubr.f32.mxu0 0.0
  %v1597 = vand.u32 %v199, 4294901760
  %v1598 = vsub.f32 %v199, %v1597
  %1599 = vmatmul.mubr.f32.gmra.mrb[0].mxu0 %v1598
  %v1600 = vpop.f32.mrb[0].mxu0
  %v1601 = vadd.f32 %v1170, %v1600
  %v1602 = vpop.f32.mrb[0].mxu0
  %1603 = vmatprep.mubr.f32.mxu0 0.0
  %v1604 = vand.u32 %v202, 4294901760
  %v1605 = vsub.f32 %v202, %v1604
  %1606 = vmatmul.mubr.f32.gmra.mrb[0].mxu0 %v1605
  %v1607 = vpop.f32.mrb[0].mxu0
  %v1608 = vadd.f32 %v1176, %v1607
  %v1609 = vpop.f32.mrb[0].mxu0
  %1610 = vmatprep.mubr.f32.mxu0 0.0
  %v1611 = vand.u32 %v205, 4294901760
  %v1612 = vsub.f32 %v205, %v1611
  %1613 = vmatmul.mubr.f32.gmra.mrb[0].mxu0 %v1612
  %v1614 = vpop.f32.mrb[0].mxu0
  %v1615 = vadd.f32 %v1182, %v1614
  %v1616 = vpop.f32.mrb[0].mxu0
  %1617 = vmatprep.mubr.f32.mxu0 0.0
  %v1618 = vand.u32 %v208, 4294901760
  %v1619 = vsub.f32 %v208, %v1618
  %1620 = vmatmul.mubr.f32.gmra.mrb[0].mxu0 %v1619
  %v1621 = vpop.f32.mrb[0].mxu0
  %v1622 = vadd.f32 %v1188, %v1621
  %v1623 = vpop.f32.mrb[0].mxu0
  %1624 = vmatprep.mubr.f32.mxu0 0.0
  %v1625 = vand.u32 %v211, 4294901760
  %v1626 = vsub.f32 %v211, %v1625
  %1627 = vmatmul.mubr.f32.gmra.mrb[0].mxu0 %v1626
  %v1628 = vpop.f32.mrb[0].mxu0
  %v1629 = vadd.f32 %v1194, %v1628
  %v1630 = vpop.f32.mrb[0].mxu0
  %1631 = vmatprep.mubr.f32.mxu0 0.0
  %v1632 = vand.u32 %v214, 4294901760
  %v1633 = vsub.f32 %v214, %v1632
  %1634 = vmatmul.mubr.f32.gmra.mrb[0].mxu0 %v1633
  %v1635 = vpop.f32.mrb[0].mxu0
  %v1636 = vadd.f32 %v1200, %v1635
  %v1637 = vpop.f32.mrb[0].mxu0
  %1638 = vmatprep.mubr.f32.mxu0 0.0
  %v1639 = vand.u32 %v217, 4294901760
  %v1640 = vsub.f32 %v217, %v1639
  %1641 = vmatmul.mubr.f32.gmra.mrb[0].mxu0 %v1640
  %v1642 = vpop.f32.mrb[0].mxu0
  %v1643 = vadd.f32 %v1206, %v1642
  %v1644 = vpop.f32.mrb[0].mxu0
  %1645 = vmatprep.mubr.f32.mxu0 0.0
  %v1646 = vand.u32 %v220, 4294901760
  %v1647 = vsub.f32 %v220, %v1646
  %1648 = vmatmul.mubr.f32.gmra.mrb[0].mxu0 %v1647
  %v1649 = vpop.f32.mrb[0].mxu0
  %v1650 = vadd.f32 %v1212, %v1649
  %v1651 = vpop.f32.mrb[0].mxu0
  %1652 = vmatprep.mubr.f32.mxu0 0.0
  %v1653 = vand.u32 %v223, 4294901760
  %v1654 = vsub.f32 %v223, %v1653
  %1655 = vmatmul.mubr.f32.gmra.mrb[0].mxu0 %v1654
  %v1656 = vpop.f32.mrb[0].mxu0
  %v1657 = vadd.f32 %v1218, %v1656
  %v1658 = vpop.f32.mrb[0].mxu0
  %1659 = vdwg.mxu0
  %1660 = vmatprep.subr.mxu0 0.0
  %v1661 = vand.u32 %v63, 4294901760
  %1662 = vmatpush1.msra.mxu0 %v1661
  %1663 = vmatprep.subr.mxu0 0.0
  %v1664 = vand.u32 %v64, 4294901760
  %1665 = vmatpush1.msra.mxu0 %v1664
  %1666 = vmatprep.subr.mxu0 0.0
  %v1667 = vand.u32 %v65, 4294901760
  %1668 = vmatpush1.msra.mxu0 %v1667
  %1669 = vmatprep.subr.mxu0 0.0
  %v1670 = vand.u32 %v66, 4294901760
  %1671 = vmatpush1.msra.mxu0 %v1670
  %1672 = vmatprep.subr.mxu0 0.0
  %v1673 = vand.u32 %v227, 4294901760
  %1674 = vmatpush1.msra.mxu0 %v1673
  %1675 = vmatprep.subr.mxu0 0.0
  %1676 = vmatpush1.msra.mxu0 0.0
  %1677 = vmatprep.subr.mxu0 0.0
  %1678 = vmatpush1.msra.mxu0 0.0
  %1679 = vmatprep.subr.mxu0 0.0
  %1680 = vmatpush1.msra.mxu0 0.0
  %1681 = vmatprep.subr.mxu0 0.0
  %1682 = vmatpush1.msra.mxu0 0.0
  %1683 = vmatprep.subr.mxu0 0.0
  %1684 = vmatpush1.msra.mxu0 0.0
  %1685 = vmatprep.subr.mxu0 0.0
  %1686 = vmatpush1.msra.mxu0 0.0
  %1687 = vmatprep.subr.mxu0 0.0
  %1688 = vmatpush1.msra.mxu0 0.0
  %1689 = vmatprep.subr.mxu0 0.0
  %1690 = vmatpush1.msra.mxu0 0.0
  %1691 = vmatprep.subr.mxu0 0.0
  %1692 = vmatpush1.msra.mxu0 0.0
  %1693 = vmatprep.subr.mxu0 0.0
  %1694 = vmatpush1.msra.mxu0 0.0
  %1695 = vmatprep.subr.mxu0 0.0
  %1696 = vmatpush1.msra.mxu0 0.0
  %1697 = vmatprep.subr.mxu0 0.0
  %1698 = vmatpush1.msra.mxu0 0.0
  %1699 = vmatprep.subr.mxu0 0.0
  %1700 = vmatpush1.msra.mxu0 0.0
  %1701 = vmatprep.subr.mxu0 0.0
  %1702 = vmatpush1.msra.mxu0 0.0
  %1703 = vmatprep.subr.mxu0 0.0
  %1704 = vmatpush1.msra.mxu0 0.0
  %1705 = vmatprep.subr.mxu0 0.0
  %1706 = vmatpush1.msra.mxu0 0.0
  %1707 = vmatprep.subr.mxu0 0.0
  %1708 = vmatpush1.msra.mxu0 0.0
  %1709 = vmatprep.subr.mxu0 0.0
  %1710 = vmatpush1.msra.mxu0 0.0
  %1711 = vmatprep.subr.mxu0 0.0
  %1712 = vmatpush1.msra.mxu0 0.0
  %1713 = vmatprep.subr.mxu0 0.0
  %1714 = vmatpush1.msra.mxu0 0.0
  %1715 = vmatprep.subr.mxu0 0.0
  %1716 = vmatpush1.msra.mxu0 0.0
  %1717 = vmatprep.subr.mxu0 0.0
  %1718 = vmatpush1.msra.mxu0 0.0
  %1719 = vmatprep.subr.mxu0 0.0
  %1720 = vmatpush1.msra.mxu0 0.0
  %1721 = vmatprep.subr.mxu0 0.0
  %1722 = vmatpush1.msra.mxu0 0.0
  %1723 = vmatprep.subr.mxu0 0.0
  %1724 = vmatpush1.msra.mxu0 0.0
  %1725 = vmatprep.subr.mxu0 0.0
  %1726 = vmatpush1.msra.mxu0 0.0
  %1727 = vmatprep.subr.mxu0 0.0
  %1728 = vmatpush1.msra.mxu0 0.0
  %1729 = vmatprep.mubr.f32.mxu0 0.0
  %v1730 = vand.u32 %v70, 4294901760
  %v1731 = vsub.f32 %v70, %v1730
  %v1732 = vand.u32 %v1731, 4294901760
  %1733 = vmatmul.mubr.f32.gmra.mrb[0].mxu0 %v1732
  %v1734 = vpop.f32.mrb[0].mxu0
  %v1735 = vadd.f32 %v1300, %v1734
  %v1736 = vpop.f32.mrb[0].mxu0
  %1737 = vmatprep.mubr.f32.mxu0 0.0
  %v1738 = vand.u32 %v73, 4294901760
  %v1739 = vsub.f32 %v73, %v1738
  %v1740 = vand.u32 %v1739, 4294901760
  %1741 = vmatmul.mubr.f32.gmra.mrb[0].mxu0 %v1740
  %v1742 = vpop.f32.mrb[0].mxu0
  %v1743 = vadd.f32 %v1307, %v1742
  %v1744 = vpop.f32.mrb[0].mxu0
  %1745 = vmatprep.mubr.f32.mxu0 0.0
  %v1746 = vand.u32 %v76, 4294901760
  %v1747 = vsub.f32 %v76, %v1746
  %v1748 = vand.u32 %v1747, 4294901760
  %1749 = vmatmul.mubr.f32.gmra.mrb[0].mxu0 %v1748
  %v1750 = vpop.f32.mrb[0].mxu0
  %v1751 = vadd.f32 %v1314, %v1750
  %v1752 = vpop.f32.mrb[0].mxu0
  %1753 = vmatprep.mubr.f32.mxu0 0.0
  %v1754 = vand.u32 %v79, 4294901760
  %v1755 = vsub.f32 %v79, %v1754
  %v1756 = vand.u32 %v1755, 4294901760
  %1757 = vmatmul.mubr.f32.gmra.mrb[0].mxu0 %v1756
  %v1758 = vpop.f32.mrb[0].mxu0
  %v1759 = vadd.f32 %v1321, %v1758
  %v1760 = vpop.f32.mrb[0].mxu0
  %1761 = vmatprep.mubr.f32.mxu0 0.0
  %v1762 = vand.u32 %v82, 4294901760
  %v1763 = vsub.f32 %v82, %v1762
  %v1764 = vand.u32 %v1763, 4294901760
  %1765 = vmatmul.mubr.f32.gmra.mrb[0].mxu0 %v1764
  %v1766 = vpop.f32.mrb[0].mxu0
  %v1767 = vadd.f32 %v1328, %v1766
  %v1768 = vpop.f32.mrb[0].mxu0
  %1769 = vmatprep.mubr.f32.mxu0 0.0
  %v1770 = vand.u32 %v85, 4294901760
  %v1771 = vsub.f32 %v85, %v1770
  %v1772 = vand.u32 %v1771, 4294901760
  %1773 = vmatmul.mubr.f32.gmra.mrb[0].mxu0 %v1772
  %v1774 = vpop.f32.mrb[0].mxu0
  %v1775 = vadd.f32 %v1335, %v1774
  %v1776 = vpop.f32.mrb[0].mxu0
  %1777 = vmatprep.mubr.f32.mxu0 0.0
  %v1778 = vand.u32 %v88, 4294901760
  %v1779 = vsub.f32 %v88, %v1778
  %v1780 = vand.u32 %v1779, 4294901760
  %1781 = vmatmul.mubr.f32.gmra.mrb[0].mxu0 %v1780
  %v1782 = vpop.f32.mrb[0].mxu0
  %v1783 = vadd.f32 %v1342, %v1782
  %v1784 = vpop.f32.mrb[0].mxu0
  %1785 = vmatprep.mubr.f32.mxu0 0.0
  %v1786 = vand.u32 %v91, 4294901760
  %v1787 = vsub.f32 %v91, %v1786
  %v1788 = vand.u32 %v1787, 4294901760
  %1789 = vmatmul.mubr.f32.gmra.mrb[0].mxu0 %v1788
  %v1790 = vpop.f32.mrb[0].mxu0
  %v1791 = vadd.f32 %v1349, %v1790
  %v1792 = vpop.f32.mrb[0].mxu0
  %1793 = vmatprep.mubr.f32.mxu0 0.0
  %v1794 = vand.u32 %v94, 4294901760
  %v1795 = vsub.f32 %v94, %v1794
  %v1796 = vand.u32 %v1795, 4294901760
  %1797 = vmatmul.mubr.f32.gmra.mrb[0].mxu0 %v1796
  %v1798 = vpop.f32.mrb[0].mxu0
  %v1799 = vadd.f32 %v1356, %v1798
  %v1800 = vpop.f32.mrb[0].mxu0
  %1801 = vmatprep.mubr.f32.mxu0 0.0
  %v1802 = vand.u32 %v97, 4294901760
  %v1803 = vsub.f32 %v97, %v1802
  %v1804 = vand.u32 %v1803, 4294901760
  %1805 = vmatmul.mubr.f32.gmra.mrb[0].mxu0 %v1804
  %v1806 = vpop.f32.mrb[0].mxu0
  %v1807 = vadd.f32 %v1363, %v1806
  %v1808 = vpop.f32.mrb[0].mxu0
  %1809 = vmatprep.mubr.f32.mxu0 0.0
  %v1810 = vand.u32 %v100, 4294901760
  %v1811 = vsub.f32 %v100, %v1810
  %v1812 = vand.u32 %v1811, 4294901760
  %1813 = vmatmul.mubr.f32.gmra.mrb[0].mxu0 %v1812
  %v1814 = vpop.f32.mrb[0].mxu0
  %v1815 = vadd.f32 %v1370, %v1814
  %v1816 = vpop.f32.mrb[0].mxu0
  %1817 = vmatprep.mubr.f32.mxu0 0.0
  %v1818 = vand.u32 %v103, 4294901760
  %v1819 = vsub.f32 %v103, %v1818
  %v1820 = vand.u32 %v1819, 4294901760
  %1821 = vmatmul.mubr.f32.gmra.mrb[0].mxu0 %v1820
  %v1822 = vpop.f32.mrb[0].mxu0
  %v1823 = vadd.f32 %v1377, %v1822
  %v1824 = vpop.f32.mrb[0].mxu0
  %1825 = vmatprep.mubr.f32.mxu0 0.0
  %v1826 = vand.u32 %v106, 4294901760
  %v1827 = vsub.f32 %v106, %v1826
  %v1828 = vand.u32 %v1827, 4294901760
  %1829 = vmatmul.mubr.f32.gmra.mrb[0].mxu0 %v1828
  %v1830 = vpop.f32.mrb[0].mxu0
  %v1831 = vadd.f32 %v1384, %v1830
  %v1832 = vpop.f32.mrb[0].mxu0
  %1833 = vmatprep.mubr.f32.mxu0 0.0
  %v1834 = vand.u32 %v109, 4294901760
  %v1835 = vsub.f32 %v109, %v1834
  %v1836 = vand.u32 %v1835, 4294901760
  %1837 = vmatmul.mubr.f32.gmra.mrb[0].mxu0 %v1836
  %v1838 = vpop.f32.mrb[0].mxu0
  %v1839 = vadd.f32 %v1391, %v1838
  %v1840 = vpop.f32.mrb[0].mxu0
  %1841 = vmatprep.mubr.f32.mxu0 0.0
  %v1842 = vand.u32 %v112, 4294901760
  %v1843 = vsub.f32 %v112, %v1842
  %v1844 = vand.u32 %v1843, 4294901760
  %1845 = vmatmul.mubr.f32.gmra.mrb[0].mxu0 %v1844
  %v1846 = vpop.f32.mrb[0].mxu0
  %v1847 = vadd.f32 %v1398, %v1846
  %v1848 = vpop.f32.mrb[0].mxu0
  %1849 = vmatprep.mubr.f32.mxu0 0.0
  %v1850 = vand.u32 %v115, 4294901760
  %v1851 = vsub.f32 %v115, %v1850
  %v1852 = vand.u32 %v1851, 4294901760
  %1853 = vmatmul.mubr.f32.gmra.mrb[0].mxu0 %v1852
  %v1854 = vpop.f32.mrb[0].mxu0
  %v1855 = vadd.f32 %v1405, %v1854
  %v1856 = vpop.f32.mrb[0].mxu0
  %1857 = vmatprep.mubr.f32.mxu0 0.0
  %v1858 = vand.u32 %v118, 4294901760
  %v1859 = vsub.f32 %v118, %v1858
  %v1860 = vand.u32 %v1859, 4294901760
  %1861 = vmatmul.mubr.f32.gmra.mrb[0].mxu0 %v1860
  %v1862 = vpop.f32.mrb[0].mxu0
  %v1863 = vadd.f32 %v1412, %v1862
  %v1864 = vpop.f32.mrb[0].mxu0
  %1865 = vmatprep.mubr.f32.mxu0 0.0
  %v1866 = vand.u32 %v121, 4294901760
  %v1867 = vsub.f32 %v121, %v1866
  %v1868 = vand.u32 %v1867, 4294901760
  %1869 = vmatmul.mubr.f32.gmra.mrb[0].mxu0 %v1868
  %v1870 = vpop.f32.mrb[0].mxu0
  %v1871 = vadd.f32 %v1419, %v1870
  %v1872 = vpop.f32.mrb[0].mxu0
  %1873 = vmatprep.mubr.f32.mxu0 0.0
  %v1874 = vand.u32 %v124, 4294901760
  %v1875 = vsub.f32 %v124, %v1874
  %v1876 = vand.u32 %v1875, 4294901760
  %1877 = vmatmul.mubr.f32.gmra.mrb[0].mxu0 %v1876
  %v1878 = vpop.f32.mrb[0].mxu0
  %v1879 = vadd.f32 %v1426, %v1878
  %v1880 = vpop.f32.mrb[0].mxu0
  %1881 = vmatprep.mubr.f32.mxu0 0.0
  %v1882 = vand.u32 %v127, 4294901760
  %v1883 = vsub.f32 %v127, %v1882
  %v1884 = vand.u32 %v1883, 4294901760
  %1885 = vmatmul.mubr.f32.gmra.mrb[0].mxu0 %v1884
  %v1886 = vpop.f32.mrb[0].mxu0
  %v1887 = vadd.f32 %v1433, %v1886
  %v1888 = vpop.f32.mrb[0].mxu0
  %1889 = vmatprep.mubr.f32.mxu0 0.0
  %v1890 = vand.u32 %v130, 4294901760
  %v1891 = vsub.f32 %v130, %v1890
  %v1892 = vand.u32 %v1891, 4294901760
  %1893 = vmatmul.mubr.f32.gmra.mrb[0].mxu0 %v1892
  %v1894 = vpop.f32.mrb[0].mxu0
  %v1895 = vadd.f32 %v1440, %v1894
  %v1896 = vpop.f32.mrb[0].mxu0
  %1897 = vmatprep.mubr.f32.mxu0 0.0
  %v1898 = vand.u32 %v133, 4294901760
  %v1899 = vsub.f32 %v133, %v1898
  %v1900 = vand.u32 %v1899, 4294901760
  %1901 = vmatmul.mubr.f32.gmra.mrb[0].mxu0 %v1900
  %v1902 = vpop.f32.mrb[0].mxu0
  %v1903 = vadd.f32 %v1447, %v1902
  %v1904 = vpop.f32.mrb[0].mxu0
  %1905 = vmatprep.mubr.f32.mxu0 0.0
  %v1906 = vand.u32 %v136, 4294901760
  %v1907 = vsub.f32 %v136, %v1906
  %v1908 = vand.u32 %v1907, 4294901760
  %1909 = vmatmul.mubr.f32.gmra.mrb[0].mxu0 %v1908
  %v1910 = vpop.f32.mrb[0].mxu0
  %v1911 = vadd.f32 %v1454, %v1910
  %v1912 = vpop.f32.mrb[0].mxu0
  %1913 = vmatprep.mubr.f32.mxu0 0.0
  %v1914 = vand.u32 %v139, 4294901760
  %v1915 = vsub.f32 %v139, %v1914
  %v1916 = vand.u32 %v1915, 4294901760
  %1917 = vmatmul.mubr.f32.gmra.mrb[0].mxu0 %v1916
  %v1918 = vpop.f32.mrb[0].mxu0
  %v1919 = vadd.f32 %v1461, %v1918
  %v1920 = vpop.f32.mrb[0].mxu0
  %1921 = vmatprep.mubr.f32.mxu0 0.0
  %v1922 = vand.u32 %v142, 4294901760
  %v1923 = vsub.f32 %v142, %v1922
  %v1924 = vand.u32 %v1923, 4294901760
  %1925 = vmatmul.mubr.f32.gmra.mrb[0].mxu0 %v1924
  %v1926 = vpop.f32.mrb[0].mxu0
  %v1927 = vadd.f32 %v1468, %v1926
  %v1928 = vpop.f32.mrb[0].mxu0
  %1929 = vmatprep.mubr.f32.mxu0 0.0
  %v1930 = vand.u32 %v145, 4294901760
  %v1931 = vsub.f32 %v145, %v1930
  %v1932 = vand.u32 %v1931, 4294901760
  %1933 = vmatmul.mubr.f32.gmra.mrb[0].mxu0 %v1932
  %v1934 = vpop.f32.mrb[0].mxu0
  %v1935 = vadd.f32 %v1475, %v1934
  %v1936 = vpop.f32.mrb[0].mxu0
  %1937 = vmatprep.mubr.f32.mxu0 0.0
  %v1938 = vand.u32 %v148, 4294901760
  %v1939 = vsub.f32 %v148, %v1938
  %v1940 = vand.u32 %v1939, 4294901760
  %1941 = vmatmul.mubr.f32.gmra.mrb[0].mxu0 %v1940
  %v1942 = vpop.f32.mrb[0].mxu0
  %v1943 = vadd.f32 %v1482, %v1942
  %v1944 = vpop.f32.mrb[0].mxu0
  %1945 = vmatprep.mubr.f32.mxu0 0.0
  %v1946 = vand.u32 %v151, 4294901760
  %v1947 = vsub.f32 %v151, %v1946
  %v1948 = vand.u32 %v1947, 4294901760
  %1949 = vmatmul.mubr.f32.gmra.mrb[0].mxu0 %v1948
  %v1950 = vpop.f32.mrb[0].mxu0
  %v1951 = vadd.f32 %v1489, %v1950
  %v1952 = vpop.f32.mrb[0].mxu0
  %1953 = vmatprep.mubr.f32.mxu0 0.0
  %v1954 = vand.u32 %v154, 4294901760
  %v1955 = vsub.f32 %v154, %v1954
  %v1956 = vand.u32 %v1955, 4294901760
  %1957 = vmatmul.mubr.f32.gmra.mrb[0].mxu0 %v1956
  %v1958 = vpop.f32.mrb[0].mxu0
  %v1959 = vadd.f32 %v1496, %v1958
  %v1960 = vpop.f32.mrb[0].mxu0
  %1961 = vmatprep.mubr.f32.mxu0 0.0
  %v1962 = vand.u32 %v157, 4294901760
  %v1963 = vsub.f32 %v157, %v1962
  %v1964 = vand.u32 %v1963, 4294901760
  %1965 = vmatmul.mubr.f32.gmra.mrb[0].mxu0 %v1964
  %v1966 = vpop.f32.mrb[0].mxu0
  %v1967 = vadd.f32 %v1503, %v1966
  %v1968 = vpop.f32.mrb[0].mxu0
  %1969 = vmatprep.mubr.f32.mxu0 0.0
  %v1970 = vand.u32 %v160, 4294901760
  %v1971 = vsub.f32 %v160, %v1970
  %v1972 = vand.u32 %v1971, 4294901760
  %1973 = vmatmul.mubr.f32.gmra.mrb[0].mxu0 %v1972
  %v1974 = vpop.f32.mrb[0].mxu0
  %v1975 = vadd.f32 %v1510, %v1974
  %v1976 = vpop.f32.mrb[0].mxu0
  %1977 = vmatprep.mubr.f32.mxu0 0.0
  %v1978 = vand.u32 %v163, 4294901760
  %v1979 = vsub.f32 %v163, %v1978
  %v1980 = vand.u32 %v1979, 4294901760
  %1981 = vmatmul.mubr.f32.gmra.mrb[0].mxu0 %v1980
  %v1982 = vpop.f32.mrb[0].mxu0
  %v1983 = vadd.f32 %v1517, %v1982
  %v1984 = vpop.f32.mrb[0].mxu0
  %1985 = vmatprep.mubr.f32.mxu0 0.0
  %v1986 = vand.u32 %v166, 4294901760
  %v1987 = vsub.f32 %v166, %v1986
  %v1988 = vand.u32 %v1987, 4294901760
  %1989 = vmatmul.mubr.f32.gmra.mrb[0].mxu0 %v1988
  %v1990 = vpop.f32.mrb[0].mxu0
  %v1991 = vadd.f32 %v1524, %v1990
  %v1992 = vpop.f32.mrb[0].mxu0
  %1993 = vmatprep.mubr.f32.mxu0 0.0
  %v1994 = vand.u32 %v169, 4294901760
  %v1995 = vsub.f32 %v169, %v1994
  %v1996 = vand.u32 %v1995, 4294901760
  %1997 = vmatmul.mubr.f32.gmra.mrb[0].mxu0 %v1996
  %v1998 = vpop.f32.mrb[0].mxu0
  %v1999 = vadd.f32 %v1531, %v1998
  %v2000 = vpop.f32.mrb[0].mxu0
  %2001 = vmatprep.mubr.f32.mxu0 0.0
  %v2002 = vand.u32 %v172, 4294901760
  %v2003 = vsub.f32 %v172, %v2002
  %v2004 = vand.u32 %v2003, 4294901760
  %2005 = vmatmul.mubr.f32.gmra.mrb[0].mxu0 %v2004
  %v2006 = vpop.f32.mrb[0].mxu0
  %v2007 = vadd.f32 %v1538, %v2006
  %v2008 = vpop.f32.mrb[0].mxu0
  %2009 = vmatprep.mubr.f32.mxu0 0.0
  %v2010 = vand.u32 %v175, 4294901760
  %v2011 = vsub.f32 %v175, %v2010
  %v2012 = vand.u32 %v2011, 4294901760
  %2013 = vmatmul.mubr.f32.gmra.mrb[0].mxu0 %v2012
  %v2014 = vpop.f32.mrb[0].mxu0
  %v2015 = vadd.f32 %v1545, %v2014
  %v2016 = vpop.f32.mrb[0].mxu0
  %2017 = vmatprep.mubr.f32.mxu0 0.0
  %v2018 = vand.u32 %v178, 4294901760
  %v2019 = vsub.f32 %v178, %v2018
  %v2020 = vand.u32 %v2019, 4294901760
  %2021 = vmatmul.mubr.f32.gmra.mrb[0].mxu0 %v2020
  %v2022 = vpop.f32.mrb[0].mxu0
  %v2023 = vadd.f32 %v1552, %v2022
  %v2024 = vpop.f32.mrb[0].mxu0
  %2025 = vmatprep.mubr.f32.mxu0 0.0
  %v2026 = vand.u32 %v181, 4294901760
  %v2027 = vsub.f32 %v181, %v2026
  %v2028 = vand.u32 %v2027, 4294901760
  %2029 = vmatmul.mubr.f32.gmra.mrb[0].mxu0 %v2028
  %v2030 = vpop.f32.mrb[0].mxu0
  %v2031 = vadd.f32 %v1559, %v2030
  %v2032 = vpop.f32.mrb[0].mxu0
  %2033 = vmatprep.mubr.f32.mxu0 0.0
  %v2034 = vand.u32 %v184, 4294901760
  %v2035 = vsub.f32 %v184, %v2034
  %v2036 = vand.u32 %v2035, 4294901760
  %2037 = vmatmul.mubr.f32.gmra.mrb[0].mxu0 %v2036
  %v2038 = vpop.f32.mrb[0].mxu0
  %v2039 = vadd.f32 %v1566, %v2038
  %v2040 = vpop.f32.mrb[0].mxu0
  %2041 = vmatprep.mubr.f32.mxu0 0.0
  %v2042 = vand.u32 %v187, 4294901760
  %v2043 = vsub.f32 %v187, %v2042
  %v2044 = vand.u32 %v2043, 4294901760
  %2045 = vmatmul.mubr.f32.gmra.mrb[0].mxu0 %v2044
  %v2046 = vpop.f32.mrb[0].mxu0
  %v2047 = vadd.f32 %v1573, %v2046
  %v2048 = vpop.f32.mrb[0].mxu0
  %2049 = vmatprep.mubr.f32.mxu0 0.0
  %v2050 = vand.u32 %v190, 4294901760
  %v2051 = vsub.f32 %v190, %v2050
  %v2052 = vand.u32 %v2051, 4294901760
  %2053 = vmatmul.mubr.f32.gmra.mrb[0].mxu0 %v2052
  %v2054 = vpop.f32.mrb[0].mxu0
  %v2055 = vadd.f32 %v1580, %v2054
  %v2056 = vpop.f32.mrb[0].mxu0
  %2057 = vmatprep.mubr.f32.mxu0 0.0
  %v2058 = vand.u32 %v193, 4294901760
  %v2059 = vsub.f32 %v193, %v2058
  %v2060 = vand.u32 %v2059, 4294901760
  %2061 = vmatmul.mubr.f32.gmra.mrb[0].mxu0 %v2060
  %v2062 = vpop.f32.mrb[0].mxu0
  %v2063 = vadd.f32 %v1587, %v2062
  %v2064 = vpop.f32.mrb[0].mxu0
  %2065 = vmatprep.mubr.f32.mxu0 0.0
  %v2066 = vand.u32 %v196, 4294901760
  %v2067 = vsub.f32 %v196, %v2066
  %v2068 = vand.u32 %v2067, 4294901760
  %2069 = vmatmul.mubr.f32.gmra.mrb[0].mxu0 %v2068
  %v2070 = vpop.f32.mrb[0].mxu0
  %v2071 = vadd.f32 %v1594, %v2070
  %v2072 = vpop.f32.mrb[0].mxu0
  %2073 = vmatprep.mubr.f32.mxu0 0.0
  %v2074 = vand.u32 %v199, 4294901760
  %v2075 = vsub.f32 %v199, %v2074
  %v2076 = vand.u32 %v2075, 4294901760
  %2077 = vmatmul.mubr.f32.gmra.mrb[0].mxu0 %v2076
  %v2078 = vpop.f32.mrb[0].mxu0
  %v2079 = vadd.f32 %v1601, %v2078
  %v2080 = vpop.f32.mrb[0].mxu0
  %2081 = vmatprep.mubr.f32.mxu0 0.0
  %v2082 = vand.u32 %v202, 4294901760
  %v2083 = vsub.f32 %v202, %v2082
  %v2084 = vand.u32 %v2083, 4294901760
  %2085 = vmatmul.mubr.f32.gmra.mrb[0].mxu0 %v2084
  %v2086 = vpop.f32.mrb[0].mxu0
  %v2087 = vadd.f32 %v1608, %v2086
  %v2088 = vpop.f32.mrb[0].mxu0
  %2089 = vmatprep.mubr.f32.mxu0 0.0
  %v2090 = vand.u32 %v205, 4294901760
  %v2091 = vsub.f32 %v205, %v2090
  %v2092 = vand.u32 %v2091, 4294901760
  %2093 = vmatmul.mubr.f32.gmra.mrb[0].mxu0 %v2092
  %v2094 = vpop.f32.mrb[0].mxu0
  %v2095 = vadd.f32 %v1615, %v2094
  %v2096 = vpop.f32.mrb[0].mxu0
  %2097 = vmatprep.mubr.f32.mxu0 0.0
  %v2098 = vand.u32 %v208, 4294901760
  %v2099 = vsub.f32 %v208, %v2098
  %v2100 = vand.u32 %v2099, 4294901760
  %2101 = vmatmul.mubr.f32.gmra.mrb[0].mxu0 %v2100
  %v2102 = vpop.f32.mrb[0].mxu0
  %v2103 = vadd.f32 %v1622, %v2102
  %v2104 = vpop.f32.mrb[0].mxu0
  %2105 = vmatprep.mubr.f32.mxu0 0.0
  %v2106 = vand.u32 %v211, 4294901760
  %v2107 = vsub.f32 %v211, %v2106
  %v2108 = vand.u32 %v2107, 4294901760
  %2109 = vmatmul.mubr.f32.gmra.mrb[0].mxu0 %v2108
  %v2110 = vpop.f32.mrb[0].mxu0
  %v2111 = vadd.f32 %v1629, %v2110
  %v2112 = vpop.f32.mrb[0].mxu0
  %2113 = vmatprep.mubr.f32.mxu0 0.0
  %v2114 = vand.u32 %v214, 4294901760
  %v2115 = vsub.f32 %v214, %v2114
  %v2116 = vand.u32 %v2115, 4294901760
  %2117 = vmatmul.mubr.f32.gmra.mrb[0].mxu0 %v2116
  %v2118 = vpop.f32.mrb[0].mxu0
  %v2119 = vadd.f32 %v1636, %v2118
  %v2120 = vpop.f32.mrb[0].mxu0
  %2121 = vmatprep.mubr.f32.mxu0 0.0
  %v2122 = vand.u32 %v217, 4294901760
  %v2123 = vsub.f32 %v217, %v2122
  %v2124 = vand.u32 %v2123, 4294901760
  %2125 = vmatmul.mubr.f32.gmra.mrb[0].mxu0 %v2124
  %v2126 = vpop.f32.mrb[0].mxu0
  %v2127 = vadd.f32 %v1643, %v2126
  %v2128 = vpop.f32.mrb[0].mxu0
  %2129 = vmatprep.mubr.f32.mxu0 0.0
  %v2130 = vand.u32 %v220, 4294901760
  %v2131 = vsub.f32 %v220, %v2130
  %v2132 = vand.u32 %v2131, 4294901760
  %2133 = vmatmul.mubr.f32.gmra.mrb[0].mxu0 %v2132
  %v2134 = vpop.f32.mrb[0].mxu0
  %v2135 = vadd.f32 %v1650, %v2134
  %v2136 = vpop.f32.mrb[0].mxu0
  %2137 = vmatprep.mubr.f32.mxu0 0.0
  %v2138 = vand.u32 %v223, 4294901760
  %v2139 = vsub.f32 %v223, %v2138
  %v2140 = vand.u32 %v2139, 4294901760
  %2141 = vmatmul.mubr.f32.gmra.mrb[0].mxu0 %v2140
  %v2142 = vpop.f32.mrb[0].mxu0
  %v2143 = vadd.f32 %v1657, %v2142
  %v2144 = vpop.f32.mrb[0].mxu0
  %2145 = vdwg.mxu0
  %2146 = vmatprep.subr.mxu0 0.0
  %v2147 = vand.u32 %v63, 4294901760
  %v2148 = vsub.f32 %v63, %v2147
  %v2149 = vand.u32 %v2148, 4294901760
  %2150 = vmatpush1.msra.mxu0 %v2149
  %2151 = vmatprep.subr.mxu0 0.0
  %v2152 = vand.u32 %v64, 4294901760
  %v2153 = vsub.f32 %v64, %v2152
  %v2154 = vand.u32 %v2153, 4294901760
  %2155 = vmatpush1.msra.mxu0 %v2154
  %2156 = vmatprep.subr.mxu0 0.0
  %v2157 = vand.u32 %v65, 4294901760
  %v2158 = vsub.f32 %v65, %v2157
  %v2159 = vand.u32 %v2158, 4294901760
  %2160 = vmatpush1.msra.mxu0 %v2159
  %2161 = vmatprep.subr.mxu0 0.0
  %v2162 = vand.u32 %v66, 4294901760
  %v2163 = vsub.f32 %v66, %v2162
  %v2164 = vand.u32 %v2163, 4294901760
  %2165 = vmatpush1.msra.mxu0 %v2164
  %2166 = vmatprep.subr.mxu0 0.0
  %v2167 = vand.u32 %v227, 4294901760
  %v2168 = vsub.f32 %v227, %v2167
  %v2169 = vand.u32 %v2168, 4294901760
  %2170 = vmatpush1.msra.mxu0 %v2169
  %2171 = vmatprep.subr.mxu0 0.0
  %2172 = vmatpush1.msra.mxu0 0.0
  %2173 = vmatprep.subr.mxu0 0.0
  %2174 = vmatpush1.msra.mxu0 0.0
  %2175 = vmatprep.subr.mxu0 0.0
  %2176 = vmatpush1.msra.mxu0 0.0
  %2177 = vmatprep.subr.mxu0 0.0
  %2178 = vmatpush1.msra.mxu0 0.0
  %2179 = vmatprep.subr.mxu0 0.0
  %2180 = vmatpush1.msra.mxu0 0.0
  %2181 = vmatprep.subr.mxu0 0.0
  %2182 = vmatpush1.msra.mxu0 0.0
  %2183 = vmatprep.subr.mxu0 0.0
  %2184 = vmatpush1.msra.mxu0 0.0
  %2185 = vmatprep.subr.mxu0 0.0
  %2186 = vmatpush1.msra.mxu0 0.0
  %2187 = vmatprep.subr.mxu0 0.0
  %2188 = vmatpush1.msra.mxu0 0.0
  %2189 = vmatprep.subr.mxu0 0.0
  %2190 = vmatpush1.msra.mxu0 0.0
  %2191 = vmatprep.subr.mxu0 0.0
  %2192 = vmatpush1.msra.mxu0 0.0
  %2193 = vmatprep.subr.mxu0 0.0
  %2194 = vmatpush1.msra.mxu0 0.0
  %2195 = vmatprep.subr.mxu0 0.0
  %2196 = vmatpush1.msra.mxu0 0.0
  %2197 = vmatprep.subr.mxu0 0.0
  %2198 = vmatpush1.msra.mxu0 0.0
  %2199 = vmatprep.subr.mxu0 0.0
  %2200 = vmatpush1.msra.mxu0 0.0
  %2201 = vmatprep.subr.mxu0 0.0
  %2202 = vmatpush1.msra.mxu0 0.0
  %2203 = vmatprep.subr.mxu0 0.0
  %2204 = vmatpush1.msra.mxu0 0.0
  %2205 = vmatprep.subr.mxu0 0.0
  %2206 = vmatpush1.msra.mxu0 0.0
  %2207 = vmatprep.subr.mxu0 0.0
  %2208 = vmatpush1.msra.mxu0 0.0
  %2209 = vmatprep.subr.mxu0 0.0
  %2210 = vmatpush1.msra.mxu0 0.0
  %2211 = vmatprep.subr.mxu0 0.0
  %2212 = vmatpush1.msra.mxu0 0.0
  %2213 = vmatprep.subr.mxu0 0.0
  %2214 = vmatpush1.msra.mxu0 0.0
  %2215 = vmatprep.subr.mxu0 0.0
  %2216 = vmatpush1.msra.mxu0 0.0
  %2217 = vmatprep.subr.mxu0 0.0
  %2218 = vmatpush1.msra.mxu0 0.0
  %2219 = vmatprep.subr.mxu0 0.0
  %2220 = vmatpush1.msra.mxu0 0.0
  %2221 = vmatprep.subr.mxu0 0.0
  %2222 = vmatpush1.msra.mxu0 0.0
  %2223 = vmatprep.subr.mxu0 0.0
  %2224 = vmatpush1.msra.mxu0 0.0
  %2225 = vmatprep.mubr.f32.mxu0 0.0
  %v2226 = vand.u32 %v70, 4294901760
  %2227 = vmatmul.mubr.f32.gmra.mrb[0].mxu0 %v2226
  %v2228 = vpop.f32.mrb[0].mxu0
  %v2229 = vadd.f32 %v1735, %v2228
  %v2230 = vpop.f32.mrb[0].mxu0
  %2231 = vmatprep.mubr.f32.mxu0 0.0
  %v2232 = vand.u32 %v73, 4294901760
  %2233 = vmatmul.mubr.f32.gmra.mrb[0].mxu0 %v2232
  %v2234 = vpop.f32.mrb[0].mxu0
  %v2235 = vadd.f32 %v1743, %v2234
  %v2236 = vpop.f32.mrb[0].mxu0
  %2237 = vmatprep.mubr.f32.mxu0 0.0
  %v2238 = vand.u32 %v76, 4294901760
  %2239 = vmatmul.mubr.f32.gmra.mrb[0].mxu0 %v2238
  %v2240 = vpop.f32.mrb[0].mxu0
  %v2241 = vadd.f32 %v1751, %v2240
  %v2242 = vpop.f32.mrb[0].mxu0
  %2243 = vmatprep.mubr.f32.mxu0 0.0
  %v2244 = vand.u32 %v79, 4294901760
  %2245 = vmatmul.mubr.f32.gmra.mrb[0].mxu0 %v2244
  %v2246 = vpop.f32.mrb[0].mxu0
  %v2247 = vadd.f32 %v1759, %v2246
  %v2248 = vpop.f32.mrb[0].mxu0
  %2249 = vmatprep.mubr.f32.mxu0 0.0
  %v2250 = vand.u32 %v82, 4294901760
  %2251 = vmatmul.mubr.f32.gmra.mrb[0].mxu0 %v2250
  %v2252 = vpop.f32.mrb[0].mxu0
  %v2253 = vadd.f32 %v1767, %v2252
  %v2254 = vpop.f32.mrb[0].mxu0
  %2255 = vmatprep.mubr.f32.mxu0 0.0
  %v2256 = vand.u32 %v85, 4294901760
  %2257 = vmatmul.mubr.f32.gmra.mrb[0].mxu0 %v2256
  %v2258 = vpop.f32.mrb[0].mxu0
  %v2259 = vadd.f32 %v1775, %v2258
  %v2260 = vpop.f32.mrb[0].mxu0
  %2261 = vmatprep.mubr.f32.mxu0 0.0
  %v2262 = vand.u32 %v88, 4294901760
  %2263 = vmatmul.mubr.f32.gmra.mrb[0].mxu0 %v2262
  %v2264 = vpop.f32.mrb[0].mxu0
  %v2265 = vadd.f32 %v1783, %v2264
  %v2266 = vpop.f32.mrb[0].mxu0
  %2267 = vmatprep.mubr.f32.mxu0 0.0
  %v2268 = vand.u32 %v91, 4294901760
  %2269 = vmatmul.mubr.f32.gmra.mrb[0].mxu0 %v2268
  %v2270 = vpop.f32.mrb[0].mxu0
  %v2271 = vadd.f32 %v1791, %v2270
  %v2272 = vpop.f32.mrb[0].mxu0
  %2273 = vmatprep.mubr.f32.mxu0 0.0
  %v2274 = vand.u32 %v94, 4294901760
  %2275 = vmatmul.mubr.f32.gmra.mrb[0].mxu0 %v2274
  %v2276 = vpop.f32.mrb[0].mxu0
  %v2277 = vadd.f32 %v1799, %v2276
  %v2278 = vpop.f32.mrb[0].mxu0
  %2279 = vmatprep.mubr.f32.mxu0 0.0
  %v2280 = vand.u32 %v97, 4294901760
  %2281 = vmatmul.mubr.f32.gmra.mrb[0].mxu0 %v2280
  %v2282 = vpop.f32.mrb[0].mxu0
  %v2283 = vadd.f32 %v1807, %v2282
  %v2284 = vpop.f32.mrb[0].mxu0
  %2285 = vmatprep.mubr.f32.mxu0 0.0
  %v2286 = vand.u32 %v100, 4294901760
  %2287 = vmatmul.mubr.f32.gmra.mrb[0].mxu0 %v2286
  %v2288 = vpop.f32.mrb[0].mxu0
  %v2289 = vadd.f32 %v1815, %v2288
  %v2290 = vpop.f32.mrb[0].mxu0
  %2291 = vmatprep.mubr.f32.mxu0 0.0
  %v2292 = vand.u32 %v103, 4294901760
  %2293 = vmatmul.mubr.f32.gmra.mrb[0].mxu0 %v2292
  %v2294 = vpop.f32.mrb[0].mxu0
  %v2295 = vadd.f32 %v1823, %v2294
  %v2296 = vpop.f32.mrb[0].mxu0
  %2297 = vmatprep.mubr.f32.mxu0 0.0
  %v2298 = vand.u32 %v106, 4294901760
  %2299 = vmatmul.mubr.f32.gmra.mrb[0].mxu0 %v2298
  %v2300 = vpop.f32.mrb[0].mxu0
  %v2301 = vadd.f32 %v1831, %v2300
  %v2302 = vpop.f32.mrb[0].mxu0
  %2303 = vmatprep.mubr.f32.mxu0 0.0
  %v2304 = vand.u32 %v109, 4294901760
  %2305 = vmatmul.mubr.f32.gmra.mrb[0].mxu0 %v2304
  %v2306 = vpop.f32.mrb[0].mxu0
  %v2307 = vadd.f32 %v1839, %v2306
  %v2308 = vpop.f32.mrb[0].mxu0
  %2309 = vmatprep.mubr.f32.mxu0 0.0
  %v2310 = vand.u32 %v112, 4294901760
  %2311 = vmatmul.mubr.f32.gmra.mrb[0].mxu0 %v2310
  %v2312 = vpop.f32.mrb[0].mxu0
  %v2313 = vadd.f32 %v1847, %v2312
  %v2314 = vpop.f32.mrb[0].mxu0
  %2315 = vmatprep.mubr.f32.mxu0 0.0
  %v2316 = vand.u32 %v115, 4294901760
  %2317 = vmatmul.mubr.f32.gmra.mrb[0].mxu0 %v2316
  %v2318 = vpop.f32.mrb[0].mxu0
  %v2319 = vadd.f32 %v1855, %v2318
  %v2320 = vpop.f32.mrb[0].mxu0
  %2321 = vmatprep.mubr.f32.mxu0 0.0
  %v2322 = vand.u32 %v118, 4294901760
  %2323 = vmatmul.mubr.f32.gmra.mrb[0].mxu0 %v2322
  %v2324 = vpop.f32.mrb[0].mxu0
  %v2325 = vadd.f32 %v1863, %v2324
  %v2326 = vpop.f32.mrb[0].mxu0
  %2327 = vmatprep.mubr.f32.mxu0 0.0
  %v2328 = vand.u32 %v121, 4294901760
  %2329 = vmatmul.mubr.f32.gmra.mrb[0].mxu0 %v2328
  %v2330 = vpop.f32.mrb[0].mxu0
  %v2331 = vadd.f32 %v1871, %v2330
  %v2332 = vpop.f32.mrb[0].mxu0
  %2333 = vmatprep.mubr.f32.mxu0 0.0
  %v2334 = vand.u32 %v124, 4294901760
  %2335 = vmatmul.mubr.f32.gmra.mrb[0].mxu0 %v2334
  %v2336 = vpop.f32.mrb[0].mxu0
  %v2337 = vadd.f32 %v1879, %v2336
  %v2338 = vpop.f32.mrb[0].mxu0
  %2339 = vmatprep.mubr.f32.mxu0 0.0
  %v2340 = vand.u32 %v127, 4294901760
  %2341 = vmatmul.mubr.f32.gmra.mrb[0].mxu0 %v2340
  %v2342 = vpop.f32.mrb[0].mxu0
  %v2343 = vadd.f32 %v1887, %v2342
  %v2344 = vpop.f32.mrb[0].mxu0
  %2345 = vmatprep.mubr.f32.mxu0 0.0
  %v2346 = vand.u32 %v130, 4294901760
  %2347 = vmatmul.mubr.f32.gmra.mrb[0].mxu0 %v2346
  %v2348 = vpop.f32.mrb[0].mxu0
  %v2349 = vadd.f32 %v1895, %v2348
  %v2350 = vpop.f32.mrb[0].mxu0
  %2351 = vmatprep.mubr.f32.mxu0 0.0
  %v2352 = vand.u32 %v133, 4294901760
  %2353 = vmatmul.mubr.f32.gmra.mrb[0].mxu0 %v2352
  %v2354 = vpop.f32.mrb[0].mxu0
  %v2355 = vadd.f32 %v1903, %v2354
  %v2356 = vpop.f32.mrb[0].mxu0
  %2357 = vmatprep.mubr.f32.mxu0 0.0
  %v2358 = vand.u32 %v136, 4294901760
  %2359 = vmatmul.mubr.f32.gmra.mrb[0].mxu0 %v2358
  %v2360 = vpop.f32.mrb[0].mxu0
  %v2361 = vadd.f32 %v1911, %v2360
  %v2362 = vpop.f32.mrb[0].mxu0
  %2363 = vmatprep.mubr.f32.mxu0 0.0
  %v2364 = vand.u32 %v139, 4294901760
  %2365 = vmatmul.mubr.f32.gmra.mrb[0].mxu0 %v2364
  %v2366 = vpop.f32.mrb[0].mxu0
  %v2367 = vadd.f32 %v1919, %v2366
  %v2368 = vpop.f32.mrb[0].mxu0
  %2369 = vmatprep.mubr.f32.mxu0 0.0
  %v2370 = vand.u32 %v142, 4294901760
  %2371 = vmatmul.mubr.f32.gmra.mrb[0].mxu0 %v2370
  %v2372 = vpop.f32.mrb[0].mxu0
  %v2373 = vadd.f32 %v1927, %v2372
  %v2374 = vpop.f32.mrb[0].mxu0
  %2375 = vmatprep.mubr.f32.mxu0 0.0
  %v2376 = vand.u32 %v145, 4294901760
  %2377 = vmatmul.mubr.f32.gmra.mrb[0].mxu0 %v2376
  %v2378 = vpop.f32.mrb[0].mxu0
  %v2379 = vadd.f32 %v1935, %v2378
  %v2380 = vpop.f32.mrb[0].mxu0
  %2381 = vmatprep.mubr.f32.mxu0 0.0
  %v2382 = vand.u32 %v148, 4294901760
  %2383 = vmatmul.mubr.f32.gmra.mrb[0].mxu0 %v2382
  %v2384 = vpop.f32.mrb[0].mxu0
  %v2385 = vadd.f32 %v1943, %v2384
  %v2386 = vpop.f32.mrb[0].mxu0
  %2387 = vmatprep.mubr.f32.mxu0 0.0
  %v2388 = vand.u32 %v151, 4294901760
  %2389 = vmatmul.mubr.f32.gmra.mrb[0].mxu0 %v2388
  %v2390 = vpop.f32.mrb[0].mxu0
  %v2391 = vadd.f32 %v1951, %v2390
  %v2392 = vpop.f32.mrb[0].mxu0
  %2393 = vmatprep.mubr.f32.mxu0 0.0
  %v2394 = vand.u32 %v154, 4294901760
  %2395 = vmatmul.mubr.f32.gmra.mrb[0].mxu0 %v2394
  %v2396 = vpop.f32.mrb[0].mxu0
  %v2397 = vadd.f32 %v1959, %v2396
  %v2398 = vpop.f32.mrb[0].mxu0
  %2399 = vmatprep.mubr.f32.mxu0 0.0
  %v2400 = vand.u32 %v157, 4294901760
  %2401 = vmatmul.mubr.f32.gmra.mrb[0].mxu0 %v2400
  %v2402 = vpop.f32.mrb[0].mxu0
  %v2403 = vadd.f32 %v1967, %v2402
  %v2404 = vpop.f32.mrb[0].mxu0
  %2405 = vmatprep.mubr.f32.mxu0 0.0
  %v2406 = vand.u32 %v160, 4294901760
  %2407 = vmatmul.mubr.f32.gmra.mrb[0].mxu0 %v2406
  %v2408 = vpop.f32.mrb[0].mxu0
  %v2409 = vadd.f32 %v1975, %v2408
  %v2410 = vpop.f32.mrb[0].mxu0
  %2411 = vmatprep.mubr.f32.mxu0 0.0
  %v2412 = vand.u32 %v163, 4294901760
  %2413 = vmatmul.mubr.f32.gmra.mrb[0].mxu0 %v2412
  %v2414 = vpop.f32.mrb[0].mxu0
  %v2415 = vadd.f32 %v1983, %v2414
  %v2416 = vpop.f32.mrb[0].mxu0
  %2417 = vmatprep.mubr.f32.mxu0 0.0
  %v2418 = vand.u32 %v166, 4294901760
  %2419 = vmatmul.mubr.f32.gmra.mrb[0].mxu0 %v2418
  %v2420 = vpop.f32.mrb[0].mxu0
  %v2421 = vadd.f32 %v1991, %v2420
  %v2422 = vpop.f32.mrb[0].mxu0
  %2423 = vmatprep.mubr.f32.mxu0 0.0
  %v2424 = vand.u32 %v169, 4294901760
  %2425 = vmatmul.mubr.f32.gmra.mrb[0].mxu0 %v2424
  %v2426 = vpop.f32.mrb[0].mxu0
  %v2427 = vadd.f32 %v1999, %v2426
  %v2428 = vpop.f32.mrb[0].mxu0
  %2429 = vmatprep.mubr.f32.mxu0 0.0
  %v2430 = vand.u32 %v172, 4294901760
  %2431 = vmatmul.mubr.f32.gmra.mrb[0].mxu0 %v2430
  %v2432 = vpop.f32.mrb[0].mxu0
  %v2433 = vadd.f32 %v2007, %v2432
  %v2434 = vpop.f32.mrb[0].mxu0
  %2435 = vmatprep.mubr.f32.mxu0 0.0
  %v2436 = vand.u32 %v175, 4294901760
  %2437 = vmatmul.mubr.f32.gmra.mrb[0].mxu0 %v2436
  %v2438 = vpop.f32.mrb[0].mxu0
  %v2439 = vadd.f32 %v2015, %v2438
  %v2440 = vpop.f32.mrb[0].mxu0
  %2441 = vmatprep.mubr.f32.mxu0 0.0
  %v2442 = vand.u32 %v178, 4294901760
  %2443 = vmatmul.mubr.f32.gmra.mrb[0].mxu0 %v2442
  %v2444 = vpop.f32.mrb[0].mxu0
  %v2445 = vadd.f32 %v2023, %v2444
  %v2446 = vpop.f32.mrb[0].mxu0
  %2447 = vmatprep.mubr.f32.mxu0 0.0
  %v2448 = vand.u32 %v181, 4294901760
  %2449 = vmatmul.mubr.f32.gmra.mrb[0].mxu0 %v2448
  %v2450 = vpop.f32.mrb[0].mxu0
  %v2451 = vadd.f32 %v2031, %v2450
  %v2452 = vpop.f32.mrb[0].mxu0
  %2453 = vmatprep.mubr.f32.mxu0 0.0
  %v2454 = vand.u32 %v184, 4294901760
  %2455 = vmatmul.mubr.f32.gmra.mrb[0].mxu0 %v2454
  %v2456 = vpop.f32.mrb[0].mxu0
  %v2457 = vadd.f32 %v2039, %v2456
  %v2458 = vpop.f32.mrb[0].mxu0
  %2459 = vmatprep.mubr.f32.mxu0 0.0
  %v2460 = vand.u32 %v187, 4294901760
  %2461 = vmatmul.mubr.f32.gmra.mrb[0].mxu0 %v2460
  %v2462 = vpop.f32.mrb[0].mxu0
  %v2463 = vadd.f32 %v2047, %v2462
  %v2464 = vpop.f32.mrb[0].mxu0
  %2465 = vmatprep.mubr.f32.mxu0 0.0
  %v2466 = vand.u32 %v190, 4294901760
  %2467 = vmatmul.mubr.f32.gmra.mrb[0].mxu0 %v2466
  %v2468 = vpop.f32.mrb[0].mxu0
  %v2469 = vadd.f32 %v2055, %v2468
  %v2470 = vpop.f32.mrb[0].mxu0
  %2471 = vmatprep.mubr.f32.mxu0 0.0
  %v2472 = vand.u32 %v193, 4294901760
  %2473 = vmatmul.mubr.f32.gmra.mrb[0].mxu0 %v2472
  %v2474 = vpop.f32.mrb[0].mxu0
  %v2475 = vadd.f32 %v2063, %v2474
  %v2476 = vpop.f32.mrb[0].mxu0
  %2477 = vmatprep.mubr.f32.mxu0 0.0
  %v2478 = vand.u32 %v196, 4294901760
  %2479 = vmatmul.mubr.f32.gmra.mrb[0].mxu0 %v2478
  %v2480 = vpop.f32.mrb[0].mxu0
  %v2481 = vadd.f32 %v2071, %v2480
  %v2482 = vpop.f32.mrb[0].mxu0
  %2483 = vmatprep.mubr.f32.mxu0 0.0
  %v2484 = vand.u32 %v199, 4294901760
  %2485 = vmatmul.mubr.f32.gmra.mrb[0].mxu0 %v2484
  %v2486 = vpop.f32.mrb[0].mxu0
  %v2487 = vadd.f32 %v2079, %v2486
  %v2488 = vpop.f32.mrb[0].mxu0
  %2489 = vmatprep.mubr.f32.mxu0 0.0
  %v2490 = vand.u32 %v202, 4294901760
  %2491 = vmatmul.mubr.f32.gmra.mrb[0].mxu0 %v2490
  %v2492 = vpop.f32.mrb[0].mxu0
  %v2493 = vadd.f32 %v2087, %v2492
  %v2494 = vpop.f32.mrb[0].mxu0
  %2495 = vmatprep.mubr.f32.mxu0 0.0
  %v2496 = vand.u32 %v205, 4294901760
  %2497 = vmatmul.mubr.f32.gmra.mrb[0].mxu0 %v2496
  %v2498 = vpop.f32.mrb[0].mxu0
  %v2499 = vadd.f32 %v2095, %v2498
  %v2500 = vpop.f32.mrb[0].mxu0
  %2501 = vmatprep.mubr.f32.mxu0 0.0
  %v2502 = vand.u32 %v208, 4294901760
  %2503 = vmatmul.mubr.f32.gmra.mrb[0].mxu0 %v2502
  %v2504 = vpop.f32.mrb[0].mxu0
  %v2505 = vadd.f32 %v2103, %v2504
  %v2506 = vpop.f32.mrb[0].mxu0
  %2507 = vmatprep.mubr.f32.mxu0 0.0
  %v2508 = vand.u32 %v211, 4294901760
  %2509 = vmatmul.mubr.f32.gmra.mrb[0].mxu0 %v2508
  %v2510 = vpop.f32.mrb[0].mxu0
  %v2511 = vadd.f32 %v2111, %v2510
  %v2512 = vpop.f32.mrb[0].mxu0
  %2513 = vmatprep.mubr.f32.mxu0 0.0
  %v2514 = vand.u32 %v214, 4294901760
  %2515 = vmatmul.mubr.f32.gmra.mrb[0].mxu0 %v2514
  %v2516 = vpop.f32.mrb[0].mxu0
  %v2517 = vadd.f32 %v2119, %v2516
  %v2518 = vpop.f32.mrb[0].mxu0
  %2519 = vmatprep.mubr.f32.mxu0 0.0
  %v2520 = vand.u32 %v217, 4294901760
  %2521 = vmatmul.mubr.f32.gmra.mrb[0].mxu0 %v2520
  %v2522 = vpop.f32.mrb[0].mxu0
  %v2523 = vadd.f32 %v2127, %v2522
  %v2524 = vpop.f32.mrb[0].mxu0
  %2525 = vmatprep.mubr.f32.mxu0 0.0
  %v2526 = vand.u32 %v220, 4294901760
  %2527 = vmatmul.mubr.f32.gmra.mrb[0].mxu0 %v2526
  %v2528 = vpop.f32.mrb[0].mxu0
  %v2529 = vadd.f32 %v2135, %v2528
  %v2530 = vpop.f32.mrb[0].mxu0
  %2531 = vmatprep.mubr.f32.mxu0 0.0
  %v2532 = vand.u32 %v223, 4294901760
  %2533 = vmatmul.mubr.f32.gmra.mrb[0].mxu0 %v2532
  %v2534 = vpop.f32.mrb[0].mxu0
  %v2535 = vadd.f32 %v2143, %v2534
  %v2536 = vpop.f32.mrb[0].mxu0
  %2537 = vdwg.mxu0
  %2538 = vmatprep.subr.mxu0 0.0
  %v2539 = vand.u32 %v63, 4294901760
  %2540 = vmatpush1.msra.mxu0 %v2539
  %2541 = vmatprep.subr.mxu0 0.0
  %v2542 = vand.u32 %v64, 4294901760
  %2543 = vmatpush1.msra.mxu0 %v2542
  %2544 = vmatprep.subr.mxu0 0.0
  %v2545 = vand.u32 %v65, 4294901760
  %2546 = vmatpush1.msra.mxu0 %v2545
  %2547 = vmatprep.subr.mxu0 0.0
  %v2548 = vand.u32 %v66, 4294901760
  %2549 = vmatpush1.msra.mxu0 %v2548
  %2550 = vmatprep.subr.mxu0 0.0
  %v2551 = vand.u32 %v227, 4294901760
  %2552 = vmatpush1.msra.mxu0 %v2551
  %2553 = vmatprep.subr.mxu0 0.0
  %2554 = vmatpush1.msra.mxu0 0.0
  %2555 = vmatprep.subr.mxu0 0.0
  %2556 = vmatpush1.msra.mxu0 0.0
  %2557 = vmatprep.subr.mxu0 0.0
  %2558 = vmatpush1.msra.mxu0 0.0
  %2559 = vmatprep.subr.mxu0 0.0
  %2560 = vmatpush1.msra.mxu0 0.0
  %2561 = vmatprep.subr.mxu0 0.0
  %2562 = vmatpush1.msra.mxu0 0.0
  %2563 = vmatprep.subr.mxu0 0.0
  %2564 = vmatpush1.msra.mxu0 0.0
  %2565 = vmatprep.subr.mxu0 0.0
  %2566 = vmatpush1.msra.mxu0 0.0
  %2567 = vmatprep.subr.mxu0 0.0
  %2568 = vmatpush1.msra.mxu0 0.0
  %2569 = vmatprep.subr.mxu0 0.0
  %2570 = vmatpush1.msra.mxu0 0.0
  %2571 = vmatprep.subr.mxu0 0.0
  %2572 = vmatpush1.msra.mxu0 0.0
  %2573 = vmatprep.subr.mxu0 0.0
  %2574 = vmatpush1.msra.mxu0 0.0
  %2575 = vmatprep.subr.mxu0 0.0
  %2576 = vmatpush1.msra.mxu0 0.0
  %2577 = vmatprep.subr.mxu0 0.0
  %2578 = vmatpush1.msra.mxu0 0.0
  %2579 = vmatprep.subr.mxu0 0.0
  %2580 = vmatpush1.msra.mxu0 0.0
  %2581 = vmatprep.subr.mxu0 0.0
  %2582 = vmatpush1.msra.mxu0 0.0
  %2583 = vmatprep.subr.mxu0 0.0
  %2584 = vmatpush1.msra.mxu0 0.0
  %2585 = vmatprep.subr.mxu0 0.0
  %2586 = vmatpush1.msra.mxu0 0.0
  %2587 = vmatprep.subr.mxu0 0.0
  %2588 = vmatpush1.msra.mxu0 0.0
  %2589 = vmatprep.subr.mxu0 0.0
  %2590 = vmatpush1.msra.mxu0 0.0
  %2591 = vmatprep.subr.mxu0 0.0
  %2592 = vmatpush1.msra.mxu0 0.0
  %2593 = vmatprep.subr.mxu0 0.0
  %2594 = vmatpush1.msra.mxu0 0.0
  %2595 = vmatprep.subr.mxu0 0.0
  %2596 = vmatpush1.msra.mxu0 0.0
  %2597 = vmatprep.subr.mxu0 0.0
  %2598 = vmatpush1.msra.mxu0 0.0
  %2599 = vmatprep.subr.mxu0 0.0
  %2600 = vmatpush1.msra.mxu0 0.0
  %2601 = vmatprep.subr.mxu0 0.0
  %2602 = vmatpush1.msra.mxu0 0.0
  %2603 = vmatprep.subr.mxu0 0.0
  %2604 = vmatpush1.msra.mxu0 0.0
  %2605 = vmatprep.subr.mxu0 0.0
  %2606 = vmatpush1.msra.mxu0 0.0
  %2607 = vmatprep.mubr.f32.mxu0 0.0
  %v2608 = vand.u32 %v70, 4294901760
  %2609 = vmatmul.mubr.f32.gmra.mrb[0].mxu0 %v2608
  %v2610 = vpop.f32.mrb[0].mxu0
  %v2611 = vadd.f32 %v2229, %v2610
  %v2612 = vpop.f32.mrb[0].mxu0
  %2613 = vmatprep.mubr.f32.mxu0 0.0
  %v2614 = vand.u32 %v73, 4294901760
  %2615 = vmatmul.mubr.f32.gmra.mrb[0].mxu0 %v2614
  %v2616 = vpop.f32.mrb[0].mxu0
  %v2617 = vadd.f32 %v2235, %v2616
  %v2618 = vpop.f32.mrb[0].mxu0
  %2619 = vmatprep.mubr.f32.mxu0 0.0
  %v2620 = vand.u32 %v76, 4294901760
  %2621 = vmatmul.mubr.f32.gmra.mrb[0].mxu0 %v2620
  %v2622 = vpop.f32.mrb[0].mxu0
  %v2623 = vadd.f32 %v2241, %v2622
  %v2624 = vpop.f32.mrb[0].mxu0
  %2625 = vmatprep.mubr.f32.mxu0 0.0
  %v2626 = vand.u32 %v79, 4294901760
  %2627 = vmatmul.mubr.f32.gmra.mrb[0].mxu0 %v2626
  %v2628 = vpop.f32.mrb[0].mxu0
  %v2629 = vadd.f32 %v2247, %v2628
  %v2630 = vpop.f32.mrb[0].mxu0
  %2631 = vmatprep.mubr.f32.mxu0 0.0
  %v2632 = vand.u32 %v82, 4294901760
  %2633 = vmatmul.mubr.f32.gmra.mrb[0].mxu0 %v2632
  %v2634 = vpop.f32.mrb[0].mxu0
  %v2635 = vadd.f32 %v2253, %v2634
  %v2636 = vpop.f32.mrb[0].mxu0
  %2637 = vmatprep.mubr.f32.mxu0 0.0
  %v2638 = vand.u32 %v85, 4294901760
  %2639 = vmatmul.mubr.f32.gmra.mrb[0].mxu0 %v2638
  %v2640 = vpop.f32.mrb[0].mxu0
  %v2641 = vadd.f32 %v2259, %v2640
  %v2642 = vpop.f32.mrb[0].mxu0
  %2643 = vmatprep.mubr.f32.mxu0 0.0
  %v2644 = vand.u32 %v88, 4294901760
  %2645 = vmatmul.mubr.f32.gmra.mrb[0].mxu0 %v2644
  %v2646 = vpop.f32.mrb[0].mxu0
  %v2647 = vadd.f32 %v2265, %v2646
  %v2648 = vpop.f32.mrb[0].mxu0
  %2649 = vmatprep.mubr.f32.mxu0 0.0
  %v2650 = vand.u32 %v91, 4294901760
  %2651 = vmatmul.mubr.f32.gmra.mrb[0].mxu0 %v2650
  %v2652 = vpop.f32.mrb[0].mxu0
  %v2653 = vadd.f32 %v2271, %v2652
  %v2654 = vpop.f32.mrb[0].mxu0
  %2655 = vmatprep.mubr.f32.mxu0 0.0
  %v2656 = vand.u32 %v94, 4294901760
  %2657 = vmatmul.mubr.f32.gmra.mrb[0].mxu0 %v2656
  %v2658 = vpop.f32.mrb[0].mxu0
  %v2659 = vadd.f32 %v2277, %v2658
  %v2660 = vpop.f32.mrb[0].mxu0
  %2661 = vmatprep.mubr.f32.mxu0 0.0
  %v2662 = vand.u32 %v97, 4294901760
  %2663 = vmatmul.mubr.f32.gmra.mrb[0].mxu0 %v2662
  %v2664 = vpop.f32.mrb[0].mxu0
  %v2665 = vadd.f32 %v2283, %v2664
  %v2666 = vpop.f32.mrb[0].mxu0
  %2667 = vmatprep.mubr.f32.mxu0 0.0
  %v2668 = vand.u32 %v100, 4294901760
  %2669 = vmatmul.mubr.f32.gmra.mrb[0].mxu0 %v2668
  %v2670 = vpop.f32.mrb[0].mxu0
  %v2671 = vadd.f32 %v2289, %v2670
  %v2672 = vpop.f32.mrb[0].mxu0
  %2673 = vmatprep.mubr.f32.mxu0 0.0
  %v2674 = vand.u32 %v103, 4294901760
  %2675 = vmatmul.mubr.f32.gmra.mrb[0].mxu0 %v2674
  %v2676 = vpop.f32.mrb[0].mxu0
  %v2677 = vadd.f32 %v2295, %v2676
  %v2678 = vpop.f32.mrb[0].mxu0
  %2679 = vmatprep.mubr.f32.mxu0 0.0
  %v2680 = vand.u32 %v106, 4294901760
  %2681 = vmatmul.mubr.f32.gmra.mrb[0].mxu0 %v2680
  %v2682 = vpop.f32.mrb[0].mxu0
  %v2683 = vadd.f32 %v2301, %v2682
  %v2684 = vpop.f32.mrb[0].mxu0
  %2685 = vmatprep.mubr.f32.mxu0 0.0
  %v2686 = vand.u32 %v109, 4294901760
  %2687 = vmatmul.mubr.f32.gmra.mrb[0].mxu0 %v2686
  %v2688 = vpop.f32.mrb[0].mxu0
  %v2689 = vadd.f32 %v2307, %v2688
  %v2690 = vpop.f32.mrb[0].mxu0
  %2691 = vmatprep.mubr.f32.mxu0 0.0
  %v2692 = vand.u32 %v112, 4294901760
  %2693 = vmatmul.mubr.f32.gmra.mrb[0].mxu0 %v2692
  %v2694 = vpop.f32.mrb[0].mxu0
  %v2695 = vadd.f32 %v2313, %v2694
  %v2696 = vpop.f32.mrb[0].mxu0
  %2697 = vmatprep.mubr.f32.mxu0 0.0
  %v2698 = vand.u32 %v115, 4294901760
  %2699 = vmatmul.mubr.f32.gmra.mrb[0].mxu0 %v2698
  %v2700 = vpop.f32.mrb[0].mxu0
  %v2701 = vadd.f32 %v2319, %v2700
  %v2702 = vpop.f32.mrb[0].mxu0
  %2703 = vmatprep.mubr.f32.mxu0 0.0
  %v2704 = vand.u32 %v118, 4294901760
  %2705 = vmatmul.mubr.f32.gmra.mrb[0].mxu0 %v2704
  %v2706 = vpop.f32.mrb[0].mxu0
  %v2707 = vadd.f32 %v2325, %v2706
  %v2708 = vpop.f32.mrb[0].mxu0
  %2709 = vmatprep.mubr.f32.mxu0 0.0
  %v2710 = vand.u32 %v121, 4294901760
  %2711 = vmatmul.mubr.f32.gmra.mrb[0].mxu0 %v2710
  %v2712 = vpop.f32.mrb[0].mxu0
  %v2713 = vadd.f32 %v2331, %v2712
  %v2714 = vpop.f32.mrb[0].mxu0
  %2715 = vmatprep.mubr.f32.mxu0 0.0
  %v2716 = vand.u32 %v124, 4294901760
  %2717 = vmatmul.mubr.f32.gmra.mrb[0].mxu0 %v2716
  %v2718 = vpop.f32.mrb[0].mxu0
  %v2719 = vadd.f32 %v2337, %v2718
  %v2720 = vpop.f32.mrb[0].mxu0
  %2721 = vmatprep.mubr.f32.mxu0 0.0
  %v2722 = vand.u32 %v127, 4294901760
  %2723 = vmatmul.mubr.f32.gmra.mrb[0].mxu0 %v2722
  %v2724 = vpop.f32.mrb[0].mxu0
  %v2725 = vadd.f32 %v2343, %v2724
  %v2726 = vpop.f32.mrb[0].mxu0
  %2727 = vmatprep.mubr.f32.mxu0 0.0
  %v2728 = vand.u32 %v130, 4294901760
  %2729 = vmatmul.mubr.f32.gmra.mrb[0].mxu0 %v2728
  %v2730 = vpop.f32.mrb[0].mxu0
  %v2731 = vadd.f32 %v2349, %v2730
  %v2732 = vpop.f32.mrb[0].mxu0
  %2733 = vmatprep.mubr.f32.mxu0 0.0
  %v2734 = vand.u32 %v133, 4294901760
  %2735 = vmatmul.mubr.f32.gmra.mrb[0].mxu0 %v2734
  %v2736 = vpop.f32.mrb[0].mxu0
  %v2737 = vadd.f32 %v2355, %v2736
  %v2738 = vpop.f32.mrb[0].mxu0
  %2739 = vmatprep.mubr.f32.mxu0 0.0
  %v2740 = vand.u32 %v136, 4294901760
  %2741 = vmatmul.mubr.f32.gmra.mrb[0].mxu0 %v2740
  %v2742 = vpop.f32.mrb[0].mxu0
  %v2743 = vadd.f32 %v2361, %v2742
  %v2744 = vpop.f32.mrb[0].mxu0
  %2745 = vmatprep.mubr.f32.mxu0 0.0
  %v2746 = vand.u32 %v139, 4294901760
  %2747 = vmatmul.mubr.f32.gmra.mrb[0].mxu0 %v2746
  %v2748 = vpop.f32.mrb[0].mxu0
  %v2749 = vadd.f32 %v2367, %v2748
  %v2750 = vpop.f32.mrb[0].mxu0
  %2751 = vmatprep.mubr.f32.mxu0 0.0
  %v2752 = vand.u32 %v142, 4294901760
  %2753 = vmatmul.mubr.f32.gmra.mrb[0].mxu0 %v2752
  %v2754 = vpop.f32.mrb[0].mxu0
  %v2755 = vadd.f32 %v2373, %v2754
  %v2756 = vpop.f32.mrb[0].mxu0
  %2757 = vmatprep.mubr.f32.mxu0 0.0
  %v2758 = vand.u32 %v145, 4294901760
  %2759 = vmatmul.mubr.f32.gmra.mrb[0].mxu0 %v2758
  %v2760 = vpop.f32.mrb[0].mxu0
  %v2761 = vadd.f32 %v2379, %v2760
  %v2762 = vpop.f32.mrb[0].mxu0
  %2763 = vmatprep.mubr.f32.mxu0 0.0
  %v2764 = vand.u32 %v148, 4294901760
  %2765 = vmatmul.mubr.f32.gmra.mrb[0].mxu0 %v2764
  %v2766 = vpop.f32.mrb[0].mxu0
  %v2767 = vadd.f32 %v2385, %v2766
  %v2768 = vpop.f32.mrb[0].mxu0
  %2769 = vmatprep.mubr.f32.mxu0 0.0
  %v2770 = vand.u32 %v151, 4294901760
  %2771 = vmatmul.mubr.f32.gmra.mrb[0].mxu0 %v2770
  %v2772 = vpop.f32.mrb[0].mxu0
  %v2773 = vadd.f32 %v2391, %v2772
  %v2774 = vpop.f32.mrb[0].mxu0
  %2775 = vmatprep.mubr.f32.mxu0 0.0
  %v2776 = vand.u32 %v154, 4294901760
  %2777 = vmatmul.mubr.f32.gmra.mrb[0].mxu0 %v2776
  %v2778 = vpop.f32.mrb[0].mxu0
  %v2779 = vadd.f32 %v2397, %v2778
  %v2780 = vpop.f32.mrb[0].mxu0
  %2781 = vmatprep.mubr.f32.mxu0 0.0
  %v2782 = vand.u32 %v157, 4294901760
  %2783 = vmatmul.mubr.f32.gmra.mrb[0].mxu0 %v2782
  %v2784 = vpop.f32.mrb[0].mxu0
  %v2785 = vadd.f32 %v2403, %v2784
  %v2786 = vpop.f32.mrb[0].mxu0
  %2787 = vmatprep.mubr.f32.mxu0 0.0
  %v2788 = vand.u32 %v160, 4294901760
  %2789 = vmatmul.mubr.f32.gmra.mrb[0].mxu0 %v2788
  %v2790 = vpop.f32.mrb[0].mxu0
  %v2791 = vadd.f32 %v2409, %v2790
  %v2792 = vpop.f32.mrb[0].mxu0
  %2793 = vmatprep.mubr.f32.mxu0 0.0
  %v2794 = vand.u32 %v163, 4294901760
  %2795 = vmatmul.mubr.f32.gmra.mrb[0].mxu0 %v2794
  %v2796 = vpop.f32.mrb[0].mxu0
  %v2797 = vadd.f32 %v2415, %v2796
  %v2798 = vpop.f32.mrb[0].mxu0
  %2799 = vmatprep.mubr.f32.mxu0 0.0
  %v2800 = vand.u32 %v166, 4294901760
  %2801 = vmatmul.mubr.f32.gmra.mrb[0].mxu0 %v2800
  %v2802 = vpop.f32.mrb[0].mxu0
  %v2803 = vadd.f32 %v2421, %v2802
  %v2804 = vpop.f32.mrb[0].mxu0
  %2805 = vmatprep.mubr.f32.mxu0 0.0
  %v2806 = vand.u32 %v169, 4294901760
  %2807 = vmatmul.mubr.f32.gmra.mrb[0].mxu0 %v2806
  %v2808 = vpop.f32.mrb[0].mxu0
  %v2809 = vadd.f32 %v2427, %v2808
  %v2810 = vpop.f32.mrb[0].mxu0
  %2811 = vmatprep.mubr.f32.mxu0 0.0
  %v2812 = vand.u32 %v172, 4294901760
  %2813 = vmatmul.mubr.f32.gmra.mrb[0].mxu0 %v2812
  %v2814 = vpop.f32.mrb[0].mxu0
  %v2815 = vadd.f32 %v2433, %v2814
  %v2816 = vpop.f32.mrb[0].mxu0
  %2817 = vmatprep.mubr.f32.mxu0 0.0
  %v2818 = vand.u32 %v175, 4294901760
  %2819 = vmatmul.mubr.f32.gmra.mrb[0].mxu0 %v2818
  %v2820 = vpop.f32.mrb[0].mxu0
  %v2821 = vadd.f32 %v2439, %v2820
  %v2822 = vpop.f32.mrb[0].mxu0
  %2823 = vmatprep.mubr.f32.mxu0 0.0
  %v2824 = vand.u32 %v178, 4294901760
  %2825 = vmatmul.mubr.f32.gmra.mrb[0].mxu0 %v2824
  %v2826 = vpop.f32.mrb[0].mxu0
  %v2827 = vadd.f32 %v2445, %v2826
  %v2828 = vpop.f32.mrb[0].mxu0
  %2829 = vmatprep.mubr.f32.mxu0 0.0
  %v2830 = vand.u32 %v181, 4294901760
  %2831 = vmatmul.mubr.f32.gmra.mrb[0].mxu0 %v2830
  %v2832 = vpop.f32.mrb[0].mxu0
  %v2833 = vadd.f32 %v2451, %v2832
  %v2834 = vpop.f32.mrb[0].mxu0
  %2835 = vmatprep.mubr.f32.mxu0 0.0
  %v2836 = vand.u32 %v184, 4294901760
  %2837 = vmatmul.mubr.f32.gmra.mrb[0].mxu0 %v2836
  %v2838 = vpop.f32.mrb[0].mxu0
  %v2839 = vadd.f32 %v2457, %v2838
  %v2840 = vpop.f32.mrb[0].mxu0
  %2841 = vmatprep.mubr.f32.mxu0 0.0
  %v2842 = vand.u32 %v187, 4294901760
  %2843 = vmatmul.mubr.f32.gmra.mrb[0].mxu0 %v2842
  %v2844 = vpop.f32.mrb[0].mxu0
  %v2845 = vadd.f32 %v2463, %v2844
  %v2846 = vpop.f32.mrb[0].mxu0
  %2847 = vmatprep.mubr.f32.mxu0 0.0
  %v2848 = vand.u32 %v190, 4294901760
  %2849 = vmatmul.mubr.f32.gmra.mrb[0].mxu0 %v2848
  %v2850 = vpop.f32.mrb[0].mxu0
  %v2851 = vadd.f32 %v2469, %v2850
  %v2852 = vpop.f32.mrb[0].mxu0
  %2853 = vmatprep.mubr.f32.mxu0 0.0
  %v2854 = vand.u32 %v193, 4294901760
  %2855 = vmatmul.mubr.f32.gmra.mrb[0].mxu0 %v2854
  %v2856 = vpop.f32.mrb[0].mxu0
  %v2857 = vadd.f32 %v2475, %v2856
  %v2858 = vpop.f32.mrb[0].mxu0
  %2859 = vmatprep.mubr.f32.mxu0 0.0
  %v2860 = vand.u32 %v196, 4294901760
  %2861 = vmatmul.mubr.f32.gmra.mrb[0].mxu0 %v2860
  %v2862 = vpop.f32.mrb[0].mxu0
  %v2863 = vadd.f32 %v2481, %v2862
  %v2864 = vpop.f32.mrb[0].mxu0
  %2865 = vmatprep.mubr.f32.mxu0 0.0
  %v2866 = vand.u32 %v199, 4294901760
  %2867 = vmatmul.mubr.f32.gmra.mrb[0].mxu0 %v2866
  %v2868 = vpop.f32.mrb[0].mxu0
  %v2869 = vadd.f32 %v2487, %v2868
  %v2870 = vpop.f32.mrb[0].mxu0
  %2871 = vmatprep.mubr.f32.mxu0 0.0
  %v2872 = vand.u32 %v202, 4294901760
  %2873 = vmatmul.mubr.f32.gmra.mrb[0].mxu0 %v2872
  %v2874 = vpop.f32.mrb[0].mxu0
  %v2875 = vadd.f32 %v2493, %v2874
  %v2876 = vpop.f32.mrb[0].mxu0
  %2877 = vmatprep.mubr.f32.mxu0 0.0
  %v2878 = vand.u32 %v205, 4294901760
  %2879 = vmatmul.mubr.f32.gmra.mrb[0].mxu0 %v2878
  %v2880 = vpop.f32.mrb[0].mxu0
  %v2881 = vadd.f32 %v2499, %v2880
  %v2882 = vpop.f32.mrb[0].mxu0
  %2883 = vmatprep.mubr.f32.mxu0 0.0
  %v2884 = vand.u32 %v208, 4294901760
  %2885 = vmatmul.mubr.f32.gmra.mrb[0].mxu0 %v2884
  %v2886 = vpop.f32.mrb[0].mxu0
  %v2887 = vadd.f32 %v2505, %v2886
  %v2888 = vpop.f32.mrb[0].mxu0
  %2889 = vmatprep.mubr.f32.mxu0 0.0
  %v2890 = vand.u32 %v211, 4294901760
  %2891 = vmatmul.mubr.f32.gmra.mrb[0].mxu0 %v2890
  %v2892 = vpop.f32.mrb[0].mxu0
  %v2893 = vadd.f32 %v2511, %v2892
  %v2894 = vpop.f32.mrb[0].mxu0
  %2895 = vmatprep.mubr.f32.mxu0 0.0
  %v2896 = vand.u32 %v214, 4294901760
  %2897 = vmatmul.mubr.f32.gmra.mrb[0].mxu0 %v2896
  %v2898 = vpop.f32.mrb[0].mxu0
  %v2899 = vadd.f32 %v2517, %v2898
  %v2900 = vpop.f32.mrb[0].mxu0
  %2901 = vmatprep.mubr.f32.mxu0 0.0
  %v2902 = vand.u32 %v217, 4294901760
  %2903 = vmatmul.mubr.f32.gmra.mrb[0].mxu0 %v2902
  %v2904 = vpop.f32.mrb[0].mxu0
  %v2905 = vadd.f32 %v2523, %v2904
  %v2906 = vpop.f32.mrb[0].mxu0
  %2907 = vmatprep.mubr.f32.mxu0 0.0
  %v2908 = vand.u32 %v220, 4294901760
  %2909 = vmatmul.mubr.f32.gmra.mrb[0].mxu0 %v2908
  %v2910 = vpop.f32.mrb[0].mxu0
  %v2911 = vadd.f32 %v2529, %v2910
  %v2912 = vpop.f32.mrb[0].mxu0
  %2913 = vmatprep.mubr.f32.mxu0 0.0
  %v2914 = vand.u32 %v223, 4294901760
  %2915 = vmatmul.mubr.f32.gmra.mrb[0].mxu0 %v2914
  %v2916 = vpop.f32.mrb[0].mxu0
  %v2917 = vadd.f32 %v2535, %v2916
  %v2918 = vpop.f32.mrb[0].mxu0
  %2919 = vdwg.mxu0
  %v2920 = vmax.f32 %v2611, %v2689
  %v2921 = vmax.f32 %v2617, %v2695
  %v2922 = vmax.f32 %v2623, %v2701
  %v2923 = vmax.f32 %v2629, %v2707
  %v2924 = vmax.f32 %v2635, %v2713
  %v2925 = vmax.f32 %v2641, %v2719
  %v2926 = vmax.f32 %v2647, %v2725
  %v2927 = vmax.f32 %v2653, %v2731
  %v2928 = vmax.f32 %v2659, %v2737
  %v2929 = vmax.f32 %v2665, %v2743
  %v2930 = vmax.f32 %v2671, %v2749
  %v2931 = vmax.f32 %v2677, %v2755
  %v2932 = vmax.f32 %v2683, %v2761
  %v2933 = vmax.f32 %v2767, %v2845
  %v2934 = vmax.f32 %v2773, %v2851
  %v2935 = vmax.f32 %v2779, %v2857
  %v2936 = vmax.f32 %v2785, %v2863
  %v2937 = vmax.f32 %v2791, %v2869
  %v2938 = vmax.f32 %v2797, %v2875
  %v2939 = vmax.f32 %v2803, %v2881
  %v2940 = vmax.f32 %v2809, %v2887
  %v2941 = vmax.f32 %v2815, %v2893
  %v2942 = vmax.f32 %v2821, %v2899
  %v2943 = vmax.f32 %v2827, %v2905
  %v2944 = vmax.f32 %v2833, %v2911
  %v2945 = vmax.f32 %v2839, %v2917
  %v2946 = vmax.f32 %v2920, %v2933
  %v2947 = vmax.f32 %v2921, %v2934
  %v2948 = vmax.f32 %v2922, %v2935
  %v2949 = vmax.f32 %v2923, %v2936
  %v2950 = vmax.f32 %v2924, %v2937
  %v2951 = vmax.f32 %v2925, %v2938
  %v2952 = vmax.f32 %v2926, %v2939
  %v2953 = vmax.f32 %v2927, %v2940
  %v2954 = vmax.f32 %v2928, %v2941
  %v2955 = vmax.f32 %v2929, %v2942
  %v2956 = vmax.f32 %v2930, %v2943
  %v2957 = vmax.f32 %v2931, %v2944
  %v2958 = vmax.f32 %v2932, %v2945
  %v2959 = vld [vmem:[%s1 + $0x28] sm:$0x1]
  %v2960 = vlaneseq
  %v2961 = vshrl.u32 %v2960, 7
  %v2962 = vsub.s32 0, %v2961
  %v2963 = vrot.slane %v2959, %v2962
  %v2964 = vadd.f32 %v2946, %v2963
  %v2965 = vadd.f32 %v2947, %v2963
  %v2966 = vadd.f32 %v2948, %v2963
  %v2967 = vadd.f32 %v2949, %v2963
  %v2968 = vadd.f32 %v2950, %v2963
  %v2969 = vadd.f32 %v2951, %v2963
  %v2970 = vadd.f32 %v2952, %v2963
  %v2971 = vadd.f32 %v2953, %v2963
  %v2972 = vadd.f32 %v2954, %v2963
  %v2973 = vadd.f32 %v2955, %v2963
  %v2974 = vadd.f32 %v2956, %v2963
  %v2975 = vadd.f32 %v2957, %v2963
  %v2976 = vadd.f32 %v2958, %v2963
  %v2977 = vmax.f32 %v2964, 0.0
  %v2978 = vmax.f32 %v2965, 0.0
  %v2979 = vmax.f32 %v2966, 0.0
  %v2980 = vmax.f32 %v2967, 0.0
  %v2981 = vmax.f32 %v2968, 0.0
  %v2982 = vmax.f32 %v2969, 0.0
  %v2983 = vmax.f32 %v2970, 0.0
  %v2984 = vmax.f32 %v2971, 0.0
  %v2985 = vmax.f32 %v2972, 0.0
  %v2986 = vmax.f32 %v2973, 0.0
  %v2987 = vmax.f32 %v2974, 0.0
  %v2988 = vmax.f32 %v2975, 0.0
  %v2989 = vmax.f32 %v2976, 0.0
  %vm2997 = vcmask 1045504
  %v2998 = vrot.slane %v2977, 2
  %v2999 = vrot.slane %v2978, 2
  %v3000 = vsel %vm2997, %v2998, %v2999
  %v3001 = vrot.slane %v2979, 2
  %v3002 = vsel %vm2997, %v2999, %v3001
  %v3003 = vrot.slane %v2980, 2
  %v3004 = vsel %vm2997, %v3001, %v3003
  %v3005 = vrot.slane %v2981, 2
  %v3006 = vsel %vm2997, %v3003, %v3005
  %v3007 = vrot.slane %v2982, 2
  %v3008 = vsel %vm2997, %v3005, %v3007
  %v3009 = vrot.slane %v2983, 2
  %v3010 = vsel %vm2997, %v3007, %v3009
  %3011 = vrot.lane.b32.xlu0 %v3000, 10
  %v3012 = vpop.permute.xlu0 %3011
  %3013 = vrot.lane.b32.xlu0 %v3002, 10
  %v3014 = vpop.permute.xlu0 %3013
  %3015 = vrot.lane.b32.xlu0 %v3004, 10
  %v3016 = vpop.permute.xlu0 %3015
  %3017 = vrot.lane.b32.xlu0 %v3006, 10
  %v3018 = vpop.permute.xlu0 %3017
  %3019 = vrot.lane.b32.xlu0 %v3008, 10
  %v3020 = vpop.permute.xlu0 %3019
  %3021 = vrot.lane.b32.xlu0 %v3010, 10
  %v3022 = vpop.permute.xlu0 %3021
  %3023 = vrot.lane.b32.xlu0 %v3009, 10
  %v3024 = vpop.permute.xlu0 %3023
  %v3032 = vrot.slane %v2977, 4
  %v3033 = vrot.slane %v2978, 4
  %v3034 = vsel %vm225, %v3032, %v3033
  %v3035 = vrot.slane %v2979, 4
  %v3036 = vsel %vm225, %v3033, %v3035
  %v3037 = vrot.slane %v2980, 4
  %v3038 = vsel %vm225, %v3035, %v3037
  %v3039 = vrot.slane %v2981, 4
  %v3040 = vsel %vm225, %v3037, %v3039
  %v3041 = vrot.slane %v2982, 4
  %v3042 = vsel %vm225, %v3039, %v3041
  %v3043 = vrot.slane %v2983, 4
  %v3044 = vsel %vm225, %v3041, %v3043
  %3045 = vrot.lane.b32.xlu0 %v3034, 20
  %v3046 = vpop.permute.xlu0 %3045
  %3047 = vrot.lane.b32.xlu0 %v3036, 20
  %v3048 = vpop.permute.xlu0 %3047
  %3049 = vrot.lane.b32.xlu0 %v3038, 20
  %v3050 = vpop.permute.xlu0 %3049
  %3051 = vrot.lane.b32.xlu0 %v3040, 20
  %v3052 = vpop.permute.xlu0 %3051
  %3053 = vrot.lane.b32.xlu0 %v3042, 20
  %v3054 = vpop.permute.xlu0 %3053
  %3055 = vrot.lane.b32.xlu0 %v3044, 20
  %v3056 = vpop.permute.xlu0 %3055
  %3057 = vrot.lane.b32.xlu0 %v3043, 20
  %v3058 = vpop.permute.xlu0 %3057
  %vm3066 = vcmask 1041408
  %v3067 = vrot.slane %v2977, 6
  %v3068 = vrot.slane %v2978, 6
  %v3069 = vsel %vm3066, %v3067, %v3068
  %v3070 = vrot.slane %v2979, 6
  %v3071 = vsel %vm3066, %v3068, %v3070
  %v3072 = vrot.slane %v2980, 6
  %v3073 = vsel %vm3066, %v3070, %v3072
  %v3074 = vrot.slane %v2981, 6
  %v3075 = vsel %vm3066, %v3072, %v3074
  %v3076 = vrot.slane %v2982, 6
  %v3077 = vsel %vm3066, %v3074, %v3076
  %v3078 = vrot.slane %v2983, 6
  %v3079 = vsel %vm3066, %v3076, %v3078
  %3080 = vrot.lane.b32.xlu0 %v3069, 30
  %v3081 = vpop.permute.xlu0 %3080
  %3082 = vrot.lane.b32.xlu0 %v3071, 30
  %v3083 = vpop.permute.xlu0 %3082
  %3084 = vrot.lane.b32.xlu0 %v3073, 30
  %v3085 = vpop.permute.xlu0 %3084
  %3086 = vrot.lane.b32.xlu0 %v3075, 30
  %v3087 = vpop.permute.xlu0 %3086
  %3088 = vrot.lane.b32.xlu0 %v3077, 30
  %v3089 = vpop.permute.xlu0 %3088
  %3090 = vrot.lane.b32.xlu0 %v3079, 30
  %v3091 = vpop.permute.xlu0 %3090
  %3092 = vrot.lane.b32.xlu0 %v3078, 30
  %v3093 = vpop.permute.xlu0 %3092
  %v3102 = vrot.slane %v2984, 6
  %v3103 = vsel %vm3066, %v3078, %v3102
  %3104 = vrot.lane.b32.xlu0 %v3071, 40
  %v3105 = vpop.permute.xlu0 %3104
  %3106 = vrot.lane.b32.xlu0 %v3073, 40
  %v3107 = vpop.permute.xlu0 %3106
  %3108 = vrot.lane.b32.xlu0 %v3075, 40
  %v3109 = vpop.permute.xlu0 %3108
  %3110 = vrot.lane.b32.xlu0 %v3077, 40
  %v3111 = vpop.permute.xlu0 %3110
  %3112 = vrot.lane.b32.xlu0 %v3079, 40
  %v3113 = vpop.permute.xlu0 %3112
  %3114 = vrot.lane.b32.xlu0 %v3103, 40
  %v3115 = vpop.permute.xlu0 %3114
  %3116 = vrot.lane.b32.xlu0 %v3102, 40
  %v3117 = vpop.permute.xlu0 %3116
  %3126 = vrot.lane.b32.xlu0 %v2979, 50
  %v3127 = vpop.permute.xlu0 %3126
  %3128 = vrot.lane.b32.xlu0 %v2980, 50
  %v3129 = vpop.permute.xlu0 %3128
  %3130 = vrot.lane.b32.xlu0 %v2981, 50
  %v3131 = vpop.permute.xlu0 %3130
  %3132 = vrot.lane.b32.xlu0 %v2982, 50
  %v3133 = vpop.permute.xlu0 %3132
  %3134 = vrot.lane.b32.xlu0 %v2983, 50
  %v3135 = vpop.permute.xlu0 %3134
  %3136 = vrot.lane.b32.xlu0 %v2984, 50
  %v3137 = vpop.permute.xlu0 %3136
  %3138 = vrot.lane.b32.xlu0 %v2985, 50
  %v3139 = vpop.permute.xlu0 %3138
  %v3147 = vrot.slane %v2984, 2
  %v3148 = vsel %vm2997, %v3009, %v3147
  %v3149 = vrot.slane %v2985, 2
  %v3150 = vsel %vm2997, %v3147, %v3149
  %3151 = vrot.lane.b32.xlu0 %v3004, 60
  %v3152 = vpop.permute.xlu0 %3151
  %3153 = vrot.lane.b32.xlu0 %v3006, 60
  %v3154 = vpop.permute.xlu0 %3153
  %3155 = vrot.lane.b32.xlu0 %v3008, 60
  %v3156 = vpop.permute.xlu0 %3155
  %3157 = vrot.lane.b32.xlu0 %v3010, 60
  %v3158 = vpop.permute.xlu0 %3157
  %3159 = vrot.lane.b32.xlu0 %v3148, 60
  %v3160 = vpop.permute.xlu0 %3159
  %3161 = vrot.lane.b32.xlu0 %v3150, 60
  %v3162 = vpop.permute.xlu0 %3161
  %3163 = vrot.lane.b32.xlu0 %v3149, 60
  %v3164 = vpop.permute.xlu0 %3163
  %v3172 = vrot.slane %v2984, 4
  %v3173 = vsel %vm225, %v3043, %v3172
  %v3174 = vrot.slane %v2985, 4
  %v3175 = vsel %vm225, %v3172, %v3174
  %3176 = vrot.lane.b32.xlu0 %v3038, 70
  %v3177 = vpop.permute.xlu0 %3176
  %3178 = vrot.lane.b32.xlu0 %v3040, 70
  %v3179 = vpop.permute.xlu0 %3178
  %3180 = vrot.lane.b32.xlu0 %v3042, 70
  %v3181 = vpop.permute.xlu0 %3180
  %3182 = vrot.lane.b32.xlu0 %v3044, 70
  %v3183 = vpop.permute.xlu0 %3182
  %3184 = vrot.lane.b32.xlu0 %v3173, 70
  %v3185 = vpop.permute.xlu0 %3184
  %3186 = vrot.lane.b32.xlu0 %v3175, 70
  %v3187 = vpop.permute.xlu0 %3186
  %3188 = vrot.lane.b32.xlu0 %v3174, 70
  %v3189 = vpop.permute.xlu0 %3188
  %v3198 = vrot.slane %v2986, 4
  %v3199 = vsel %vm225, %v3174, %v3198
  %3200 = vrot.lane.b32.xlu0 %v3040, 80
  %v3201 = vpop.permute.xlu0 %3200
  %3202 = vrot.lane.b32.xlu0 %v3042, 80
  %v3203 = vpop.permute.xlu0 %3202
  %3204 = vrot.lane.b32.xlu0 %v3044, 80
  %v3205 = vpop.permute.xlu0 %3204
  %3206 = vrot.lane.b32.xlu0 %v3173, 80
  %v3207 = vpop.permute.xlu0 %3206
  %3208 = vrot.lane.b32.xlu0 %v3175, 80
  %v3209 = vpop.permute.xlu0 %3208
  %3210 = vrot.lane.b32.xlu0 %v3199, 80
  %v3211 = vpop.permute.xlu0 %3210
  %3212 = vrot.lane.b32.xlu0 %v3198, 80
  %v3213 = vpop.permute.xlu0 %3212
  %v3221 = vrot.slane %v2985, 6
  %v3222 = vsel %vm3066, %v3102, %v3221
  %v3223 = vrot.slane %v2986, 6
  %v3224 = vsel %vm3066, %v3221, %v3223
  %3225 = vrot.lane.b32.xlu0 %v3075, 90
  %v3226 = vpop.permute.xlu0 %3225
  %3227 = vrot.lane.b32.xlu0 %v3077, 90
  %v3228 = vpop.permute.xlu0 %3227
  %3229 = vrot.lane.b32.xlu0 %v3079, 90
  %v3230 = vpop.permute.xlu0 %3229
  %3231 = vrot.lane.b32.xlu0 %v3103, 90
  %v3232 = vpop.permute.xlu0 %3231
  %3233 = vrot.lane.b32.xlu0 %v3222, 90
  %v3234 = vpop.permute.xlu0 %3233
  %3235 = vrot.lane.b32.xlu0 %v3224, 90
  %v3236 = vpop.permute.xlu0 %3235
  %3237 = vrot.lane.b32.xlu0 %v3223, 90
  %v3238 = vpop.permute.xlu0 %3237
  %3247 = vrot.lane.b32.xlu0 %v2981, 100
  %v3248 = vpop.permute.xlu0 %3247
  %3249 = vrot.lane.b32.xlu0 %v2982, 100
  %v3250 = vpop.permute.xlu0 %3249
  %3251 = vrot.lane.b32.xlu0 %v2983, 100
  %v3252 = vpop.permute.xlu0 %3251
  %3253 = vrot.lane.b32.xlu0 %v2984, 100
  %v3254 = vpop.permute.xlu0 %3253
  %3255 = vrot.lane.b32.xlu0 %v2985, 100
  %v3256 = vpop.permute.xlu0 %3255
  %3257 = vrot.lane.b32.xlu0 %v2986, 100
  %v3258 = vpop.permute.xlu0 %3257
  %3259 = vrot.lane.b32.xlu0 %v2987, 100
  %v3260 = vpop.permute.xlu0 %3259
  %v3268 = vrot.slane %v2986, 2
  %v3269 = vsel %vm2997, %v3149, %v3268
  %v3270 = vrot.slane %v2987, 2
  %v3271 = vsel %vm2997, %v3268, %v3270
  %3272 = vrot.lane.b32.xlu0 %v3008, 110
  %v3273 = vpop.permute.xlu0 %3272
  %3274 = vrot.lane.b32.xlu0 %v3010, 110
  %v3275 = vpop.permute.xlu0 %3274
  %3276 = vrot.lane.b32.xlu0 %v3148, 110
  %v3277 = vpop.permute.xlu0 %3276
  %3278 = vrot.lane.b32.xlu0 %v3150, 110
  %v3279 = vpop.permute.xlu0 %3278
  %3280 = vrot.lane.b32.xlu0 %v3269, 110
  %v3281 = vpop.permute.xlu0 %3280
  %3282 = vrot.lane.b32.xlu0 %v3271, 110
  %v3283 = vpop.permute.xlu0 %3282
  %3284 = vrot.lane.b32.xlu0 %v3270, 110
  %v3285 = vpop.permute.xlu0 %3284
  %v3294 = vrot.slane %v2988, 2
  %v3295 = vsel %vm2997, %v3270, %v3294
  %3296 = vrot.lane.b32.xlu0 %v3010, 120
  %v3297 = vpop.permute.xlu0 %3296
  %3298 = vrot.lane.b32.xlu0 %v3148, 120
  %v3299 = vpop.permute.xlu0 %3298
  %3300 = vrot.lane.b32.xlu0 %v3150, 120
  %v3301 = vpop.permute.xlu0 %3300
  %3302 = vrot.lane.b32.xlu0 %v3269, 120
  %v3303 = vpop.permute.xlu0 %3302
  %3304 = vrot.lane.b32.xlu0 %v3271, 120
  %v3305 = vpop.permute.xlu0 %3304
  %3306 = vrot.lane.b32.xlu0 %v3295, 120
  %v3307 = vpop.permute.xlu0 %3306
  %3308 = vrot.lane.b32.xlu0 %v3294, 120
  %v3309 = vpop.permute.xlu0 %3308
  %v3317 = vrot.slane %v2987, 4
  %v3318 = vsel %vm225, %v3198, %v3317
  %v3319 = vrot.slane %v2988, 4
  %v3320 = vsel %vm225, %v3317, %v3319
  %3321 = vrot.lane.b32.xlu0 %v3044, 2
  %v3322 = vpop.permute.xlu0 %3321
  %3323 = vrot.lane.b32.xlu0 %v3173, 2
  %v3324 = vpop.permute.xlu0 %3323
  %3325 = vrot.lane.b32.xlu0 %v3175, 2
  %v3326 = vpop.permute.xlu0 %3325
  %3327 = vrot.lane.b32.xlu0 %v3199, 2
  %v3328 = vpop.permute.xlu0 %3327
  %3329 = vrot.lane.b32.xlu0 %v3318, 2
  %v3330 = vpop.permute.xlu0 %3329
  %3331 = vrot.lane.b32.xlu0 %v3320, 2
  %v3332 = vpop.permute.xlu0 %3331
  %3333 = vrot.lane.b32.xlu0 %v3319, 2
  %v3334 = vpop.permute.xlu0 %3333
  %v3342 = vrot.slane %v2987, 6
  %v3343 = vsel %vm3066, %v3223, %v3342
  %v3344 = vrot.slane %v2988, 6
  %v3345 = vsel %vm3066, %v3342, %v3344
  %3346 = vrot.lane.b32.xlu0 %v3079, 12
  %v3347 = vpop.permute.xlu0 %3346
  %3348 = vrot.lane.b32.xlu0 %v3103, 12
  %v3349 = vpop.permute.xlu0 %3348
  %3350 = vrot.lane.b32.xlu0 %v3222, 12
  %v3351 = vpop.permute.xlu0 %3350
  %3352 = vrot.lane.b32.xlu0 %v3224, 12
  %v3353 = vpop.permute.xlu0 %3352
  %3354 = vrot.lane.b32.xlu0 %v3343, 12
  %v3355 = vpop.permute.xlu0 %3354
  %3356 = vrot.lane.b32.xlu0 %v3345, 12
  %v3357 = vpop.permute.xlu0 %3356
  %3358 = vrot.lane.b32.xlu0 %v3344, 12
  %v3359 = vpop.permute.xlu0 %3358
  %3368 = vrot.lane.b32.xlu0 %v2983, 22
  %v3369 = vpop.permute.xlu0 %3368
  %3370 = vrot.lane.b32.xlu0 %v2984, 22
  %v3371 = vpop.permute.xlu0 %3370
  %3372 = vrot.lane.b32.xlu0 %v2985, 22
  %v3373 = vpop.permute.xlu0 %3372
  %3374 = vrot.lane.b32.xlu0 %v2986, 22
  %v3375 = vpop.permute.xlu0 %3374
  %3376 = vrot.lane.b32.xlu0 %v2987, 22
  %v3377 = vpop.permute.xlu0 %3376
  %3378 = vrot.lane.b32.xlu0 %v2988, 22
  %v3379 = vpop.permute.xlu0 %3378
  %3380 = vrot.lane.b32.xlu0 %v2989, 22
  %v3381 = vpop.permute.xlu0 %3380
  %vm3389 = vcmask 80896
  %v3390 = vsel %vm3389, %v2977, %v3012
  %v3391 = vsel %vm3389, %v2978, %v3014
  %v3392 = vsel %vm3389, %v2979, %v3016
  %v3393 = vsel %vm3389, %v2980, %v3018
  %v3394 = vsel %vm3389, %v2981, %v3020
  %v3395 = vsel %vm3389, %v2982, %v3022
  %v3396 = vsel %vm3389, %v2983, %v3024
  %vm3397 = vcmask 162816
  %v3398 = vsel %vm3397, %v3390, %v3046
  %v3399 = vsel %vm3397, %v3391, %v3048
  %v3400 = vsel %vm3397, %v3392, %v3050
  %v3401 = vsel %vm3397, %v3393, %v3052
  %v3402 = vsel %vm3397, %v3394, %v3054
  %v3403 = vsel %vm3397, %v3395, %v3056
  %v3404 = vsel %vm3397, %v3396, %v3058
  %vm3405 = vcmask 244736
  %v3406 = vsel %vm3405, %v3398, %v3081
  %v3407 = vsel %vm3405, %v3399, %v3083
  %v3408 = vsel %vm3405, %v3400, %v3085
  %v3409 = vsel %vm3405, %v3401, %v3087
  %v3410 = vsel %vm3405, %v3402, %v3089
  %v3411 = vsel %vm3405, %v3403, %v3091
  %v3412 = vsel %vm3405, %v3404, %v3093
  %vm3413 = vcmask 326656
  %v3414 = vsel %vm3413, %v3406, %v3105
  %v3415 = vsel %vm3413, %v3407, %v3107
  %v3416 = vsel %vm3413, %v3408, %v3109
  %v3417 = vsel %vm3413, %v3409, %v3111
  %v3418 = vsel %vm3413, %v3410, %v3113
  %v3419 = vsel %vm3413, %v3411, %v3115
  %v3420 = vsel %vm3413, %v3412, %v3117
  %vm3421 = vcmask 408576
  %v3422 = vsel %vm3421, %v3414, %v3127
  %v3423 = vsel %vm3421, %v3415, %v3129
  %v3424 = vsel %vm3421, %v3416, %v3131
  %v3425 = vsel %vm3421, %v3417, %v3133
  %v3426 = vsel %vm3421, %v3418, %v3135
  %v3427 = vsel %vm3421, %v3419, %v3137
  %v3428 = vsel %vm3421, %v3420, %v3139
  %vm3429 = vcmask 490496
  %v3430 = vsel %vm3429, %v3422, %v3152
  %v3431 = vsel %vm3429, %v3423, %v3154
  %v3432 = vsel %vm3429, %v3424, %v3156
  %v3433 = vsel %vm3429, %v3425, %v3158
  %v3434 = vsel %vm3429, %v3426, %v3160
  %v3435 = vsel %vm3429, %v3427, %v3162
  %v3436 = vsel %vm3429, %v3428, %v3164
  %vm3437 = vcmask 572416
  %v3438 = vsel %vm3437, %v3430, %v3177
  %v3439 = vsel %vm3437, %v3431, %v3179
  %v3440 = vsel %vm3437, %v3432, %v3181
  %v3441 = vsel %vm3437, %v3433, %v3183
  %v3442 = vsel %vm3437, %v3434, %v3185
  %v3443 = vsel %vm3437, %v3435, %v3187
  %v3444 = vsel %vm3437, %v3436, %v3189
  %vm3445 = vcmask 654336
  %v3446 = vsel %vm3445, %v3438, %v3201
  %v3447 = vsel %vm3445, %v3439, %v3203
  %v3448 = vsel %vm3445, %v3440, %v3205
  %v3449 = vsel %vm3445, %v3441, %v3207
  %v3450 = vsel %vm3445, %v3442, %v3209
  %v3451 = vsel %vm3445, %v3443, %v3211
  %v3452 = vsel %vm3445, %v3444, %v3213
  %vm3453 = vcmask 736256
  %v3454 = vsel %vm3453, %v3446, %v3226
  %v3455 = vsel %vm3453, %v3447, %v3228
  %v3456 = vsel %vm3453, %v3448, %v3230
  %v3457 = vsel %vm3453, %v3449, %v3232
  %v3458 = vsel %vm3453, %v3450, %v3234
  %v3459 = vsel %vm3453, %v3451, %v3236
  %v3460 = vsel %vm3453, %v3452, %v3238
  %vm3461 = vcmask 818176
  %v3462 = vsel %vm3461, %v3454, %v3248
  %v3463 = vsel %vm3461, %v3455, %v3250
  %v3464 = vsel %vm3461, %v3456, %v3252
  %v3465 = vsel %vm3461, %v3457, %v3254
  %v3466 = vsel %vm3461, %v3458, %v3256
  %v3467 = vsel %vm3461, %v3459, %v3258
  %v3468 = vsel %vm3461, %v3460, %v3260
  %vm3469 = vcmask 900096
  %v3470 = vsel %vm3469, %v3462, %v3273
  %v3471 = vsel %vm3469, %v3463, %v3275
  %v3472 = vsel %vm3469, %v3464, %v3277
  %v3473 = vsel %vm3469, %v3465, %v3279
  %v3474 = vsel %vm3469, %v3466, %v3281
  %v3475 = vsel %vm3469, %v3467, %v3283
  %v3476 = vsel %vm3469, %v3468, %v3285
  %vm3477 = vcmask 982016
  %v3478 = vsel %vm3477, %v3470, %v3297
  %v3479 = vsel %vm3477, %v3471, %v3299
  %v3480 = vsel %vm3477, %v3472, %v3301
  %v3481 = vsel %vm3477, %v3473, %v3303
  %v3482 = vsel %vm3477, %v3474, %v3305
  %v3483 = vsel %vm3477, %v3475, %v3307
  %v3484 = vsel %vm3477, %v3476, %v3309
  %vm3485 = vcmask 15360
  %v3486 = vsel %vm3485, %v3297, %v3322
  %v3487 = vsel %vm3485, %v3299, %v3324
  %v3488 = vsel %vm3485, %v3301, %v3326
  %v3489 = vsel %vm3485, %v3303, %v3328
  %v3490 = vsel %vm3485, %v3305, %v3330
  %v3491 = vsel %vm3485, %v3307, %v3332
  %v3492 = vsel %vm3485, %v3309, %v3334
  %vm3493 = vcmask 97280
  %v3494 = vsel %vm3493, %v3486, %v3347
  %v3495 = vsel %vm3493, %v3487, %v3349
  %v3496 = vsel %vm3493, %v3488, %v3351
  %v3497 = vsel %vm3493, %v3489, %v3353
  %v3498 = vsel %vm3493, %v3490, %v3355
  %v3499 = vsel %vm3493, %v3491, %v3357
  %v3500 = vsel %vm3493, %v3492, %v3359
  %vm3501 = vcmask 179200
  %v3502 = vsel %vm3501, %v3494, %v3369
  %v3503 = vsel %vm3501, %v3495, %v3371
  %v3504 = vsel %vm3501, %v3496, %v3373
  %v3505 = vsel %vm3501, %v3497, %v3375
  %v3506 = vsel %vm3501, %v3498, %v3377
  %v3507 = vsel %vm3501, %v3499, %v3379
  %v3508 = vsel %vm3501, %v3500, %v3381
  %v3509 = vld [vmem:[%s1 + $0x30] sm:$0xff]
  %v3510 = vld [vmem:[%s1 + $0x38] sm:$0xff]
  %v3511 = vld [vmem:[%s1 + $0x40] sm:$0xff]
  %v3512 = vld [vmem:[%s1 + $0x48] sm:$0xff]
  %v3513 = vld [vmem:[%s1 + $0x50] sm:$0xff]
  %v3514 = vld [vmem:[%s1 + $0x58] sm:$0xff]
  %v3515 = vld [vmem:[%s1 + $0x60] sm:$0xff]
  %v3516 = vld [vmem:[%s1 + $0x68] sm:$0xff]
  %v3517 = vld [vmem:[%s1 + $0x70] sm:$0xff]
  %v3518 = vld [vmem:[%s1 + $0x78] sm:$0xff]
  %v3519 = vld [vmem:[%s1 + $0x80] sm:$0xff]
  %v3520 = vld [vmem:[%s1 + $0x88] sm:$0xff]
  %v3521 = vld [vmem:[%s1 + $0x90] sm:$0xff]
  %v3522 = vld [vmem:[%s1 + $0x98] sm:$0xff]
  %v3523 = vld [vmem:[%s1 + $0xa0] sm:$0xff]
  %v3524 = vld [vmem:[%s1 + $0xa8] sm:$0xff]
  %v3525 = vld [vmem:[%s1 + $0xb0] sm:$0xff]
  %v3526 = vld [vmem:[%s1 + $0xb8] sm:$0xff]
  %v3527 = vld [vmem:[%s1 + $0xc0] sm:$0xff]
  %v3528 = vld [vmem:[%s1 + $0xc8] sm:$0xff]
  %vm3529 = vcmask 261120
  %v3531 = vsel %vm3529, %v3502, 0
  %v3534 = vsel %vm3529, %v3503, 0
  %v3537 = vsel %vm3529, %v3504, 0
  %v3540 = vsel %vm3529, %v3505, 0
  %v3543 = vsel %vm3529, %v3506, 0
  %v3546 = vsel %vm3529, %v3507, 0
  %v3549 = vsel %vm3529, %v3508, 0
  %3551 = vmatprep.subr.mxu0 0.0
  %v3552 = vand.u32 %v3509, 4294901760
  %3553 = vmatpush1.msra.mxu0 %v3552
  %3554 = vmatprep.subr.mxu0 0.0
  %v3555 = vand.u32 %v3510, 4294901760
  %3556 = vmatpush1.msra.mxu0 %v3555
  %3557 = vmatprep.subr.mxu0 0.0
  %v3558 = vand.u32 %v3511, 4294901760
  %3559 = vmatpush1.msra.mxu0 %v3558
  %3560 = vmatprep.subr.mxu0 0.0
  %v3561 = vand.u32 %v3512, 4294901760
  %3562 = vmatpush1.msra.mxu0 %v3561
  %3563 = vmatprep.subr.mxu0 0.0
  %v3564 = vand.u32 %v3513, 4294901760
  %3565 = vmatpush1.msra.mxu0 %v3564
  %3566 = vmatprep.subr.mxu0 0.0
  %v3567 = vand.u32 %v3514, 4294901760
  %3568 = vmatpush1.msra.mxu0 %v3567
  %3569 = vmatprep.subr.mxu0 0.0
  %v3570 = vand.u32 %v3515, 4294901760
  %3571 = vmatpush1.msra.mxu0 %v3570
  %3572 = vmatprep.subr.mxu0 0.0
  %v3573 = vand.u32 %v3516, 4294901760
  %3574 = vmatpush1.msra.mxu0 %v3573
  %3575 = vmatprep.subr.mxu0 0.0
  %v3576 = vand.u32 %v3517, 4294901760
  %3577 = vmatpush1.msra.mxu0 %v3576
  %3578 = vmatprep.subr.mxu0 0.0
  %v3579 = vand.u32 %v3518, 4294901760
  %3580 = vmatpush1.msra.mxu0 %v3579
  %3581 = vmatprep.subr.mxu0 0.0
  %v3582 = vand.u32 %v3519, 4294901760
  %3583 = vmatpush1.msra.mxu0 %v3582
  %3584 = vmatprep.subr.mxu0 0.0
  %v3585 = vand.u32 %v3520, 4294901760
  %3586 = vmatpush1.msra.mxu0 %v3585
  %3587 = vmatprep.subr.mxu0 0.0
  %v3588 = vand.u32 %v3521, 4294901760
  %3589 = vmatpush1.msra.mxu0 %v3588
  %3590 = vmatprep.subr.mxu0 0.0
  %v3591 = vand.u32 %v3522, 4294901760
  %3592 = vmatpush1.msra.mxu0 %v3591
  %3593 = vmatprep.subr.mxu0 0.0
  %v3594 = vand.u32 %v3523, 4294901760
  %3595 = vmatpush1.msra.mxu0 %v3594
  %3596 = vmatprep.subr.mxu0 0.0
  %v3597 = vand.u32 %v3524, 4294901760
  %3598 = vmatpush1.msra.mxu0 %v3597
  %3599 = vmatprep.subr.mxu0 0.0
  %v3600 = vand.u32 %v3525, 4294901760
  %3601 = vmatpush1.msra.mxu0 %v3600
  %3602 = vmatprep.subr.mxu0 0.0
  %v3603 = vand.u32 %v3526, 4294901760
  %3604 = vmatpush1.msra.mxu0 %v3603
  %3605 = vmatprep.subr.mxu0 0.0
  %v3606 = vand.u32 %v3527, 4294901760
  %3607 = vmatpush1.msra.mxu0 %v3606
  %3608 = vmatprep.subr.mxu0 0.0
  %v3609 = vand.u32 %v3528, 4294901760
  %3610 = vmatpush1.msra.mxu0 %v3609
  %3611 = vmatprep.subr.mxu0 0.0
  %3612 = vmatpush1.msra.mxu0 0.0
  %3613 = vmatprep.subr.mxu0 0.0
  %3614 = vmatpush1.msra.mxu0 0.0
  %3615 = vmatprep.subr.mxu0 0.0
  %3616 = vmatpush1.msra.mxu0 0.0
  %3617 = vmatprep.subr.mxu0 0.0
  %3618 = vmatpush1.msra.mxu0 0.0
  %3619 = vmatprep.subr.mxu0 0.0
  %3620 = vmatpush1.msra.mxu0 0.0
  %3621 = vmatprep.subr.mxu0 0.0
  %3622 = vmatpush1.msra.mxu0 0.0
  %3623 = vmatprep.subr.mxu0 0.0
  %3624 = vmatpush1.msra.mxu0 0.0
  %3625 = vmatprep.subr.mxu0 0.0
  %3626 = vmatpush1.msra.mxu0 0.0
  %3627 = vmatprep.subr.mxu0 0.0
  %3628 = vmatpush1.msra.mxu0 0.0
  %3629 = vmatprep.subr.mxu0 0.0
  %3630 = vmatpush1.msra.mxu0 0.0
  %3631 = vmatprep.subr.mxu0 0.0
  %3632 = vmatpush1.msra.mxu0 0.0
  %3633 = vmatprep.subr.mxu0 0.0
  %3634 = vmatpush1.msra.mxu0 0.0
  %v3635 = vand.u32 %v3531, 4294901760
  %v3636 = vsub.f32 %v3531, %v3635
  %v3637 = vand.u32 %v3636, 4294901760
  %v3638 = vsub.f32 %v3636, %v3637
  %v3639 = vand.u32 %v3638, 4294901760
  %3640 = vmatprep.mubr.f32.mxu0 %v3639
  %v3641 = vand.u32 %v3478, 4294901760
  %v3642 = vsub.f32 %v3478, %v3641
  %v3643 = vand.u32 %v3642, 4294901760
  %v3644 = vsub.f32 %v3642, %v3643
  %v3645 = vand.u32 %v3644, 4294901760
  %3646 = vmatmul.mubr.f32.gmra.mrb[0].mxu0 %v3645
  %v3647 = vpop.f32.mrb[0].mxu0
  %v3648 = vadd.f32 0.0, %v3647
  %v3649 = vpop.f32.mrb[0].mxu0
  %v3650 = vand.u32 %v3534, 4294901760
  %v3651 = vsub.f32 %v3534, %v3650
  %v3652 = vand.u32 %v3651, 4294901760
  %v3653 = vsub.f32 %v3651, %v3652
  %v3654 = vand.u32 %v3653, 4294901760
  %3655 = vmatprep.mubr.f32.mxu0 %v3654
  %v3656 = vand.u32 %v3479, 4294901760
  %v3657 = vsub.f32 %v3479, %v3656
  %v3658 = vand.u32 %v3657, 4294901760
  %v3659 = vsub.f32 %v3657, %v3658
  %v3660 = vand.u32 %v3659, 4294901760
  %3661 = vmatmul.mubr.f32.gmra.mrb[0].mxu0 %v3660
  %v3662 = vpop.f32.mrb[0].mxu0
  %v3663 = vadd.f32 0.0, %v3662
  %v3664 = vpop.f32.mrb[0].mxu0
  %v3665 = vand.u32 %v3537, 4294901760
  %v3666 = vsub.f32 %v3537, %v3665
  %v3667 = vand.u32 %v3666, 4294901760
  %v3668 = vsub.f32 %v3666, %v3667
  %v3669 = vand.u32 %v3668, 4294901760
  %3670 = vmatprep.mubr.f32.mxu0 %v3669
  %v3671 = vand.u32 %v3480, 4294901760
  %v3672 = vsub.f32 %v3480, %v3671
  %v3673 = vand.u32 %v3672, 4294901760
  %v3674 = vsub.f32 %v3672, %v3673
  %v3675 = vand.u32 %v3674, 4294901760
  %3676 = vmatmul.mubr.f32.gmra.mrb[0].mxu0 %v3675
  %v3677 = vpop.f32.mrb[0].mxu0
  %v3678 = vadd.f32 0.0, %v3677
  %v3679 = vpop.f32.mrb[0].mxu0
  %v3680 = vand.u32 %v3540, 4294901760
  %v3681 = vsub.f32 %v3540, %v3680
  %v3682 = vand.u32 %v3681, 4294901760
  %v3683 = vsub.f32 %v3681, %v3682
  %v3684 = vand.u32 %v3683, 4294901760
  %3685 = vmatprep.mubr.f32.mxu0 %v3684
  %v3686 = vand.u32 %v3481, 4294901760
  %v3687 = vsub.f32 %v3481, %v3686
  %v3688 = vand.u32 %v3687, 4294901760
  %v3689 = vsub.f32 %v3687, %v3688
  %v3690 = vand.u32 %v3689, 4294901760
  %3691 = vmatmul.mubr.f32.gmra.mrb[0].mxu0 %v3690
  %v3692 = vpop.f32.mrb[0].mxu0
  %v3693 = vadd.f32 0.0, %v3692
  %v3694 = vpop.f32.mrb[0].mxu0
  %v3695 = vand.u32 %v3543, 4294901760
  %v3696 = vsub.f32 %v3543, %v3695
  %v3697 = vand.u32 %v3696, 4294901760
  %v3698 = vsub.f32 %v3696, %v3697
  %v3699 = vand.u32 %v3698, 4294901760
  %3700 = vmatprep.mubr.f32.mxu0 %v3699
  %v3701 = vand.u32 %v3482, 4294901760
  %v3702 = vsub.f32 %v3482, %v3701
  %v3703 = vand.u32 %v3702, 4294901760
  %v3704 = vsub.f32 %v3702, %v3703
  %v3705 = vand.u32 %v3704, 4294901760
  %3706 = vmatmul.mubr.f32.gmra.mrb[0].mxu0 %v3705
  %v3707 = vpop.f32.mrb[0].mxu0
  %v3708 = vadd.f32 0.0, %v3707
  %v3709 = vpop.f32.mrb[0].mxu0
  %v3710 = vand.u32 %v3546, 4294901760
  %v3711 = vsub.f32 %v3546, %v3710
  %v3712 = vand.u32 %v3711, 4294901760
  %v3713 = vsub.f32 %v3711, %v3712
  %v3714 = vand.u32 %v3713, 4294901760
  %3715 = vmatprep.mubr.f32.mxu0 %v3714
  %v3716 = vand.u32 %v3483, 4294901760
  %v3717 = vsub.f32 %v3483, %v3716
  %v3718 = vand.u32 %v3717, 4294901760
  %v3719 = vsub.f32 %v3717, %v3718
  %v3720 = vand.u32 %v3719, 4294901760
  %3721 = vmatmul.mubr.f32.gmra.mrb[0].mxu0 %v3720
  %v3722 = vpop.f32.mrb[0].mxu0
  %v3723 = vadd.f32 0.0, %v3722
  %v3724 = vpop.f32.mrb[0].mxu0
  %v3725 = vand.u32 %v3549, 4294901760
  %v3726 = vsub.f32 %v3549, %v3725
  %v3727 = vand.u32 %v3726, 4294901760
  %v3728 = vsub.f32 %v3726, %v3727
  %v3729 = vand.u32 %v3728, 4294901760
  %3730 = vmatprep.mubr.f32.mxu0 %v3729
  %v3731 = vand.u32 %v3484, 4294901760
  %v3732 = vsub.f32 %v3484, %v3731
  %v3733 = vand.u32 %v3732, 4294901760
  %v3734 = vsub.f32 %v3732, %v3733
  %v3735 = vand.u32 %v3734, 4294901760
  %3736 = vmatmul.mubr.f32.gmra.mrb[0].mxu0 %v3735
  %v3737 = vpop.f32.mrb[0].mxu0
  %v3738 = vadd.f32 0.0, %v3737
  %v3739 = vpop.f32.mrb[0].mxu0
  %3740 = vdwg.mxu0
  %3741 = vmatprep.subr.mxu0 0.0
  %v3742 = vand.u32 %v3509, 4294901760
  %v3743 = vsub.f32 %v3509, %v3742
  %v3744 = vand.u32 %v3743, 4294901760
  %v3745 = vsub.f32 %v3743, %v3744
  %v3746 = vand.u32 %v3745, 4294901760
  %3747 = vmatpush1.msra.mxu0 %v3746
  %3748 = vmatprep.subr.mxu0 0.0
  %v3749 = vand.u32 %v3510, 4294901760
  %v3750 = vsub.f32 %v3510, %v3749
  %v3751 = vand.u32 %v3750, 4294901760
  %v3752 = vsub.f32 %v3750, %v3751
  %v3753 = vand.u32 %v3752, 4294901760
  %3754 = vmatpush1.msra.mxu0 %v3753
  %3755 = vmatprep.subr.mxu0 0.0
  %v3756 = vand.u32 %v3511, 4294901760
  %v3757 = vsub.f32 %v3511, %v3756
  %v3758 = vand.u32 %v3757, 4294901760
  %v3759 = vsub.f32 %v3757, %v3758
  %v3760 = vand.u32 %v3759, 4294901760
  %3761 = vmatpush1.msra.mxu0 %v3760
  %3762 = vmatprep.subr.mxu0 0.0
  %v3763 = vand.u32 %v3512, 4294901760
  %v3764 = vsub.f32 %v3512, %v3763
  %v3765 = vand.u32 %v3764, 4294901760
  %v3766 = vsub.f32 %v3764, %v3765
  %v3767 = vand.u32 %v3766, 4294901760
  %3768 = vmatpush1.msra.mxu0 %v3767
  %3769 = vmatprep.subr.mxu0 0.0
  %v3770 = vand.u32 %v3513, 4294901760
  %v3771 = vsub.f32 %v3513, %v3770
  %v3772 = vand.u32 %v3771, 4294901760
  %v3773 = vsub.f32 %v3771, %v3772
  %v3774 = vand.u32 %v3773, 4294901760
  %3775 = vmatpush1.msra.mxu0 %v3774
  %3776 = vmatprep.subr.mxu0 0.0
  %v3777 = vand.u32 %v3514, 4294901760
  %v3778 = vsub.f32 %v3514, %v3777
  %v3779 = vand.u32 %v3778, 4294901760
  %v3780 = vsub.f32 %v3778, %v3779
  %v3781 = vand.u32 %v3780, 4294901760
  %3782 = vmatpush1.msra.mxu0 %v3781
  %3783 = vmatprep.subr.mxu0 0.0
  %v3784 = vand.u32 %v3515, 4294901760
  %v3785 = vsub.f32 %v3515, %v3784
  %v3786 = vand.u32 %v3785, 4294901760
  %v3787 = vsub.f32 %v3785, %v3786
  %v3788 = vand.u32 %v3787, 4294901760
  %3789 = vmatpush1.msra.mxu0 %v3788
  %3790 = vmatprep.subr.mxu0 0.0
  %v3791 = vand.u32 %v3516, 4294901760
  %v3792 = vsub.f32 %v3516, %v3791
  %v3793 = vand.u32 %v3792, 4294901760
  %v3794 = vsub.f32 %v3792, %v3793
  %v3795 = vand.u32 %v3794, 4294901760
  %3796 = vmatpush1.msra.mxu0 %v3795
  %3797 = vmatprep.subr.mxu0 0.0
  %v3798 = vand.u32 %v3517, 4294901760
  %v3799 = vsub.f32 %v3517, %v3798
  %v3800 = vand.u32 %v3799, 4294901760
  %v3801 = vsub.f32 %v3799, %v3800
  %v3802 = vand.u32 %v3801, 4294901760
  %3803 = vmatpush1.msra.mxu0 %v3802
  %3804 = vmatprep.subr.mxu0 0.0
  %v3805 = vand.u32 %v3518, 4294901760
  %v3806 = vsub.f32 %v3518, %v3805
  %v3807 = vand.u32 %v3806, 4294901760
  %v3808 = vsub.f32 %v3806, %v3807
  %v3809 = vand.u32 %v3808, 4294901760
  %3810 = vmatpush1.msra.mxu0 %v3809
  %3811 = vmatprep.subr.mxu0 0.0
  %v3812 = vand.u32 %v3519, 4294901760
  %v3813 = vsub.f32 %v3519, %v3812
  %v3814 = vand.u32 %v3813, 4294901760
  %v3815 = vsub.f32 %v3813, %v3814
  %v3816 = vand.u32 %v3815, 4294901760
  %3817 = vmatpush1.msra.mxu0 %v3816
  %3818 = vmatprep.subr.mxu0 0.0
  %v3819 = vand.u32 %v3520, 4294901760
  %v3820 = vsub.f32 %v3520, %v3819
  %v3821 = vand.u32 %v3820, 4294901760
  %v3822 = vsub.f32 %v3820, %v3821
  %v3823 = vand.u32 %v3822, 4294901760
  %3824 = vmatpush1.msra.mxu0 %v3823
  %3825 = vmatprep.subr.mxu0 0.0
  %v3826 = vand.u32 %v3521, 4294901760
  %v3827 = vsub.f32 %v3521, %v3826
  %v3828 = vand.u32 %v3827, 4294901760
  %v3829 = vsub.f32 %v3827, %v3828
  %v3830 = vand.u32 %v3829, 4294901760
  %3831 = vmatpush1.msra.mxu0 %v3830
  %3832 = vmatprep.subr.mxu0 0.0
  %v3833 = vand.u32 %v3522, 4294901760
  %v3834 = vsub.f32 %v3522, %v3833
  %v3835 = vand.u32 %v3834, 4294901760
  %v3836 = vsub.f32 %v3834, %v3835
  %v3837 = vand.u32 %v3836, 4294901760
  %3838 = vmatpush1.msra.mxu0 %v3837
  %3839 = vmatprep.subr.mxu0 0.0
  %v3840 = vand.u32 %v3523, 4294901760
  %v3841 = vsub.f32 %v3523, %v3840
  %v3842 = vand.u32 %v3841, 4294901760
  %v3843 = vsub.f32 %v3841, %v3842
  %v3844 = vand.u32 %v3843, 4294901760
  %3845 = vmatpush1.msra.mxu0 %v3844
  %3846 = vmatprep.subr.mxu0 0.0
  %v3847 = vand.u32 %v3524, 4294901760
  %v3848 = vsub.f32 %v3524, %v3847
  %v3849 = vand.u32 %v3848, 4294901760
  %v3850 = vsub.f32 %v3848, %v3849
  %v3851 = vand.u32 %v3850, 4294901760
  %3852 = vmatpush1.msra.mxu0 %v3851
  %3853 = vmatprep.subr.mxu0 0.0
  %v3854 = vand.u32 %v3525, 4294901760
  %v3855 = vsub.f32 %v3525, %v3854
  %v3856 = vand.u32 %v3855, 4294901760
  %v3857 = vsub.f32 %v3855, %v3856
  %v3858 = vand.u32 %v3857, 4294901760
  %3859 = vmatpush1.msra.mxu0 %v3858
  %3860 = vmatprep.subr.mxu0 0.0
  %v3861 = vand.u32 %v3526, 4294901760
  %v3862 = vsub.f32 %v3526, %v3861
  %v3863 = vand.u32 %v3862, 4294901760
  %v3864 = vsub.f32 %v3862, %v3863
  %v3865 = vand.u32 %v3864, 4294901760
  %3866 = vmatpush1.msra.mxu0 %v3865
  %3867 = vmatprep.subr.mxu0 0.0
  %v3868 = vand.u32 %v3527, 4294901760
  %v3869 = vsub.f32 %v3527, %v3868
  %v3870 = vand.u32 %v3869, 4294901760
  %v3871 = vsub.f32 %v3869, %v3870
  %v3872 = vand.u32 %v3871, 4294901760
  %3873 = vmatpush1.msra.mxu0 %v3872
  %3874 = vmatprep.subr.mxu0 0.0
  %v3875 = vand.u32 %v3528, 4294901760
  %v3876 = vsub.f32 %v3528, %v3875
  %v3877 = vand.u32 %v3876, 4294901760
  %v3878 = vsub.f32 %v3876, %v3877
  %v3879 = vand.u32 %v3878, 4294901760
  %3880 = vmatpush1.msra.mxu0 %v3879
  %3881 = vmatprep.subr.mxu0 0.0
  %3882 = vmatpush1.msra.mxu0 0.0
  %3883 = vmatprep.subr.mxu0 0.0
  %3884 = vmatpush1.msra.mxu0 0.0
  %3885 = vmatprep.subr.mxu0 0.0
  %3886 = vmatpush1.msra.mxu0 0.0
  %3887 = vmatprep.subr.mxu0 0.0
  %3888 = vmatpush1.msra.mxu0 0.0
  %3889 = vmatprep.subr.mxu0 0.0
  %3890 = vmatpush1.msra.mxu0 0.0
  %3891 = vmatprep.subr.mxu0 0.0
  %3892 = vmatpush1.msra.mxu0 0.0
  %3893 = vmatprep.subr.mxu0 0.0
  %3894 = vmatpush1.msra.mxu0 0.0
  %3895 = vmatprep.subr.mxu0 0.0
  %3896 = vmatpush1.msra.mxu0 0.0
  %3897 = vmatprep.subr.mxu0 0.0
  %3898 = vmatpush1.msra.mxu0 0.0
  %3899 = vmatprep.subr.mxu0 0.0
  %3900 = vmatpush1.msra.mxu0 0.0
  %3901 = vmatprep.subr.mxu0 0.0
  %3902 = vmatpush1.msra.mxu0 0.0
  %3903 = vmatprep.subr.mxu0 0.0
  %3904 = vmatpush1.msra.mxu0 0.0
  %v3905 = vand.u32 %v3531, 4294901760
  %3906 = vmatprep.mubr.f32.mxu0 %v3905
  %v3907 = vand.u32 %v3478, 4294901760
  %3908 = vmatmul.mubr.f32.gmra.mrb[0].mxu0 %v3907
  %v3909 = vpop.f32.mrb[0].mxu0
  %v3910 = vadd.f32 %v3648, %v3909
  %v3911 = vpop.f32.mrb[0].mxu0
  %v3912 = vand.u32 %v3534, 4294901760
  %3913 = vmatprep.mubr.f32.mxu0 %v3912
  %v3914 = vand.u32 %v3479, 4294901760
  %3915 = vmatmul.mubr.f32.gmra.mrb[0].mxu0 %v3914
  %v3916 = vpop.f32.mrb[0].mxu0
  %v3917 = vadd.f32 %v3663, %v3916
  %v3918 = vpop.f32.mrb[0].mxu0
  %v3919 = vand.u32 %v3537, 4294901760
  %3920 = vmatprep.mubr.f32.mxu0 %v3919
  %v3921 = vand.u32 %v3480, 4294901760
  %3922 = vmatmul.mubr.f32.gmra.mrb[0].mxu0 %v3921
  %v3923 = vpop.f32.mrb[0].mxu0
  %v3924 = vadd.f32 %v3678, %v3923
  %v3925 = vpop.f32.mrb[0].mxu0
  %v3926 = vand.u32 %v3540, 4294901760
  %3927 = vmatprep.mubr.f32.mxu0 %v3926
  %v3928 = vand.u32 %v3481, 4294901760
  %3929 = vmatmul.mubr.f32.gmra.mrb[0].mxu0 %v3928
  %v3930 = vpop.f32.mrb[0].mxu0
  %v3931 = vadd.f32 %v3693, %v3930
  %v3932 = vpop.f32.mrb[0].mxu0
  %v3933 = vand.u32 %v3543, 4294901760
  %3934 = vmatprep.mubr.f32.mxu0 %v3933
  %v3935 = vand.u32 %v3482, 4294901760
  %3936 = vmatmul.mubr.f32.gmra.mrb[0].mxu0 %v3935
  %v3937 = vpop.f32.mrb[0].mxu0
  %v3938 = vadd.f32 %v3708, %v3937
  %v3939 = vpop.f32.mrb[0].mxu0
  %v3940 = vand.u32 %v3546, 4294901760
  %3941 = vmatprep.mubr.f32.mxu0 %v3940
  %v3942 = vand.u32 %v3483, 4294901760
  %3943 = vmatmul.mubr.f32.gmra.mrb[0].mxu0 %v3942
  %v3944 = vpop.f32.mrb[0].mxu0
  %v3945 = vadd.f32 %v3723, %v3944
  %v3946 = vpop.f32.mrb[0].mxu0
  %v3947 = vand.u32 %v3549, 4294901760
  %3948 = vmatprep.mubr.f32.mxu0 %v3947
  %v3949 = vand.u32 %v3484, 4294901760
  %3950 = vmatmul.mubr.f32.gmra.mrb[0].mxu0 %v3949
  %v3951 = vpop.f32.mrb[0].mxu0
  %v3952 = vadd.f32 %v3738, %v3951
  %v3953 = vpop.f32.mrb[0].mxu0
  %3954 = vdwg.mxu0
  %3955 = vmatprep.subr.mxu0 0.0
  %v3956 = vand.u32 %v3509, 4294901760
  %v3957 = vsub.f32 %v3509, %v3956
  %3958 = vmatpush1.msra.mxu0 %v3957
  %3959 = vmatprep.subr.mxu0 0.0
  %v3960 = vand.u32 %v3510, 4294901760
  %v3961 = vsub.f32 %v3510, %v3960
  %3962 = vmatpush1.msra.mxu0 %v3961
  %3963 = vmatprep.subr.mxu0 0.0
  %v3964 = vand.u32 %v3511, 4294901760
  %v3965 = vsub.f32 %v3511, %v3964
  %3966 = vmatpush1.msra.mxu0 %v3965
  %3967 = vmatprep.subr.mxu0 0.0
  %v3968 = vand.u32 %v3512, 4294901760
  %v3969 = vsub.f32 %v3512, %v3968
  %3970 = vmatpush1.msra.mxu0 %v3969
  %3971 = vmatprep.subr.mxu0 0.0
  %v3972 = vand.u32 %v3513, 4294901760
  %v3973 = vsub.f32 %v3513, %v3972
  %3974 = vmatpush1.msra.mxu0 %v3973
  %3975 = vmatprep.subr.mxu0 0.0
  %v3976 = vand.u32 %v3514, 4294901760
  %v3977 = vsub.f32 %v3514, %v3976
  %3978 = vmatpush1.msra.mxu0 %v3977
  %3979 = vmatprep.subr.mxu0 0.0
  %v3980 = vand.u32 %v3515, 4294901760
  %v3981 = vsub.f32 %v3515, %v3980
  %3982 = vmatpush1.msra.mxu0 %v3981
  %3983 = vmatprep.subr.mxu0 0.0
  %v3984 = vand.u32 %v3516, 4294901760
  %v3985 = vsub.f32 %v3516, %v3984
  %3986 = vmatpush1.msra.mxu0 %v3985
  %3987 = vmatprep.subr.mxu0 0.0
  %v3988 = vand.u32 %v3517, 4294901760
  %v3989 = vsub.f32 %v3517, %v3988
  %3990 = vmatpush1.msra.mxu0 %v3989
  %3991 = vmatprep.subr.mxu0 0.0
  %v3992 = vand.u32 %v3518, 4294901760
  %v3993 = vsub.f32 %v3518, %v3992
  %3994 = vmatpush1.msra.mxu0 %v3993
  %3995 = vmatprep.subr.mxu0 0.0
  %v3996 = vand.u32 %v3519, 4294901760
  %v3997 = vsub.f32 %v3519, %v3996
  %3998 = vmatpush1.msra.mxu0 %v3997
  %3999 = vmatprep.subr.mxu0 0.0
  %v4000 = vand.u32 %v3520, 4294901760
  %v4001 = vsub.f32 %v3520, %v4000
  %4002 = vmatpush1.msra.mxu0 %v4001
  %4003 = vmatprep.subr.mxu0 0.0
  %v4004 = vand.u32 %v3521, 4294901760
  %v4005 = vsub.f32 %v3521, %v4004
  %4006 = vmatpush1.msra.mxu0 %v4005
  %4007 = vmatprep.subr.mxu0 0.0
  %v4008 = vand.u32 %v3522, 4294901760
  %v4009 = vsub.f32 %v3522, %v4008
  %4010 = vmatpush1.msra.mxu0 %v4009
  %4011 = vmatprep.subr.mxu0 0.0
  %v4012 = vand.u32 %v3523, 4294901760
  %v4013 = vsub.f32 %v3523, %v4012
  %4014 = vmatpush1.msra.mxu0 %v4013
  %4015 = vmatprep.subr.mxu0 0.0
  %v4016 = vand.u32 %v3524, 4294901760
  %v4017 = vsub.f32 %v3524, %v4016
  %4018 = vmatpush1.msra.mxu0 %v4017
  %4019 = vmatprep.subr.mxu0 0.0
  %v4020 = vand.u32 %v3525, 4294901760
  %v4021 = vsub.f32 %v3525, %v4020
  %4022 = vmatpush1.msra.mxu0 %v4021
  %4023 = vmatprep.subr.mxu0 0.0
  %v4024 = vand.u32 %v3526, 4294901760
  %v4025 = vsub.f32 %v3526, %v4024
  %4026 = vmatpush1.msra.mxu0 %v4025
  %4027 = vmatprep.subr.mxu0 0.0
  %v4028 = vand.u32 %v3527, 4294901760
  %v4029 = vsub.f32 %v3527, %v4028
  %4030 = vmatpush1.msra.mxu0 %v4029
  %4031 = vmatprep.subr.mxu0 0.0
  %v4032 = vand.u32 %v3528, 4294901760
  %v4033 = vsub.f32 %v3528, %v4032
  %4034 = vmatpush1.msra.mxu0 %v4033
  %4035 = vmatprep.subr.mxu0 0.0
  %4036 = vmatpush1.msra.mxu0 0.0
  %4037 = vmatprep.subr.mxu0 0.0
  %4038 = vmatpush1.msra.mxu0 0.0
  %4039 = vmatprep.subr.mxu0 0.0
  %4040 = vmatpush1.msra.mxu0 0.0
  %4041 = vmatprep.subr.mxu0 0.0
  %4042 = vmatpush1.msra.mxu0 0.0
  %4043 = vmatprep.subr.mxu0 0.0
  %4044 = vmatpush1.msra.mxu0 0.0
  %4045 = vmatprep.subr.mxu0 0.0
  %4046 = vmatpush1.msra.mxu0 0.0
  %4047 = vmatprep.subr.mxu0 0.0
  %4048 = vmatpush1.msra.mxu0 0.0
  %4049 = vmatprep.subr.mxu0 0.0
  %4050 = vmatpush1.msra.mxu0 0.0
  %4051 = vmatprep.subr.mxu0 0.0
  %4052 = vmatpush1.msra.mxu0 0.0
  %4053 = vmatprep.subr.mxu0 0.0
  %4054 = vmatpush1.msra.mxu0 0.0
  %4055 = vmatprep.subr.mxu0 0.0
  %4056 = vmatpush1.msra.mxu0 0.0
  %4057 = vmatprep.subr.mxu0 0.0
  %4058 = vmatpush1.msra.mxu0 0.0
  %v4059 = vand.u32 %v3531, 4294901760
  %v4060 = vsub.f32 %v3531, %v4059
  %4061 = vmatprep.mubr.f32.mxu0 %v4060
  %v4062 = vand.u32 %v3478, 4294901760
  %v4063 = vsub.f32 %v3478, %v4062
  %4064 = vmatmul.mubr.f32.gmra.mrb[0].mxu0 %v4063
  %v4065 = vpop.f32.mrb[0].mxu0
  %v4066 = vadd.f32 %v3910, %v4065
  %v4067 = vpop.f32.mrb[0].mxu0
  %v4068 = vand.u32 %v3534, 4294901760
  %v4069 = vsub.f32 %v3534, %v4068
  %4070 = vmatprep.mubr.f32.mxu0 %v4069
  %v4071 = vand.u32 %v3479, 4294901760
  %v4072 = vsub.f32 %v3479, %v4071
  %4073 = vmatmul.mubr.f32.gmra.mrb[0].mxu0 %v4072
  %v4074 = vpop.f32.mrb[0].mxu0
  %v4075 = vadd.f32 %v3917, %v4074
  %v4076 = vpop.f32.mrb[0].mxu0
  %v4077 = vand.u32 %v3537, 4294901760
  %v4078 = vsub.f32 %v3537, %v4077
  %4079 = vmatprep.mubr.f32.mxu0 %v4078
  %v4080 = vand.u32 %v3480, 4294901760
  %v4081 = vsub.f32 %v3480, %v4080
  %4082 = vmatmul.mubr.f32.gmra.mrb[0].mxu0 %v4081
  %v4083 = vpop.f32.mrb[0].mxu0
  %v4084 = vadd.f32 %v3924, %v4083
  %v4085 = vpop.f32.mrb[0].mxu0
  %v4086 = vand.u32 %v3540, 4294901760
  %v4087 = vsub.f32 %v3540, %v4086
  %4088 = vmatprep.mubr.f32.mxu0 %v4087
  %v4089 = vand.u32 %v3481, 4294901760
  %v4090 = vsub.f32 %v3481, %v4089
  %4091 = vmatmul.mubr.f32.gmra.mrb[0].mxu0 %v4090
  %v4092 = vpop.f32.mrb[0].mxu0
  %v4093 = vadd.f32 %v3931, %v4092
  %v4094 = vpop.f32.mrb[0].mxu0
  %v4095 = vand.u32 %v3543, 4294901760
  %v4096 = vsub.f32 %v3543, %v4095
  %4097 = vmatprep.mubr.f32.mxu0 %v4096
  %v4098 = vand.u32 %v3482, 4294901760
  %v4099 = vsub.f32 %v3482, %v4098
  %4100 = vmatmul.mubr.f32.gmra.mrb[0].mxu0 %v4099
  %v4101 = vpop.f32.mrb[0].mxu0
  %v4102 = vadd.f32 %v3938, %v4101
  %v4103 = vpop.f32.mrb[0].mxu0
  %v4104 = vand.u32 %v3546, 4294901760
  %v4105 = vsub.f32 %v3546, %v4104
  %4106 = vmatprep.mubr.f32.mxu0 %v4105
  %v4107 = vand.u32 %v3483, 4294901760
  %v4108 = vsub.f32 %v3483, %v4107
  %4109 = vmatmul.mubr.f32.gmra.mrb[0].mxu0 %v4108
  %v4110 = vpop.f32.mrb[0].mxu0
  %v4111 = vadd.f32 %v3945, %v4110
  %v4112 = vpop.f32.mrb[0].mxu0
  %v4113 = vand.u32 %v3549, 4294901760
  %v4114 = vsub.f32 %v3549, %v4113
  %4115 = vmatprep.mubr.f32.mxu0 %v4114
  %v4116 = vand.u32 %v3484, 4294901760
  %v4117 = vsub.f32 %v3484, %v4116
  %4118 = vmatmul.mubr.f32.gmra.mrb[0].mxu0 %v4117
  %v4119 = vpop.f32.mrb[0].mxu0
  %v4120 = vadd.f32 %v3952, %v4119
  %v4121 = vpop.f32.mrb[0].mxu0
  %4122 = vdwg.mxu0
  %4123 = vmatprep.subr.mxu0 0.0
  %v4124 = vand.u32 %v3509, 4294901760
  %4125 = vmatpush1.msra.mxu0 %v4124
  %4126 = vmatprep.subr.mxu0 0.0
  %v4127 = vand.u32 %v3510, 4294901760
  %4128 = vmatpush1.msra.mxu0 %v4127
  %4129 = vmatprep.subr.mxu0 0.0
  %v4130 = vand.u32 %v3511, 4294901760
  %4131 = vmatpush1.msra.mxu0 %v4130
  %4132 = vmatprep.subr.mxu0 0.0
  %v4133 = vand.u32 %v3512, 4294901760
  %4134 = vmatpush1.msra.mxu0 %v4133
  %4135 = vmatprep.subr.mxu0 0.0
  %v4136 = vand.u32 %v3513, 4294901760
  %4137 = vmatpush1.msra.mxu0 %v4136
  %4138 = vmatprep.subr.mxu0 0.0
  %v4139 = vand.u32 %v3514, 4294901760
  %4140 = vmatpush1.msra.mxu0 %v4139
  %4141 = vmatprep.subr.mxu0 0.0
  %v4142 = vand.u32 %v3515, 4294901760
  %4143 = vmatpush1.msra.mxu0 %v4142
  %4144 = vmatprep.subr.mxu0 0.0
  %v4145 = vand.u32 %v3516, 4294901760
  %4146 = vmatpush1.msra.mxu0 %v4145
  %4147 = vmatprep.subr.mxu0 0.0
  %v4148 = vand.u32 %v3517, 4294901760
  %4149 = vmatpush1.msra.mxu0 %v4148
  %4150 = vmatprep.subr.mxu0 0.0
  %v4151 = vand.u32 %v3518, 4294901760
  %4152 = vmatpush1.msra.mxu0 %v4151
  %4153 = vmatprep.subr.mxu0 0.0
  %v4154 = vand.u32 %v3519, 4294901760
  %4155 = vmatpush1.msra.mxu0 %v4154
  %4156 = vmatprep.subr.mxu0 0.0
  %v4157 = vand.u32 %v3520, 4294901760
  %4158 = vmatpush1.msra.mxu0 %v4157
  %4159 = vmatprep.subr.mxu0 0.0
  %v4160 = vand.u32 %v3521, 4294901760
  %4161 = vmatpush1.msra.mxu0 %v4160
  %4162 = vmatprep.subr.mxu0 0.0
  %v4163 = vand.u32 %v3522, 4294901760
  %4164 = vmatpush1.msra.mxu0 %v4163
  %4165 = vmatprep.subr.mxu0 0.0
  %v4166 = vand.u32 %v3523, 4294901760
  %4167 = vmatpush1.msra.mxu0 %v4166
  %4168 = vmatprep.subr.mxu0 0.0
  %v4169 = vand.u32 %v3524, 4294901760
  %4170 = vmatpush1.msra.mxu0 %v4169
  %4171 = vmatprep.subr.mxu0 0.0
  %v4172 = vand.u32 %v3525, 4294901760
  %4173 = vmatpush1.msra.mxu0 %v4172
  %4174 = vmatprep.subr.mxu0 0.0
  %v4175 = vand.u32 %v3526, 4294901760
  %4176 = vmatpush1.msra.mxu0 %v4175
  %4177 = vmatprep.subr.mxu0 0.0
  %v4178 = vand.u32 %v3527, 4294901760
  %4179 = vmatpush1.msra.mxu0 %v4178
  %4180 = vmatprep.subr.mxu0 0.0
  %v4181 = vand.u32 %v3528, 4294901760
  %4182 = vmatpush1.msra.mxu0 %v4181
  %4183 = vmatprep.subr.mxu0 0.0
  %4184 = vmatpush1.msra.mxu0 0.0
  %4185 = vmatprep.subr.mxu0 0.0
  %4186 = vmatpush1.msra.mxu0 0.0
  %4187 = vmatprep.subr.mxu0 0.0
  %4188 = vmatpush1.msra.mxu0 0.0
  %4189 = vmatprep.subr.mxu0 0.0
  %4190 = vmatpush1.msra.mxu0 0.0
  %4191 = vmatprep.subr.mxu0 0.0
  %4192 = vmatpush1.msra.mxu0 0.0
  %4193 = vmatprep.subr.mxu0 0.0
  %4194 = vmatpush1.msra.mxu0 0.0
  %4195 = vmatprep.subr.mxu0 0.0
  %4196 = vmatpush1.msra.mxu0 0.0
  %4197 = vmatprep.subr.mxu0 0.0
  %4198 = vmatpush1.msra.mxu0 0.0
  %4199 = vmatprep.subr.mxu0 0.0
  %4200 = vmatpush1.msra.mxu0 0.0
  %4201 = vmatprep.subr.mxu0 0.0
  %4202 = vmatpush1.msra.mxu0 0.0
  %4203 = vmatprep.subr.mxu0 0.0
  %4204 = vmatpush1.msra.mxu0 0.0
  %4205 = vmatprep.subr.mxu0 0.0
  %4206 = vmatpush1.msra.mxu0 0.0
  %v4207 = vand.u32 %v3531, 4294901760
  %v4208 = vsub.f32 %v3531, %v4207
  %v4209 = vand.u32 %v4208, 4294901760
  %4210 = vmatprep.mubr.f32.mxu0 %v4209
  %v4211 = vand.u32 %v3478, 4294901760
  %v4212 = vsub.f32 %v3478, %v4211
  %v4213 = vand.u32 %v4212, 4294901760
  %4214 = vmatmul.mubr.f32.gmra.mrb[0].mxu0 %v4213
  %v4215 = vpop.f32.mrb[0].mxu0
  %v4216 = vadd.f32 %v4066, %v4215
  %v4217 = vpop.f32.mrb[0].mxu0
  %v4218 = vand.u32 %v3534, 4294901760
  %v4219 = vsub.f32 %v3534, %v4218
  %v4220 = vand.u32 %v4219, 4294901760
  %4221 = vmatprep.mubr.f32.mxu0 %v4220
  %v4222 = vand.u32 %v3479, 4294901760
  %v4223 = vsub.f32 %v3479, %v4222
  %v4224 = vand.u32 %v4223, 4294901760
  %4225 = vmatmul.mubr.f32.gmra.mrb[0].mxu0 %v4224
  %v4226 = vpop.f32.mrb[0].mxu0
  %v4227 = vadd.f32 %v4075, %v4226
  %v4228 = vpop.f32.mrb[0].mxu0
  %v4229 = vand.u32 %v3537, 4294901760
  %v4230 = vsub.f32 %v3537, %v4229
  %v4231 = vand.u32 %v4230, 4294901760
  %4232 = vmatprep.mubr.f32.mxu0 %v4231
  %v4233 = vand.u32 %v3480, 4294901760
  %v4234 = vsub.f32 %v3480, %v4233
  %v4235 = vand.u32 %v4234, 4294901760
  %4236 = vmatmul.mubr.f32.gmra.mrb[0].mxu0 %v4235
  %v4237 = vpop.f32.mrb[0].mxu0
  %v4238 = vadd.f32 %v4084, %v4237
  %v4239 = vpop.f32.mrb[0].mxu0
  %v4240 = vand.u32 %v3540, 4294901760
  %v4241 = vsub.f32 %v3540, %v4240
  %v4242 = vand.u32 %v4241, 4294901760
  %4243 = vmatprep.mubr.f32.mxu0 %v4242
  %v4244 = vand.u32 %v3481, 4294901760
  %v4245 = vsub.f32 %v3481, %v4244
  %v4246 = vand.u32 %v4245, 4294901760
  %4247 = vmatmul.mubr.f32.gmra.mrb[0].mxu0 %v4246
  %v4248 = vpop.f32.mrb[0].mxu0
  %v4249 = vadd.f32 %v4093, %v4248
  %v4250 = vpop.f32.mrb[0].mxu0
  %v4251 = vand.u32 %v3543, 4294901760
  %v4252 = vsub.f32 %v3543, %v4251
  %v4253 = vand.u32 %v4252, 4294901760
  %4254 = vmatprep.mubr.f32.mxu0 %v4253
  %v4255 = vand.u32 %v3482, 4294901760
  %v4256 = vsub.f32 %v3482, %v4255
  %v4257 = vand.u32 %v4256, 4294901760
  %4258 = vmatmul.mubr.f32.gmra.mrb[0].mxu0 %v4257
  %v4259 = vpop.f32.mrb[0].mxu0
  %v4260 = vadd.f32 %v4102, %v4259
  %v4261 = vpop.f32.mrb[0].mxu0
  %v4262 = vand.u32 %v3546, 4294901760
  %v4263 = vsub.f32 %v3546, %v4262
  %v4264 = vand.u32 %v4263, 4294901760
  %4265 = vmatprep.mubr.f32.mxu0 %v4264
  %v4266 = vand.u32 %v3483, 4294901760
  %v4267 = vsub.f32 %v3483, %v4266
  %v4268 = vand.u32 %v4267, 4294901760
  %4269 = vmatmul.mubr.f32.gmra.mrb[0].mxu0 %v4268
  %v4270 = vpop.f32.mrb[0].mxu0
  %v4271 = vadd.f32 %v4111, %v4270
  %v4272 = vpop.f32.mrb[0].mxu0
  %v4273 = vand.u32 %v3549, 4294901760
  %v4274 = vsub.f32 %v3549, %v4273
  %v4275 = vand.u32 %v4274, 4294901760
  %4276 = vmatprep.mubr.f32.mxu0 %v4275
  %v4277 = vand.u32 %v3484, 4294901760
  %v4278 = vsub.f32 %v3484, %v4277
  %v4279 = vand.u32 %v4278, 4294901760
  %4280 = vmatmul.mubr.f32.gmra.mrb[0].mxu0 %v4279
  %v4281 = vpop.f32.mrb[0].mxu0
  %v4282 = vadd.f32 %v4120, %v4281
  %v4283 = vpop.f32.mrb[0].mxu0
  %4284 = vdwg.mxu0
  %4285 = vmatprep.subr.mxu0 0.0
  %v4286 = vand.u32 %v3509, 4294901760
  %v4287 = vsub.f32 %v3509, %v4286
  %v4288 = vand.u32 %v4287, 4294901760
  %4289 = vmatpush1.msra.mxu0 %v4288
  %4290 = vmatprep.subr.mxu0 0.0
  %v4291 = vand.u32 %v3510, 4294901760
  %v4292 = vsub.f32 %v3510, %v4291
  %v4293 = vand.u32 %v4292, 4294901760
  %4294 = vmatpush1.msra.mxu0 %v4293
  %4295 = vmatprep.subr.mxu0 0.0
  %v4296 = vand.u32 %v3511, 4294901760
  %v4297 = vsub.f32 %v3511, %v4296
  %v4298 = vand.u32 %v4297, 4294901760
  %4299 = vmatpush1.msra.mxu0 %v4298
  %4300 = vmatprep.subr.mxu0 0.0
  %v4301 = vand.u32 %v3512, 4294901760
  %v4302 = vsub.f32 %v3512, %v4301
  %v4303 = vand.u32 %v4302, 4294901760
  %4304 = vmatpush1.msra.mxu0 %v4303
  %4305 = vmatprep.subr.mxu0 0.0
  %v4306 = vand.u32 %v3513, 4294901760
  %v4307 = vsub.f32 %v3513, %v4306
  %v4308 = vand.u32 %v4307, 4294901760
  %4309 = vmatpush1.msra.mxu0 %v4308
  %4310 = vmatprep.subr.mxu0 0.0
  %v4311 = vand.u32 %v3514, 4294901760
  %v4312 = vsub.f32 %v3514, %v4311
  %v4313 = vand.u32 %v4312, 4294901760
  %4314 = vmatpush1.msra.mxu0 %v4313
  %4315 = vmatprep.subr.mxu0 0.0
  %v4316 = vand.u32 %v3515, 4294901760
  %v4317 = vsub.f32 %v3515, %v4316
  %v4318 = vand.u32 %v4317, 4294901760
  %4319 = vmatpush1.msra.mxu0 %v4318
  %4320 = vmatprep.subr.mxu0 0.0
  %v4321 = vand.u32 %v3516, 4294901760
  %v4322 = vsub.f32 %v3516, %v4321
  %v4323 = vand.u32 %v4322, 4294901760
  %4324 = vmatpush1.msra.mxu0 %v4323
  %4325 = vmatprep.subr.mxu0 0.0
  %v4326 = vand.u32 %v3517, 4294901760
  %v4327 = vsub.f32 %v3517, %v4326
  %v4328 = vand.u32 %v4327, 4294901760
  %4329 = vmatpush1.msra.mxu0 %v4328
  %4330 = vmatprep.subr.mxu0 0.0
  %v4331 = vand.u32 %v3518, 4294901760
  %v4332 = vsub.f32 %v3518, %v4331
  %v4333 = vand.u32 %v4332, 4294901760
  %4334 = vmatpush1.msra.mxu0 %v4333
  %4335 = vmatprep.subr.mxu0 0.0
  %v4336 = vand.u32 %v3519, 4294901760
  %v4337 = vsub.f32 %v3519, %v4336
  %v4338 = vand.u32 %v4337, 4294901760
  %4339 = vmatpush1.msra.mxu0 %v4338
  %4340 = vmatprep.subr.mxu0 0.0
  %v4341 = vand.u32 %v3520, 4294901760
  %v4342 = vsub.f32 %v3520, %v4341
  %v4343 = vand.u32 %v4342, 4294901760
  %4344 = vmatpush1.msra.mxu0 %v4343
  %4345 = vmatprep.subr.mxu0 0.0
  %v4346 = vand.u32 %v3521, 4294901760
  %v4347 = vsub.f32 %v3521, %v4346
  %v4348 = vand.u32 %v4347, 4294901760
  %4349 = vmatpush1.msra.mxu0 %v4348
  %4350 = vmatprep.subr.mxu0 0.0
  %v4351 = vand.u32 %v3522, 4294901760
  %v4352 = vsub.f32 %v3522, %v4351
  %v4353 = vand.u32 %v4352, 4294901760
  %4354 = vmatpush1.msra.mxu0 %v4353
  %4355 = vmatprep.subr.mxu0 0.0
  %v4356 = vand.u32 %v3523, 4294901760
  %v4357 = vsub.f32 %v3523, %v4356
  %v4358 = vand.u32 %v4357, 4294901760
  %4359 = vmatpush1.msra.mxu0 %v4358
  %4360 = vmatprep.subr.mxu0 0.0
  %v4361 = vand.u32 %v3524, 4294901760
  %v4362 = vsub.f32 %v3524, %v4361
  %v4363 = vand.u32 %v4362, 4294901760
  %4364 = vmatpush1.msra.mxu0 %v4363
  %4365 = vmatprep.subr.mxu0 0.0
  %v4366 = vand.u32 %v3525, 4294901760
  %v4367 = vsub.f32 %v3525, %v4366
  %v4368 = vand.u32 %v4367, 4294901760
  %4369 = vmatpush1.msra.mxu0 %v4368
  %4370 = vmatprep.subr.mxu0 0.0
  %v4371 = vand.u32 %v3526, 4294901760
  %v4372 = vsub.f32 %v3526, %v4371
  %v4373 = vand.u32 %v4372, 4294901760
  %4374 = vmatpush1.msra.mxu0 %v4373
  %4375 = vmatprep.subr.mxu0 0.0
  %v4376 = vand.u32 %v3527, 4294901760
  %v4377 = vsub.f32 %v3527, %v4376
  %v4378 = vand.u32 %v4377, 4294901760
  %4379 = vmatpush1.msra.mxu0 %v4378
  %4380 = vmatprep.subr.mxu0 0.0
  %v4381 = vand.u32 %v3528, 4294901760
  %v4382 = vsub.f32 %v3528, %v4381
  %v4383 = vand.u32 %v4382, 4294901760
  %4384 = vmatpush1.msra.mxu0 %v4383
  %4385 = vmatprep.subr.mxu0 0.0
  %4386 = vmatpush1.msra.mxu0 0.0
  %4387 = vmatprep.subr.mxu0 0.0
  %4388 = vmatpush1.msra.mxu0 0.0
  %4389 = vmatprep.subr.mxu0 0.0
  %4390 = vmatpush1.msra.mxu0 0.0
  %4391 = vmatprep.subr.mxu0 0.0
  %4392 = vmatpush1.msra.mxu0 0.0
  %4393 = vmatprep.subr.mxu0 0.0
  %4394 = vmatpush1.msra.mxu0 0.0
  %4395 = vmatprep.subr.mxu0 0.0
  %4396 = vmatpush1.msra.mxu0 0.0
  %4397 = vmatprep.subr.mxu0 0.0
  %4398 = vmatpush1.msra.mxu0 0.0
  %4399 = vmatprep.subr.mxu0 0.0
  %4400 = vmatpush1.msra.mxu0 0.0
  %4401 = vmatprep.subr.mxu0 0.0
  %4402 = vmatpush1.msra.mxu0 0.0
  %4403 = vmatprep.subr.mxu0 0.0
  %4404 = vmatpush1.msra.mxu0 0.0
  %4405 = vmatprep.subr.mxu0 0.0
  %4406 = vmatpush1.msra.mxu0 0.0
  %4407 = vmatprep.subr.mxu0 0.0
  %4408 = vmatpush1.msra.mxu0 0.0
  %v4409 = vand.u32 %v3531, 4294901760
  %4410 = vmatprep.mubr.f32.mxu0 %v4409
  %v4411 = vand.u32 %v3478, 4294901760
  %4412 = vmatmul.mubr.f32.gmra.mrb[0].mxu0 %v4411
  %v4413 = vpop.f32.mrb[0].mxu0
  %v4414 = vadd.f32 %v4216, %v4413
  %v4415 = vpop.f32.mrb[0].mxu0
  %v4416 = vand.u32 %v3534, 4294901760
  %4417 = vmatprep.mubr.f32.mxu0 %v4416
  %v4418 = vand.u32 %v3479, 4294901760
  %4419 = vmatmul.mubr.f32.gmra.mrb[0].mxu0 %v4418
  %v4420 = vpop.f32.mrb[0].mxu0
  %v4421 = vadd.f32 %v4227, %v4420
  %v4422 = vpop.f32.mrb[0].mxu0
  %v4423 = vand.u32 %v3537, 4294901760
  %4424 = vmatprep.mubr.f32.mxu0 %v4423
  %v4425 = vand.u32 %v3480, 4294901760
  %4426 = vmatmul.mubr.f32.gmra.mrb[0].mxu0 %v4425
  %v4427 = vpop.f32.mrb[0].mxu0
  %v4428 = vadd.f32 %v4238, %v4427
  %v4429 = vpop.f32.mrb[0].mxu0
  %v4430 = vand.u32 %v3540, 4294901760
  %4431 = vmatprep.mubr.f32.mxu0 %v4430
  %v4432 = vand.u32 %v3481, 4294901760
  %4433 = vmatmul.mubr.f32.gmra.mrb[0].mxu0 %v4432
  %v4434 = vpop.f32.mrb[0].mxu0
  %v4435 = vadd.f32 %v4249, %v4434
  %v4436 = vpop.f32.mrb[0].mxu0
  %v4437 = vand.u32 %v3543, 4294901760
  %4438 = vmatprep.mubr.f32.mxu0 %v4437
  %v4439 = vand.u32 %v3482, 4294901760
  %4440 = vmatmul.mubr.f32.gmra.mrb[0].mxu0 %v4439
  %v4441 = vpop.f32.mrb[0].mxu0
  %v4442 = vadd.f32 %v4260, %v4441
  %v4443 = vpop.f32.mrb[0].mxu0
  %v4444 = vand.u32 %v3546, 4294901760
  %4445 = vmatprep.mubr.f32.mxu0 %v4444
  %v4446 = vand.u32 %v3483, 4294901760
  %4447 = vmatmul.mubr.f32.gmra.mrb[0].mxu0 %v4446
  %v4448 = vpop.f32.mrb[0].mxu0
  %v4449 = vadd.f32 %v4271, %v4448
  %v4450 = vpop.f32.mrb[0].mxu0
  %v4451 = vand.u32 %v3549, 4294901760
  %4452 = vmatprep.mubr.f32.mxu0 %v4451
  %v4453 = vand.u32 %v3484, 4294901760
  %4454 = vmatmul.mubr.f32.gmra.mrb[0].mxu0 %v4453
  %v4455 = vpop.f32.mrb[0].mxu0
  %v4456 = vadd.f32 %v4282, %v4455
  %v4457 = vpop.f32.mrb[0].mxu0
  %4458 = vdwg.mxu0
  %4459 = vmatprep.subr.mxu0 0.0
  %v4460 = vand.u32 %v3509, 4294901760
  %4461 = vmatpush1.msra.mxu0 %v4460
  %4462 = vmatprep.subr.mxu0 0.0
  %v4463 = vand.u32 %v3510, 4294901760
  %4464 = vmatpush1.msra.mxu0 %v4463
  %4465 = vmatprep.subr.mxu0 0.0
  %v4466 = vand.u32 %v3511, 4294901760
  %4467 = vmatpush1.msra.mxu0 %v4466
  %4468 = vmatprep.subr.mxu0 0.0
  %v4469 = vand.u32 %v3512, 4294901760
  %4470 = vmatpush1.msra.mxu0 %v4469
  %4471 = vmatprep.subr.mxu0 0.0
  %v4472 = vand.u32 %v3513, 4294901760
  %4473 = vmatpush1.msra.mxu0 %v4472
  %4474 = vmatprep.subr.mxu0 0.0
  %v4475 = vand.u32 %v3514, 4294901760
  %4476 = vmatpush1.msra.mxu0 %v4475
  %4477 = vmatprep.subr.mxu0 0.0
  %v4478 = vand.u32 %v3515, 4294901760
  %4479 = vmatpush1.msra.mxu0 %v4478
  %4480 = vmatprep.subr.mxu0 0.0
  %v4481 = vand.u32 %v3516, 4294901760
  %4482 = vmatpush1.msra.mxu0 %v4481
  %4483 = vmatprep.subr.mxu0 0.0
  %v4484 = vand.u32 %v3517, 4294901760
  %4485 = vmatpush1.msra.mxu0 %v4484
  %4486 = vmatprep.subr.mxu0 0.0
  %v4487 = vand.u32 %v3518, 4294901760
  %4488 = vmatpush1.msra.mxu0 %v4487
  %4489 = vmatprep.subr.mxu0 0.0
  %v4490 = vand.u32 %v3519, 4294901760
  %4491 = vmatpush1.msra.mxu0 %v4490
  %4492 = vmatprep.subr.mxu0 0.0
  %v4493 = vand.u32 %v3520, 4294901760
  %4494 = vmatpush1.msra.mxu0 %v4493
  %4495 = vmatprep.subr.mxu0 0.0
  %v4496 = vand.u32 %v3521, 4294901760
  %4497 = vmatpush1.msra.mxu0 %v4496
  %4498 = vmatprep.subr.mxu0 0.0
  %v4499 = vand.u32 %v3522, 4294901760
  %4500 = vmatpush1.msra.mxu0 %v4499
  %4501 = vmatprep.subr.mxu0 0.0
  %v4502 = vand.u32 %v3523, 4294901760
  %4503 = vmatpush1.msra.mxu0 %v4502
  %4504 = vmatprep.subr.mxu0 0.0
  %v4505 = vand.u32 %v3524, 4294901760
  %4506 = vmatpush1.msra.mxu0 %v4505
  %4507 = vmatprep.subr.mxu0 0.0
  %v4508 = vand.u32 %v3525, 4294901760
  %4509 = vmatpush1.msra.mxu0 %v4508
  %4510 = vmatprep.subr.mxu0 0.0
  %v4511 = vand.u32 %v3526, 4294901760
  %4512 = vmatpush1.msra.mxu0 %v4511
  %4513 = vmatprep.subr.mxu0 0.0
  %v4514 = vand.u32 %v3527, 4294901760
  %4515 = vmatpush1.msra.mxu0 %v4514
  %4516 = vmatprep.subr.mxu0 0.0
  %v4517 = vand.u32 %v3528, 4294901760
  %4518 = vmatpush1.msra.mxu0 %v4517
  %4519 = vmatprep.subr.mxu0 0.0
  %4520 = vmatpush1.msra.mxu0 0.0
  %4521 = vmatprep.subr.mxu0 0.0
  %4522 = vmatpush1.msra.mxu0 0.0
  %4523 = vmatprep.subr.mxu0 0.0
  %4524 = vmatpush1.msra.mxu0 0.0
  %4525 = vmatprep.subr.mxu0 0.0
  %4526 = vmatpush1.msra.mxu0 0.0
  %4527 = vmatprep.subr.mxu0 0.0
  %4528 = vmatpush1.msra.mxu0 0.0
  %4529 = vmatprep.subr.mxu0 0.0
  %4530 = vmatpush1.msra.mxu0 0.0
  %4531 = vmatprep.subr.mxu0 0.0
  %4532 = vmatpush1.msra.mxu0 0.0
  %4533 = vmatprep.subr.mxu0 0.0
  %4534 = vmatpush1.msra.mxu0 0.0
  %4535 = vmatprep.subr.mxu0 0.0
  %4536 = vmatpush1.msra.mxu0 0.0
  %4537 = vmatprep.subr.mxu0 0.0
  %4538 = vmatpush1.msra.mxu0 0.0
  %4539 = vmatprep.subr.mxu0 0.0
  %4540 = vmatpush1.msra.mxu0 0.0
  %4541 = vmatprep.subr.mxu0 0.0
  %4542 = vmatpush1.msra.mxu0 0.0
  %v4543 = vand.u32 %v3531, 4294901760
  %4544 = vmatprep.mubr.f32.mxu0 %v4543
  %v4545 = vand.u32 %v3478, 4294901760
  %4546 = vmatmul.mubr.f32.gmra.mrb[0].mxu0 %v4545
  %v4547 = vpop.f32.mrb[0].mxu0
  %v4548 = vadd.f32 %v4414, %v4547
  %v4549 = vpop.f32.mrb[0].mxu0
  %v4550 = vand.u32 %v3534, 4294901760
  %4551 = vmatprep.mubr.f32.mxu0 %v4550
  %v4552 = vand.u32 %v3479, 4294901760
  %4553 = vmatmul.mubr.f32.gmra.mrb[0].mxu0 %v4552
  %v4554 = vpop.f32.mrb[0].mxu0
  %v4555 = vadd.f32 %v4421, %v4554
  %v4556 = vpop.f32.mrb[0].mxu0
  %v4557 = vand.u32 %v3537, 4294901760
  %4558 = vmatprep.mubr.f32.mxu0 %v4557
  %v4559 = vand.u32 %v3480, 4294901760
  %4560 = vmatmul.mubr.f32.gmra.mrb[0].mxu0 %v4559
  %v4561 = vpop.f32.mrb[0].mxu0
  %v4562 = vadd.f32 %v4428, %v4561
  %v4563 = vpop.f32.mrb[0].mxu0
  %v4564 = vand.u32 %v3540, 4294901760
  %4565 = vmatprep.mubr.f32.mxu0 %v4564
  %v4566 = vand.u32 %v3481, 4294901760
  %4567 = vmatmul.mubr.f32.gmra.mrb[0].mxu0 %v4566
  %v4568 = vpop.f32.mrb[0].mxu0
  %v4569 = vadd.f32 %v4435, %v4568
  %v4570 = vpop.f32.mrb[0].mxu0
  %v4571 = vand.u32 %v3543, 4294901760
  %4572 = vmatprep.mubr.f32.mxu0 %v4571
  %v4573 = vand.u32 %v3482, 4294901760
  %4574 = vmatmul.mubr.f32.gmra.mrb[0].mxu0 %v4573
  %v4575 = vpop.f32.mrb[0].mxu0
  %v4576 = vadd.f32 %v4442, %v4575
  %v4577 = vpop.f32.mrb[0].mxu0
  %v4578 = vand.u32 %v3546, 4294901760
  %4579 = vmatprep.mubr.f32.mxu0 %v4578
  %v4580 = vand.u32 %v3483, 4294901760
  %4581 = vmatmul.mubr.f32.gmra.mrb[0].mxu0 %v4580
  %v4582 = vpop.f32.mrb[0].mxu0
  %v4583 = vadd.f32 %v4449, %v4582
  %v4584 = vpop.f32.mrb[0].mxu0
  %v4585 = vand.u32 %v3549, 4294901760
  %4586 = vmatprep.mubr.f32.mxu0 %v4585
  %v4587 = vand.u32 %v3484, 4294901760
  %4588 = vmatmul.mubr.f32.gmra.mrb[0].mxu0 %v4587
  %v4589 = vpop.f32.mrb[0].mxu0
  %v4590 = vadd.f32 %v4456, %v4589
  %v4591 = vpop.f32.mrb[0].mxu0
  %4592 = vdwg.mxu0
  %v4593 = vld [vmem:[%s1 + $0xd0] sm:$0x1]
  %v4596 = vrot.slane %v4555, 6
  %v4597 = vrot.slane %v4562, 6
  %v4598 = vsel %vm3066, %v4596, %v4597
  %v4600 = vmax.f32 %v4548, %v4598
  %v4602 = vrot.slane %v4600, 2
  %v4604 = vmax.f32 %v4600, %v4602
  %v4605 = vlaneseq
  %v4606 = vshrl.u32 %v4605, 7
  %v4607 = vsub.s32 0, %v4606
  %v4608 = vrot.slane %v4593, %v4607
  %v4609 = vadd.f32 %v4604, %v4608
  %v4610 = vmax.f32 %v4609, 0.0
  %v4612 = vmax.f32 %v4548, %v4597
  %v4614 = vrot.slane %v4612, 2
  %v4616 = vmax.f32 %v4612, %v4614
  %v4617 = vadd.f32 %v4616, %v4608
  %v4618 = vmax.f32 %v4617, 0.0
  %v4620 = vrot.slane %v4583, 6
  %v4622 = vmax.f32 %v4569, %v4620
  %v4624 = vrot.slane %v4622, 2
  %v4626 = vmax.f32 %v4622, %v4624
  %v4627 = vadd.f32 %v4626, %v4608
  %v4628 = vmax.f32 %v4627, 0.0
  %v4630 = vrot.slane %v4590, 6
  %v4631 = vsel %vm3066, %v4620, %v4630
  %v4633 = vmax.f32 %v4576, %v4631
  %v4635 = vrot.slane %v4633, 2
  %v4637 = vmax.f32 %v4633, %v4635
  %v4638 = vadd.f32 %v4637, %v4608
  %v4639 = vmax.f32 %v4638, 0.0
  %v4641 = vrot.slane %v4618, 4
  %4642 = vrot.lane.b32.xlu0 %v4641, 20
  %v4643 = vpop.permute.xlu0 %4642
  %v4646 = vrot.slane %v4628, 4
  %4647 = vrot.lane.b32.xlu0 %v4646, 40
  %v4648 = vpop.permute.xlu0 %4647
  %4651 = vrot.lane.b32.xlu0 %v4639, 60
  %v4652 = vpop.permute.xlu0 %4651
  %v4654 = vsel %vm3397, %v4610, %v4643
  %v4655 = vsel %vm3413, %v4654, %v4648
  %v4656 = vsel %vm3429, %v4655, %v4652
  %v4657 = vld [vmem:[%s1 + $0xd8] sm:$0xff]
  %v4658 = vld [vmem:[%s1 + $0xe0] sm:$0xff]
  %v4659 = vld [vmem:[%s1 + $0xe8] sm:$0xff]
  %v4660 = vld [vmem:[%s1 + $0xf0] sm:$0xff]
  %v4661 = vld [vmem:[%s1 + $0xf8] sm:$0xff]
  %v4662 = vld [vmem:[%s1 + $0x100] sm:$0xff]
  %v4663 = vld [vmem:[%s1 + $0x108] sm:$0xff]
  %v4664 = vld [vmem:[%s1 + $0x110] sm:$0xff]
  %v4665 = vld [vmem:[%s1 + $0x118] sm:$0xff]
  %v4666 = vld [vmem:[%s1 + $0x120] sm:$0xff]
  %v4667 = vld [vmem:[%s1 + $0x128] sm:$0x1]
  %v4668 = vlaneseq
  %v4669 = vshrl.u32 %v4668, 7
  %v4670 = vsub.s32 0, %v4669
  %v4671 = vrot.slane %v4667, %v4670
  %v4673 = vsel %vm3445, %v4656, 0
  %4675 = vmatprep.subr.mxu0 0.0
  %v4676 = vand.u32 %v4657, 4294901760
  %4677 = vmatpush1.msra.mxu0 %v4676
  %4678 = vmatprep.subr.mxu0 0.0
  %v4679 = vand.u32 %v4658, 4294901760
  %4680 = vmatpush1.msra.mxu0 %v4679
  %4681 = vmatprep.subr.mxu0 0.0
  %v4682 = vand.u32 %v4659, 4294901760
  %4683 = vmatpush1.msra.mxu0 %v4682
  %4684 = vmatprep.subr.mxu0 0.0
  %v4685 = vand.u32 %v4660, 4294901760
  %4686 = vmatpush1.msra.mxu0 %v4685
  %4687 = vmatprep.subr.mxu0 0.0
  %v4688 = vand.u32 %v4661, 4294901760
  %4689 = vmatpush1.msra.mxu0 %v4688
  %4690 = vmatprep.subr.mxu0 0.0
  %v4691 = vand.u32 %v4662, 4294901760
  %4692 = vmatpush1.msra.mxu0 %v4691
  %4693 = vmatprep.subr.mxu0 0.0
  %v4694 = vand.u32 %v4663, 4294901760
  %4695 = vmatpush1.msra.mxu0 %v4694
  %4696 = vmatprep.subr.mxu0 0.0
  %v4697 = vand.u32 %v4664, 4294901760
  %4698 = vmatpush1.msra.mxu0 %v4697
  %4699 = vmatprep.subr.mxu0 0.0
  %v4700 = vand.u32 %v4665, 4294901760
  %4701 = vmatpush1.msra.mxu0 %v4700
  %4702 = vmatprep.subr.mxu0 0.0
  %v4703 = vand.u32 %v4666, 4294901760
  %4704 = vmatpush1.msra.mxu0 %v4703
  %4705 = vmatprep.subr.mxu0 0.0
  %4706 = vmatpush1.msra.mxu0 0.0
  %4707 = vmatprep.subr.mxu0 0.0
  %4708 = vmatpush1.msra.mxu0 0.0
  %4709 = vmatprep.subr.mxu0 0.0
  %4710 = vmatpush1.msra.mxu0 0.0
  %4711 = vmatprep.subr.mxu0 0.0
  %4712 = vmatpush1.msra.mxu0 0.0
  %4713 = vmatprep.subr.mxu0 0.0
  %4714 = vmatpush1.msra.mxu0 0.0
  %4715 = vmatprep.subr.mxu0 0.0
  %4716 = vmatpush1.msra.mxu0 0.0
  %4717 = vmatprep.subr.mxu0 0.0
  %4718 = vmatpush1.msra.mxu0 0.0
  %4719 = vmatprep.subr.mxu0 0.0
  %4720 = vmatpush1.msra.mxu0 0.0
  %4721 = vmatprep.subr.mxu0 0.0
  %4722 = vmatpush1.msra.mxu0 0.0
  %4723 = vmatprep.subr.mxu0 0.0
  %4724 = vmatpush1.msra.mxu0 0.0
  %4725 = vmatprep.subr.mxu0 0.0
  %4726 = vmatpush1.msra.mxu0 0.0
  %4727 = vmatprep.subr.mxu0 0.0
  %4728 = vmatpush1.msra.mxu0 0.0
  %4729 = vmatprep.subr.mxu0 0.0
  %4730 = vmatpush1.msra.mxu0 0.0
  %4731 = vmatprep.subr.mxu0 0.0
  %4732 = vmatpush1.msra.mxu0 0.0
  %4733 = vmatprep.subr.mxu0 0.0
  %4734 = vmatpush1.msra.mxu0 0.0
  %4735 = vmatprep.subr.mxu0 0.0
  %4736 = vmatpush1.msra.mxu0 0.0
  %4737 = vmatprep.subr.mxu0 0.0
  %4738 = vmatpush1.msra.mxu0 0.0
  %4739 = vmatprep.subr.mxu0 0.0
  %4740 = vmatpush1.msra.mxu0 0.0
  %4741 = vmatprep.subr.mxu0 0.0
  %4742 = vmatpush1.msra.mxu0 0.0
  %4743 = vmatprep.subr.mxu0 0.0
  %4744 = vmatpush1.msra.mxu0 0.0
  %4745 = vmatprep.subr.mxu0 0.0
  %4746 = vmatpush1.msra.mxu0 0.0
  %4747 = vmatprep.subr.mxu0 0.0
  %4748 = vmatpush1.msra.mxu0 0.0
  %4749 = vmatprep.mubr.f32.mxu0 0.0
  %v4750 = vand.u32 %v4673, 4294901760
  %v4751 = vsub.f32 %v4673, %v4750
  %v4752 = vand.u32 %v4751, 4294901760
  %v4753 = vsub.f32 %v4751, %v4752
  %v4754 = vand.u32 %v4753, 4294901760
  %4755 = vmatmul.mubr.f32.gmra.mrb[0].mxu0 %v4754
  %v4756 = vpop.f32.mrb[0].mxu0
  %v4757 = vadd.f32 %v4671, %v4756
  %v4758 = vpop.f32.mrb[0].mxu0
  %4759 = vdwg.mxu0
  %4760 = vmatprep.subr.mxu0 0.0
  %v4761 = vand.u32 %v4657, 4294901760
  %v4762 = vsub.f32 %v4657, %v4761
  %v4763 = vand.u32 %v4762, 4294901760
  %v4764 = vsub.f32 %v4762, %v4763
  %v4765 = vand.u32 %v4764, 4294901760
  %4766 = vmatpush1.msra.mxu0 %v4765
  %4767 = vmatprep.subr.mxu0 0.0
  %v4768 = vand.u32 %v4658, 4294901760
  %v4769 = vsub.f32 %v4658, %v4768
  %v4770 = vand.u32 %v4769, 4294901760
  %v4771 = vsub.f32 %v4769, %v4770
  %v4772 = vand.u32 %v4771, 4294901760
  %4773 = vmatpush1.msra.mxu0 %v4772
  %4774 = vmatprep.subr.mxu0 0.0
  %v4775 = vand.u32 %v4659, 4294901760
  %v4776 = vsub.f32 %v4659, %v4775
  %v4777 = vand.u32 %v4776, 4294901760
  %v4778 = vsub.f32 %v4776, %v4777
  %v4779 = vand.u32 %v4778, 4294901760
  %4780 = vmatpush1.msra.mxu0 %v4779
  %4781 = vmatprep.subr.mxu0 0.0
  %v4782 = vand.u32 %v4660, 4294901760
  %v4783 = vsub.f32 %v4660, %v4782
  %v4784 = vand.u32 %v4783, 4294901760
  %v4785 = vsub.f32 %v4783, %v4784
  %v4786 = vand.u32 %v4785, 4294901760
  %4787 = vmatpush1.msra.mxu0 %v4786
  %4788 = vmatprep.subr.mxu0 0.0
  %v4789 = vand.u32 %v4661, 4294901760
  %v4790 = vsub.f32 %v4661, %v4789
  %v4791 = vand.u32 %v4790, 4294901760
  %v4792 = vsub.f32 %v4790, %v4791
  %v4793 = vand.u32 %v4792, 4294901760
  %4794 = vmatpush1.msra.mxu0 %v4793
  %4795 = vmatprep.subr.mxu0 0.0
  %v4796 = vand.u32 %v4662, 4294901760
  %v4797 = vsub.f32 %v4662, %v4796
  %v4798 = vand.u32 %v4797, 4294901760
  %v4799 = vsub.f32 %v4797, %v4798
  %v4800 = vand.u32 %v4799, 4294901760
  %4801 = vmatpush1.msra.mxu0 %v4800
  %4802 = vmatprep.subr.mxu0 0.0
  %v4803 = vand.u32 %v4663, 4294901760
  %v4804 = vsub.f32 %v4663, %v4803
  %v4805 = vand.u32 %v4804, 4294901760
  %v4806 = vsub.f32 %v4804, %v4805
  %v4807 = vand.u32 %v4806, 4294901760
  %4808 = vmatpush1.msra.mxu0 %v4807
  %4809 = vmatprep.subr.mxu0 0.0
  %v4810 = vand.u32 %v4664, 4294901760
  %v4811 = vsub.f32 %v4664, %v4810
  %v4812 = vand.u32 %v4811, 4294901760
  %v4813 = vsub.f32 %v4811, %v4812
  %v4814 = vand.u32 %v4813, 4294901760
  %4815 = vmatpush1.msra.mxu0 %v4814
  %4816 = vmatprep.subr.mxu0 0.0
  %v4817 = vand.u32 %v4665, 4294901760
  %v4818 = vsub.f32 %v4665, %v4817
  %v4819 = vand.u32 %v4818, 4294901760
  %v4820 = vsub.f32 %v4818, %v4819
  %v4821 = vand.u32 %v4820, 4294901760
  %4822 = vmatpush1.msra.mxu0 %v4821
  %4823 = vmatprep.subr.mxu0 0.0
  %v4824 = vand.u32 %v4666, 4294901760
  %v4825 = vsub.f32 %v4666, %v4824
  %v4826 = vand.u32 %v4825, 4294901760
  %v4827 = vsub.f32 %v4825, %v4826
  %v4828 = vand.u32 %v4827, 4294901760
  %4829 = vmatpush1.msra.mxu0 %v4828
  %4830 = vmatprep.subr.mxu0 0.0
  %4831 = vmatpush1.msra.mxu0 0.0
  %4832 = vmatprep.subr.mxu0 0.0
  %4833 = vmatpush1.msra.mxu0 0.0
  %4834 = vmatprep.subr.mxu0 0.0
  %4835 = vmatpush1.msra.mxu0 0.0
  %4836 = vmatprep.subr.mxu0 0.0
  %4837 = vmatpush1.msra.mxu0 0.0
  %4838 = vmatprep.subr.mxu0 0.0
  %4839 = vmatpush1.msra.mxu0 0.0
  %4840 = vmatprep.subr.mxu0 0.0
  %4841 = vmatpush1.msra.mxu0 0.0
  %4842 = vmatprep.subr.mxu0 0.0
  %4843 = vmatpush1.msra.mxu0 0.0
  %4844 = vmatprep.subr.mxu0 0.0
  %4845 = vmatpush1.msra.mxu0 0.0
  %4846 = vmatprep.subr.mxu0 0.0
  %4847 = vmatpush1.msra.mxu0 0.0
  %4848 = vmatprep.subr.mxu0 0.0
  %4849 = vmatpush1.msra.mxu0 0.0
  %4850 = vmatprep.subr.mxu0 0.0
  %4851 = vmatpush1.msra.mxu0 0.0
  %4852 = vmatprep.subr.mxu0 0.0
  %4853 = vmatpush1.msra.mxu0 0.0
  %4854 = vmatprep.subr.mxu0 0.0
  %4855 = vmatpush1.msra.mxu0 0.0
  %4856 = vmatprep.subr.mxu0 0.0
  %4857 = vmatpush1.msra.mxu0 0.0
  %4858 = vmatprep.subr.mxu0 0.0
  %4859 = vmatpush1.msra.mxu0 0.0
  %4860 = vmatprep.subr.mxu0 0.0
  %4861 = vmatpush1.msra.mxu0 0.0
  %4862 = vmatprep.subr.mxu0 0.0
  %4863 = vmatpush1.msra.mxu0 0.0
  %4864 = vmatprep.subr.mxu0 0.0
  %4865 = vmatpush1.msra.mxu0 0.0
  %4866 = vmatprep.subr.mxu0 0.0
  %4867 = vmatpush1.msra.mxu0 0.0
  %4868 = vmatprep.subr.mxu0 0.0
  %4869 = vmatpush1.msra.mxu0 0.0
  %4870 = vmatprep.subr.mxu0 0.0
  %4871 = vmatpush1.msra.mxu0 0.0
  %4872 = vmatprep.subr.mxu0 0.0
  %4873 = vmatpush1.msra.mxu0 0.0
  %4874 = vmatprep.mubr.f32.mxu0 0.0
  %v4875 = vand.u32 %v4673, 4294901760
  %4876 = vmatmul.mubr.f32.gmra.mrb[0].mxu0 %v4875
  %v4877 = vpop.f32.mrb[0].mxu0
  %v4878 = vadd.f32 %v4757, %v4877
  %v4879 = vpop.f32.mrb[0].mxu0
  %4880 = vdwg.mxu0
  %4881 = vmatprep.subr.mxu0 0.0
  %v4882 = vand.u32 %v4657, 4294901760
  %v4883 = vsub.f32 %v4657, %v4882
  %4884 = vmatpush1.msra.mxu0 %v4883
  %4885 = vmatprep.subr.mxu0 0.0
  %v4886 = vand.u32 %v4658, 4294901760
  %v4887 = vsub.f32 %v4658, %v4886
  %4888 = vmatpush1.msra.mxu0 %v4887
  %4889 = vmatprep.subr.mxu0 0.0
  %v4890 = vand.u32 %v4659, 4294901760
  %v4891 = vsub.f32 %v4659, %v4890
  %4892 = vmatpush1.msra.mxu0 %v4891
  %4893 = vmatprep.subr.mxu0 0.0
  %v4894 = vand.u32 %v4660, 4294901760
  %v4895 = vsub.f32 %v4660, %v4894
  %4896 = vmatpush1.msra.mxu0 %v4895
  %4897 = vmatprep.subr.mxu0 0.0
  %v4898 = vand.u32 %v4661, 4294901760
  %v4899 = vsub.f32 %v4661, %v4898
  %4900 = vmatpush1.msra.mxu0 %v4899
  %4901 = vmatprep.subr.mxu0 0.0
  %v4902 = vand.u32 %v4662, 4294901760
  %v4903 = vsub.f32 %v4662, %v4902
  %4904 = vmatpush1.msra.mxu0 %v4903
  %4905 = vmatprep.subr.mxu0 0.0
  %v4906 = vand.u32 %v4663, 4294901760
  %v4907 = vsub.f32 %v4663, %v4906
  %4908 = vmatpush1.msra.mxu0 %v4907
  %4909 = vmatprep.subr.mxu0 0.0
  %v4910 = vand.u32 %v4664, 4294901760
  %v4911 = vsub.f32 %v4664, %v4910
  %4912 = vmatpush1.msra.mxu0 %v4911
  %4913 = vmatprep.subr.mxu0 0.0
  %v4914 = vand.u32 %v4665, 4294901760
  %v4915 = vsub.f32 %v4665, %v4914
  %4916 = vmatpush1.msra.mxu0 %v4915
  %4917 = vmatprep.subr.mxu0 0.0
  %v4918 = vand.u32 %v4666, 4294901760
  %v4919 = vsub.f32 %v4666, %v4918
  %4920 = vmatpush1.msra.mxu0 %v4919
  %4921 = vmatprep.subr.mxu0 0.0
  %4922 = vmatpush1.msra.mxu0 0.0
  %4923 = vmatprep.subr.mxu0 0.0
  %4924 = vmatpush1.msra.mxu0 0.0
  %4925 = vmatprep.subr.mxu0 0.0
  %4926 = vmatpush1.msra.mxu0 0.0
  %4927 = vmatprep.subr.mxu0 0.0
  %4928 = vmatpush1.msra.mxu0 0.0
  %4929 = vmatprep.subr.mxu0 0.0
  %4930 = vmatpush1.msra.mxu0 0.0
  %4931 = vmatprep.subr.mxu0 0.0
  %4932 = vmatpush1.msra.mxu0 0.0
  %4933 = vmatprep.subr.mxu0 0.0
  %4934 = vmatpush1.msra.mxu0 0.0
  %4935 = vmatprep.subr.mxu0 0.0
  %4936 = vmatpush1.msra.mxu0 0.0
  %4937 = vmatprep.subr.mxu0 0.0
  %4938 = vmatpush1.msra.mxu0 0.0
  %4939 = vmatprep.subr.mxu0 0.0
  %4940 = vmatpush1.msra.mxu0 0.0
  %4941 = vmatprep.subr.mxu0 0.0
  %4942 = vmatpush1.msra.mxu0 0.0
  %4943 = vmatprep.subr.mxu0 0.0
  %4944 = vmatpush1.msra.mxu0 0.0
  %4945 = vmatprep.subr.mxu0 0.0
  %4946 = vmatpush1.msra.mxu0 0.0
  %4947 = vmatprep.subr.mxu0 0.0
  %4948 = vmatpush1.msra.mxu0 0.0
  %4949 = vmatprep.subr.mxu0 0.0
  %4950 = vmatpush1.msra.mxu0 0.0
  %4951 = vmatprep.subr.mxu0 0.0
  %4952 = vmatpush1.msra.mxu0 0.0
  %4953 = vmatprep.subr.mxu0 0.0
  %4954 = vmatpush1.msra.mxu0 0.0
  %4955 = vmatprep.subr.mxu0 0.0
  %4956 = vmatpush1.msra.mxu0 0.0
  %4957 = vmatprep.subr.mxu0 0.0
  %4958 = vmatpush1.msra.mxu0 0.0
  %4959 = vmatprep.subr.mxu0 0.0
  %4960 = vmatpush1.msra.mxu0 0.0
  %4961 = vmatprep.subr.mxu0 0.0
  %4962 = vmatpush1.msra.mxu0 0.0
  %4963 = vmatprep.subr.mxu0 0.0
  %4964 = vmatpush1.msra.mxu0 0.0
  %4965 = vmatprep.mubr.f32.mxu0 0.0
  %v4966 = vand.u32 %v4673, 4294901760
  %v4967 = vsub.f32 %v4673, %v4966
  %4968 = vmatmul.mubr.f32.gmra.mrb[0].mxu0 %v4967
  %v4969 = vpop.f32.mrb[0].mxu0
  %v4970 = vadd.f32 %v4878, %v4969
  %v4971 = vpop.f32.mrb[0].mxu0
  %4972 = vdwg.mxu0
  %4973 = vmatprep.subr.mxu0 0.0
  %v4974 = vand.u32 %v4657, 4294901760
  %4975 = vmatpush1.msra.mxu0 %v4974
  %4976 = vmatprep.subr.mxu0 0.0
  %v4977 = vand.u32 %v4658, 4294901760
  %4978 = vmatpush1.msra.mxu0 %v4977
  %4979 = vmatprep.subr.mxu0 0.0
  %v4980 = vand.u32 %v4659, 4294901760
  %4981 = vmatpush1.msra.mxu0 %v4980
  %4982 = vmatprep.subr.mxu0 0.0
  %v4983 = vand.u32 %v4660, 4294901760
  %4984 = vmatpush1.msra.mxu0 %v4983
  %4985 = vmatprep.subr.mxu0 0.0
  %v4986 = vand.u32 %v4661, 4294901760
  %4987 = vmatpush1.msra.mxu0 %v4986
  %4988 = vmatprep.subr.mxu0 0.0
  %v4989 = vand.u32 %v4662, 4294901760
  %4990 = vmatpush1.msra.mxu0 %v4989
  %4991 = vmatprep.subr.mxu0 0.0
  %v4992 = vand.u32 %v4663, 4294901760
  %4993 = vmatpush1.msra.mxu0 %v4992
  %4994 = vmatprep.subr.mxu0 0.0
  %v4995 = vand.u32 %v4664, 4294901760
  %4996 = vmatpush1.msra.mxu0 %v4995
  %4997 = vmatprep.subr.mxu0 0.0
  %v4998 = vand.u32 %v4665, 4294901760
  %4999 = vmatpush1.msra.mxu0 %v4998
  %5000 = vmatprep.subr.mxu0 0.0
  %v5001 = vand.u32 %v4666, 4294901760
  %5002 = vmatpush1.msra.mxu0 %v5001
  %5003 = vmatprep.subr.mxu0 0.0
  %5004 = vmatpush1.msra.mxu0 0.0
  %5005 = vmatprep.subr.mxu0 0.0
  %5006 = vmatpush1.msra.mxu0 0.0
  %5007 = vmatprep.subr.mxu0 0.0
  %5008 = vmatpush1.msra.mxu0 0.0
  %5009 = vmatprep.subr.mxu0 0.0
  %5010 = vmatpush1.msra.mxu0 0.0
  %5011 = vmatprep.subr.mxu0 0.0
  %5012 = vmatpush1.msra.mxu0 0.0
  %5013 = vmatprep.subr.mxu0 0.0
  %5014 = vmatpush1.msra.mxu0 0.0
  %5015 = vmatprep.subr.mxu0 0.0
  %5016 = vmatpush1.msra.mxu0 0.0
  %5017 = vmatprep.subr.mxu0 0.0
  %5018 = vmatpush1.msra.mxu0 0.0
  %5019 = vmatprep.subr.mxu0 0.0
  %5020 = vmatpush1.msra.mxu0 0.0
  %5021 = vmatprep.subr.mxu0 0.0
  %5022 = vmatpush1.msra.mxu0 0.0
  %5023 = vmatprep.subr.mxu0 0.0
  %5024 = vmatpush1.msra.mxu0 0.0
  %5025 = vmatprep.subr.mxu0 0.0
  %5026 = vmatpush1.msra.mxu0 0.0
  %5027 = vmatprep.subr.mxu0 0.0
  %5028 = vmatpush1.msra.mxu0 0.0
  %5029 = vmatprep.subr.mxu0 0.0
  %5030 = vmatpush1.msra.mxu0 0.0
  %5031 = vmatprep.subr.mxu0 0.0
  %5032 = vmatpush1.msra.mxu0 0.0
  %5033 = vmatprep.subr.mxu0 0.0
  %5034 = vmatpush1.msra.mxu0 0.0
  %5035 = vmatprep.subr.mxu0 0.0
  %5036 = vmatpush1.msra.mxu0 0.0
  %5037 = vmatprep.subr.mxu0 0.0
  %5038 = vmatpush1.msra.mxu0 0.0
  %5039 = vmatprep.subr.mxu0 0.0
  %5040 = vmatpush1.msra.mxu0 0.0
  %5041 = vmatprep.subr.mxu0 0.0
  %5042 = vmatpush1.msra.mxu0 0.0
  %5043 = vmatprep.subr.mxu0 0.0
  %5044 = vmatpush1.msra.mxu0 0.0
  %5045 = vmatprep.subr.mxu0 0.0
  %5046 = vmatpush1.msra.mxu0 0.0
  %5047 = vmatprep.mubr.f32.mxu0 0.0
  %v5048 = vand.u32 %v4673, 4294901760
  %v5049 = vsub.f32 %v4673, %v5048
  %v5050 = vand.u32 %v5049, 4294901760
  %5051 = vmatmul.mubr.f32.gmra.mrb[0].mxu0 %v5050
  %v5052 = vpop.f32.mrb[0].mxu0
  %v5053 = vadd.f32 %v4970, %v5052
  %v5054 = vpop.f32.mrb[0].mxu0
  %5055 = vdwg.mxu0
  %5056 = vmatprep.subr.mxu0 0.0
  %v5057 = vand.u32 %v4657, 4294901760
  %v5058 = vsub.f32 %v4657, %v5057
  %v5059 = vand.u32 %v5058, 4294901760
  %5060 = vmatpush1.msra.mxu0 %v5059
  %5061 = vmatprep.subr.mxu0 0.0
  %v5062 = vand.u32 %v4658, 4294901760
  %v5063 = vsub.f32 %v4658, %v5062
  %v5064 = vand.u32 %v5063, 4294901760
  %5065 = vmatpush1.msra.mxu0 %v5064
  %5066 = vmatprep.subr.mxu0 0.0
  %v5067 = vand.u32 %v4659, 4294901760
  %v5068 = vsub.f32 %v4659, %v5067
  %v5069 = vand.u32 %v5068, 4294901760
  %5070 = vmatpush1.msra.mxu0 %v5069
  %5071 = vmatprep.subr.mxu0 0.0
  %v5072 = vand.u32 %v4660, 4294901760
  %v5073 = vsub.f32 %v4660, %v5072
  %v5074 = vand.u32 %v5073, 4294901760
  %5075 = vmatpush1.msra.mxu0 %v5074
  %5076 = vmatprep.subr.mxu0 0.0
  %v5077 = vand.u32 %v4661, 4294901760
  %v5078 = vsub.f32 %v4661, %v5077
  %v5079 = vand.u32 %v5078, 4294901760
  %5080 = vmatpush1.msra.mxu0 %v5079
  %5081 = vmatprep.subr.mxu0 0.0
  %v5082 = vand.u32 %v4662, 4294901760
  %v5083 = vsub.f32 %v4662, %v5082
  %v5084 = vand.u32 %v5083, 4294901760
  %5085 = vmatpush1.msra.mxu0 %v5084
  %5086 = vmatprep.subr.mxu0 0.0
  %v5087 = vand.u32 %v4663, 4294901760
  %v5088 = vsub.f32 %v4663, %v5087
  %v5089 = vand.u32 %v5088, 4294901760
  %5090 = vmatpush1.msra.mxu0 %v5089
  %5091 = vmatprep.subr.mxu0 0.0
  %v5092 = vand.u32 %v4664, 4294901760
  %v5093 = vsub.f32 %v4664, %v5092
  %v5094 = vand.u32 %v5093, 4294901760
  %5095 = vmatpush1.msra.mxu0 %v5094
  %5096 = vmatprep.subr.mxu0 0.0
  %v5097 = vand.u32 %v4665, 4294901760
  %v5098 = vsub.f32 %v4665, %v5097
  %v5099 = vand.u32 %v5098, 4294901760
  %5100 = vmatpush1.msra.mxu0 %v5099
  %5101 = vmatprep.subr.mxu0 0.0
  %v5102 = vand.u32 %v4666, 4294901760
  %v5103 = vsub.f32 %v4666, %v5102
  %v5104 = vand.u32 %v5103, 4294901760
  %5105 = vmatpush1.msra.mxu0 %v5104
  %5106 = vmatprep.subr.mxu0 0.0
  %5107 = vmatpush1.msra.mxu0 0.0
  %5108 = vmatprep.subr.mxu0 0.0
  %5109 = vmatpush1.msra.mxu0 0.0
  %5110 = vmatprep.subr.mxu0 0.0
  %5111 = vmatpush1.msra.mxu0 0.0
  %5112 = vmatprep.subr.mxu0 0.0
  %5113 = vmatpush1.msra.mxu0 0.0
  %5114 = vmatprep.subr.mxu0 0.0
  %5115 = vmatpush1.msra.mxu0 0.0
  %5116 = vmatprep.subr.mxu0 0.0
  %5117 = vmatpush1.msra.mxu0 0.0
  %5118 = vmatprep.subr.mxu0 0.0
  %5119 = vmatpush1.msra.mxu0 0.0
  %5120 = vmatprep.subr.mxu0 0.0
  %5121 = vmatpush1.msra.mxu0 0.0
  %5122 = vmatprep.subr.mxu0 0.0
  %5123 = vmatpush1.msra.mxu0 0.0
  %5124 = vmatprep.subr.mxu0 0.0
  %5125 = vmatpush1.msra.mxu0 0.0
  %5126 = vmatprep.subr.mxu0 0.0
  %5127 = vmatpush1.msra.mxu0 0.0
  %5128 = vmatprep.subr.mxu0 0.0
  %5129 = vmatpush1.msra.mxu0 0.0
  %5130 = vmatprep.subr.mxu0 0.0
  %5131 = vmatpush1.msra.mxu0 0.0
  %5132 = vmatprep.subr.mxu0 0.0
  %5133 = vmatpush1.msra.mxu0 0.0
  %5134 = vmatprep.subr.mxu0 0.0
  %5135 = vmatpush1.msra.mxu0 0.0
  %5136 = vmatprep.subr.mxu0 0.0
  %5137 = vmatpush1.msra.mxu0 0.0
  %5138 = vmatprep.subr.mxu0 0.0
  %5139 = vmatpush1.msra.mxu0 0.0
  %5140 = vmatprep.subr.mxu0 0.0
  %5141 = vmatpush1.msra.mxu0 0.0
  %5142 = vmatprep.subr.mxu0 0.0
  %5143 = vmatpush1.msra.mxu0 0.0
  %5144 = vmatprep.subr.mxu0 0.0
  %5145 = vmatpush1.msra.mxu0 0.0
  %5146 = vmatprep.subr.mxu0 0.0
  %5147 = vmatpush1.msra.mxu0 0.0
  %5148 = vmatprep.subr.mxu0 0.0
  %5149 = vmatpush1.msra.mxu0 0.0
  %5150 = vmatprep.mubr.f32.mxu0 0.0
  %v5151 = vand.u32 %v4673, 4294901760
  %5152 = vmatmul.mubr.f32.gmra.mrb[0].mxu0 %v5151
  %v5153 = vpop.f32.mrb[0].mxu0
  %v5154 = vadd.f32 %v5053, %v5153
  %v5155 = vpop.f32.mrb[0].mxu0
  %5156 = vdwg.mxu0
  %5157 = vmatprep.subr.mxu0 0.0
  %v5158 = vand.u32 %v4657, 4294901760
  %5159 = vmatpush1.msra.mxu0 %v5158
  %5160 = vmatprep.subr.mxu0 0.0
  %v5161 = vand.u32 %v4658, 4294901760
  %5162 = vmatpush1.msra.mxu0 %v5161
  %5163 = vmatprep.subr.mxu0 0.0
  %v5164 = vand.u32 %v4659, 4294901760
  %5165 = vmatpush1.msra.mxu0 %v5164
  %5166 = vmatprep.subr.mxu0 0.0
  %v5167 = vand.u32 %v4660, 4294901760
  %5168 = vmatpush1.msra.mxu0 %v5167
  %5169 = vmatprep.subr.mxu0 0.0
  %v5170 = vand.u32 %v4661, 4294901760
  %5171 = vmatpush1.msra.mxu0 %v5170
  %5172 = vmatprep.subr.mxu0 0.0
  %v5173 = vand.u32 %v4662, 4294901760
  %5174 = vmatpush1.msra.mxu0 %v5173
  %5175 = vmatprep.subr.mxu0 0.0
  %v5176 = vand.u32 %v4663, 4294901760
  %5177 = vmatpush1.msra.mxu0 %v5176
  %5178 = vmatprep.subr.mxu0 0.0
  %v5179 = vand.u32 %v4664, 4294901760
  %5180 = vmatpush1.msra.mxu0 %v5179
  %5181 = vmatprep.subr.mxu0 0.0
  %v5182 = vand.u32 %v4665, 4294901760
  %5183 = vmatpush1.msra.mxu0 %v5182
  %5184 = vmatprep.subr.mxu0 0.0
  %v5185 = vand.u32 %v4666, 4294901760
  %5186 = vmatpush1.msra.mxu0 %v5185
  %5187 = vmatprep.subr.mxu0 0.0
  %5188 = vmatpush1.msra.mxu0 0.0
  %5189 = vmatprep.subr.mxu0 0.0
  %5190 = vmatpush1.msra.mxu0 0.0
  %5191 = vmatprep.subr.mxu0 0.0
  %5192 = vmatpush1.msra.mxu0 0.0
  %5193 = vmatprep.subr.mxu0 0.0
  %5194 = vmatpush1.msra.mxu0 0.0
  %5195 = vmatprep.subr.mxu0 0.0
  %5196 = vmatpush1.msra.mxu0 0.0
  %5197 = vmatprep.subr.mxu0 0.0
  %5198 = vmatpush1.msra.mxu0 0.0
  %5199 = vmatprep.subr.mxu0 0.0
  %5200 = vmatpush1.msra.mxu0 0.0
  %5201 = vmatprep.subr.mxu0 0.0
  %5202 = vmatpush1.msra.mxu0 0.0
  %5203 = vmatprep.subr.mxu0 0.0
  %5204 = vmatpush1.msra.mxu0 0.0
  %5205 = vmatprep.subr.mxu0 0.0
  %5206 = vmatpush1.msra.mxu0 0.0
  %5207 = vmatprep.subr.mxu0 0.0
  %5208 = vmatpush1.msra.mxu0 0.0
  %5209 = vmatprep.subr.mxu0 0.0
  %5210 = vmatpush1.msra.mxu0 0.0
  %5211 = vmatprep.subr.mxu0 0.0
  %5212 = vmatpush1.msra.mxu0 0.0
  %5213 = vmatprep.subr.mxu0 0.0
  %5214 = vmatpush1.msra.mxu0 0.0
  %5215 = vmatprep.subr.mxu0 0.0
  %5216 = vmatpush1.msra.mxu0 0.0
  %5217 = vmatprep.subr.mxu0 0.0
  %5218 = vmatpush1.msra.mxu0 0.0
  %5219 = vmatprep.subr.mxu0 0.0
  %5220 = vmatpush1.msra.mxu0 0.0
  %5221 = vmatprep.subr.mxu0 0.0
  %5222 = vmatpush1.msra.mxu0 0.0
  %5223 = vmatprep.subr.mxu0 0.0
  %5224 = vmatpush1.msra.mxu0 0.0
  %5225 = vmatprep.subr.mxu0 0.0
  %5226 = vmatpush1.msra.mxu0 0.0
  %5227 = vmatprep.subr.mxu0 0.0
  %5228 = vmatpush1.msra.mxu0 0.0
  %5229 = vmatprep.subr.mxu0 0.0
  %5230 = vmatpush1.msra.mxu0 0.0
  %5231 = vmatprep.mubr.f32.mxu0 0.0
  %v5232 = vand.u32 %v4673, 4294901760
  %5233 = vmatmul.mubr.f32.gmra.mrb[0].mxu0 %v5232
  %v5234 = vpop.f32.mrb[0].mxu0
  %v5235 = vadd.f32 %v5154, %v5234
  %v5236 = vpop.f32.mrb[0].mxu0
  %5237 = vdwg.mxu0
  %v5238 = vmax.f32 %v5235, 0.0
  %v5239 = vld [vmem:[%s1 + $0x130] sm:$0xff]
  %v5240 = vld [vmem:[%s1 + $0x138] sm:$0xff]
  %v5241 = vld [vmem:[%s1 + $0x140] sm:$0xff]
  %v5242 = vld [vmem:[%s1 + $0x148] sm:$0xff]
  %v5243 = vld [vmem:[%s1 + $0x150] sm:$0x1]
  %v5244 = vlaneseq
  %v5245 = vshrl.u32 %v5244, 7
  %v5246 = vsub.s32 0, %v5245
  %v5247 = vrot.slane %v5243, %v5246
  %v5249 = vsel %vm3529, %v5238, 0
  %5251 = vmatprep.subr.mxu0 0.0
  %v5252 = vand.u32 %v5239, 4294901760
  %5253 = vmatpush1.msra.mxu0 %v5252
  %5254 = vmatprep.subr.mxu0 0.0
  %v5255 = vand.u32 %v5240, 4294901760
  %5256 = vmatpush1.msra.mxu0 %v5255
  %5257 = vmatprep.subr.mxu0 0.0
  %v5258 = vand.u32 %v5241, 4294901760
  %5259 = vmatpush1.msra.mxu0 %v5258
  %5260 = vmatprep.subr.mxu0 0.0
  %v5261 = vand.u32 %v5242, 4294901760
  %5262 = vmatpush1.msra.mxu0 %v5261
  %5263 = vmatprep.subr.mxu0 0.0
  %5264 = vmatpush1.msra.mxu0 0.0
  %5265 = vmatprep.subr.mxu0 0.0
  %5266 = vmatpush1.msra.mxu0 0.0
  %5267 = vmatprep.subr.mxu0 0.0
  %5268 = vmatpush1.msra.mxu0 0.0
  %5269 = vmatprep.subr.mxu0 0.0
  %5270 = vmatpush1.msra.mxu0 0.0
  %5271 = vmatprep.subr.mxu0 0.0
  %5272 = vmatpush1.msra.mxu0 0.0
  %5273 = vmatprep.subr.mxu0 0.0
  %5274 = vmatpush1.msra.mxu0 0.0
  %5275 = vmatprep.subr.mxu0 0.0
  %5276 = vmatpush1.msra.mxu0 0.0
  %5277 = vmatprep.subr.mxu0 0.0
  %5278 = vmatpush1.msra.mxu0 0.0
  %5279 = vmatprep.subr.mxu0 0.0
  %5280 = vmatpush1.msra.mxu0 0.0
  %5281 = vmatprep.subr.mxu0 0.0
  %5282 = vmatpush1.msra.mxu0 0.0
  %5283 = vmatprep.subr.mxu0 0.0
  %5284 = vmatpush1.msra.mxu0 0.0
  %5285 = vmatprep.subr.mxu0 0.0
  %5286 = vmatpush1.msra.mxu0 0.0
  %5287 = vmatprep.subr.mxu0 0.0
  %5288 = vmatpush1.msra.mxu0 0.0
  %5289 = vmatprep.subr.mxu0 0.0
  %5290 = vmatpush1.msra.mxu0 0.0
  %5291 = vmatprep.subr.mxu0 0.0
  %5292 = vmatpush1.msra.mxu0 0.0
  %5293 = vmatprep.subr.mxu0 0.0
  %5294 = vmatpush1.msra.mxu0 0.0
  %5295 = vmatprep.subr.mxu0 0.0
  %5296 = vmatpush1.msra.mxu0 0.0
  %5297 = vmatprep.subr.mxu0 0.0
  %5298 = vmatpush1.msra.mxu0 0.0
  %5299 = vmatprep.subr.mxu0 0.0
  %5300 = vmatpush1.msra.mxu0 0.0
  %5301 = vmatprep.subr.mxu0 0.0
  %5302 = vmatpush1.msra.mxu0 0.0
  %5303 = vmatprep.subr.mxu0 0.0
  %5304 = vmatpush1.msra.mxu0 0.0
  %5305 = vmatprep.subr.mxu0 0.0
  %5306 = vmatpush1.msra.mxu0 0.0
  %5307 = vmatprep.subr.mxu0 0.0
  %5308 = vmatpush1.msra.mxu0 0.0
  %5309 = vmatprep.subr.mxu0 0.0
  %5310 = vmatpush1.msra.mxu0 0.0
  %5311 = vmatprep.subr.mxu0 0.0
  %5312 = vmatpush1.msra.mxu0 0.0
  %5313 = vmatprep.subr.mxu0 0.0
  %5314 = vmatpush1.msra.mxu0 0.0
  %5315 = vmatprep.subr.mxu0 0.0
  %5316 = vmatpush1.msra.mxu0 0.0
  %5317 = vmatprep.subr.mxu0 0.0
  %5318 = vmatpush1.msra.mxu0 0.0
  %5319 = vmatprep.mubr.f32.mxu0 0.0
  %v5320 = vand.u32 %v5249, 4294901760
  %v5321 = vsub.f32 %v5249, %v5320
  %v5322 = vand.u32 %v5321, 4294901760
  %v5323 = vsub.f32 %v5321, %v5322
  %v5324 = vand.u32 %v5323, 4294901760
  %5325 = vmatmul.mubr.f32.gmra.mrb[0].mxu0 %v5324
  %v5326 = vpop.f32.mrb[0].mxu0
  %v5327 = vadd.f32 %v5247, %v5326
  %v5328 = vpop.f32.mrb[0].mxu0
  %5329 = vdwg.mxu0
  %5330 = vmatprep.subr.mxu0 0.0
  %v5331 = vand.u32 %v5239, 4294901760
  %v5332 = vsub.f32 %v5239, %v5331
  %v5333 = vand.u32 %v5332, 4294901760
  %v5334 = vsub.f32 %v5332, %v5333
  %v5335 = vand.u32 %v5334, 4294901760
  %5336 = vmatpush1.msra.mxu0 %v5335
  %5337 = vmatprep.subr.mxu0 0.0
  %v5338 = vand.u32 %v5240, 4294901760
  %v5339 = vsub.f32 %v5240, %v5338
  %v5340 = vand.u32 %v5339, 4294901760
  %v5341 = vsub.f32 %v5339, %v5340
  %v5342 = vand.u32 %v5341, 4294901760
  %5343 = vmatpush1.msra.mxu0 %v5342
  %5344 = vmatprep.subr.mxu0 0.0
  %v5345 = vand.u32 %v5241, 4294901760
  %v5346 = vsub.f32 %v5241, %v5345
  %v5347 = vand.u32 %v5346, 4294901760
  %v5348 = vsub.f32 %v5346, %v5347
  %v5349 = vand.u32 %v5348, 4294901760
  %5350 = vmatpush1.msra.mxu0 %v5349
  %5351 = vmatprep.subr.mxu0 0.0
  %v5352 = vand.u32 %v5242, 4294901760
  %v5353 = vsub.f32 %v5242, %v5352
  %v5354 = vand.u32 %v5353, 4294901760
  %v5355 = vsub.f32 %v5353, %v5354
  %v5356 = vand.u32 %v5355, 4294901760
  %5357 = vmatpush1.msra.mxu0 %v5356
  %5358 = vmatprep.subr.mxu0 0.0
  %5359 = vmatpush1.msra.mxu0 0.0
  %5360 = vmatprep.subr.mxu0 0.0
  %5361 = vmatpush1.msra.mxu0 0.0
  %5362 = vmatprep.subr.mxu0 0.0
  %5363 = vmatpush1.msra.mxu0 0.0
  %5364 = vmatprep.subr.mxu0 0.0
  %5365 = vmatpush1.msra.mxu0 0.0
  %5366 = vmatprep.subr.mxu0 0.0
  %5367 = vmatpush1.msra.mxu0 0.0
  %5368 = vmatprep.subr.mxu0 0.0
  %5369 = vmatpush1.msra.mxu0 0.0
  %5370 = vmatprep.subr.mxu0 0.0
  %5371 = vmatpush1.msra.mxu0 0.0
  %5372 = vmatprep.subr.mxu0 0.0
  %5373 = vmatpush1.msra.mxu0 0.0
  %5374 = vmatprep.subr.mxu0 0.0
  %5375 = vmatpush1.msra.mxu0 0.0
  %5376 = vmatprep.subr.mxu0 0.0
  %5377 = vmatpush1.msra.mxu0 0.0
  %5378 = vmatprep.subr.mxu0 0.0
  %5379 = vmatpush1.msra.mxu0 0.0
  %5380 = vmatprep.subr.mxu0 0.0
  %5381 = vmatpush1.msra.mxu0 0.0
  %5382 = vmatprep.subr.mxu0 0.0
  %5383 = vmatpush1.msra.mxu0 0.0
  %5384 = vmatprep.subr.mxu0 0.0
  %5385 = vmatpush1.msra.mxu0 0.0
  %5386 = vmatprep.subr.mxu0 0.0
  %5387 = vmatpush1.msra.mxu0 0.0
  %5388 = vmatprep.subr.mxu0 0.0
  %5389 = vmatpush1.msra.mxu0 0.0
  %5390 = vmatprep.subr.mxu0 0.0
  %5391 = vmatpush1.msra.mxu0 0.0
  %5392 = vmatprep.subr.mxu0 0.0
  %5393 = vmatpush1.msra.mxu0 0.0
  %5394 = vmatprep.subr.mxu0 0.0
  %5395 = vmatpush1.msra.mxu0 0.0
  %5396 = vmatprep.subr.mxu0 0.0
  %5397 = vmatpush1.msra.mxu0 0.0
  %5398 = vmatprep.subr.mxu0 0.0
  %5399 = vmatpush1.msra.mxu0 0.0
  %5400 = vmatprep.subr.mxu0 0.0
  %5401 = vmatpush1.msra.mxu0 0.0
  %5402 = vmatprep.subr.mxu0 0.0
  %5403 = vmatpush1.msra.mxu0 0.0
  %5404 = vmatprep.subr.mxu0 0.0
  %5405 = vmatpush1.msra.mxu0 0.0
  %5406 = vmatprep.subr.mxu0 0.0
  %5407 = vmatpush1.msra.mxu0 0.0
  %5408 = vmatprep.subr.mxu0 0.0
  %5409 = vmatpush1.msra.mxu0 0.0
  %5410 = vmatprep.subr.mxu0 0.0
  %5411 = vmatpush1.msra.mxu0 0.0
  %5412 = vmatprep.subr.mxu0 0.0
  %5413 = vmatpush1.msra.mxu0 0.0
  %5414 = vmatprep.mubr.f32.mxu0 0.0
  %v5415 = vand.u32 %v5249, 4294901760
  %5416 = vmatmul.mubr.f32.gmra.mrb[0].mxu0 %v5415
  %v5417 = vpop.f32.mrb[0].mxu0
  %v5418 = vadd.f32 %v5327, %v5417
  %v5419 = vpop.f32.mrb[0].mxu0
  %5420 = vdwg.mxu0
  %5421 = vmatprep.subr.mxu0 0.0
  %v5422 = vand.u32 %v5239, 4294901760
  %v5423 = vsub.f32 %v5239, %v5422
  %5424 = vmatpush1.msra.mxu0 %v5423
  %5425 = vmatprep.subr.mxu0 0.0
  %v5426 = vand.u32 %v5240, 4294901760
  %v5427 = vsub.f32 %v5240, %v5426
  %5428 = vmatpush1.msra.mxu0 %v5427
  %5429 = vmatprep.subr.mxu0 0.0
  %v5430 = vand.u32 %v5241, 4294901760
  %v5431 = vsub.f32 %v5241, %v5430
  %5432 = vmatpush1.msra.mxu0 %v5431
  %5433 = vmatprep.subr.mxu0 0.0
  %v5434 = vand.u32 %v5242, 4294901760
  %v5435 = vsub.f32 %v5242, %v5434
  %5436 = vmatpush1.msra.mxu0 %v5435
  %5437 = vmatprep.subr.mxu0 0.0
  %5438 = vmatpush1.msra.mxu0 0.0
  %5439 = vmatprep.subr.mxu0 0.0
  %5440 = vmatpush1.msra.mxu0 0.0
  %5441 = vmatprep.subr.mxu0 0.0
  %5442 = vmatpush1.msra.mxu0 0.0
  %5443 = vmatprep.subr.mxu0 0.0
  %5444 = vmatpush1.msra.mxu0 0.0
  %5445 = vmatprep.subr.mxu0 0.0
  %5446 = vmatpush1.msra.mxu0 0.0
  %5447 = vmatprep.subr.mxu0 0.0
  %5448 = vmatpush1.msra.mxu0 0.0
  %5449 = vmatprep.subr.mxu0 0.0
  %5450 = vmatpush1.msra.mxu0 0.0
  %5451 = vmatprep.subr.mxu0 0.0
  %5452 = vmatpush1.msra.mxu0 0.0
  %5453 = vmatprep.subr.mxu0 0.0
  %5454 = vmatpush1.msra.mxu0 0.0
  %5455 = vmatprep.subr.mxu0 0.0
  %5456 = vmatpush1.msra.mxu0 0.0
  %5457 = vmatprep.subr.mxu0 0.0
  %5458 = vmatpush1.msra.mxu0 0.0
  %5459 = vmatprep.subr.mxu0 0.0
  %5460 = vmatpush1.msra.mxu0 0.0
  %5461 = vmatprep.subr.mxu0 0.0
  %5462 = vmatpush1.msra.mxu0 0.0
  %5463 = vmatprep.subr.mxu0 0.0
  %5464 = vmatpush1.msra.mxu0 0.0
  %5465 = vmatprep.subr.mxu0 0.0
  %5466 = vmatpush1.msra.mxu0 0.0
  %5467 = vmatprep.subr.mxu0 0.0
  %5468 = vmatpush1.msra.mxu0 0.0
  %5469 = vmatprep.subr.mxu0 0.0
  %5470 = vmatpush1.msra.mxu0 0.0
  %5471 = vmatprep.subr.mxu0 0.0
  %5472 = vmatpush1.msra.mxu0 0.0
  %5473 = vmatprep.subr.mxu0 0.0
  %5474 = vmatpush1.msra.mxu0 0.0
  %5475 = vmatprep.subr.mxu0 0.0
  %5476 = vmatpush1.msra.mxu0 0.0
  %5477 = vmatprep.subr.mxu0 0.0
  %5478 = vmatpush1.msra.mxu0 0.0
  %5479 = vmatprep.subr.mxu0 0.0
  %5480 = vmatpush1.msra.mxu0 0.0
  %5481 = vmatprep.subr.mxu0 0.0
  %5482 = vmatpush1.msra.mxu0 0.0
  %5483 = vmatprep.subr.mxu0 0.0
  %5484 = vmatpush1.msra.mxu0 0.0
  %5485 = vmatprep.subr.mxu0 0.0
  %5486 = vmatpush1.msra.mxu0 0.0
  %5487 = vmatprep.subr.mxu0 0.0
  %5488 = vmatpush1.msra.mxu0 0.0
  %5489 = vmatprep.subr.mxu0 0.0
  %5490 = vmatpush1.msra.mxu0 0.0
  %5491 = vmatprep.subr.mxu0 0.0
  %5492 = vmatpush1.msra.mxu0 0.0
  %5493 = vmatprep.mubr.f32.mxu0 0.0
  %v5494 = vand.u32 %v5249, 4294901760
  %v5495 = vsub.f32 %v5249, %v5494
  %5496 = vmatmul.mubr.f32.gmra.mrb[0].mxu0 %v5495
  %v5497 = vpop.f32.mrb[0].mxu0
  %v5498 = vadd.f32 %v5418, %v5497
  %v5499 = vpop.f32.mrb[0].mxu0
  %5500 = vdwg.mxu0
  %5501 = vmatprep.subr.mxu0 0.0
  %v5502 = vand.u32 %v5239, 4294901760
  %5503 = vmatpush1.msra.mxu0 %v5502
  %5504 = vmatprep.subr.mxu0 0.0
  %v5505 = vand.u32 %v5240, 4294901760
  %5506 = vmatpush1.msra.mxu0 %v5505
  %5507 = vmatprep.subr.mxu0 0.0
  %v5508 = vand.u32 %v5241, 4294901760
  %5509 = vmatpush1.msra.mxu0 %v5508
  %5510 = vmatprep.subr.mxu0 0.0
  %v5511 = vand.u32 %v5242, 4294901760
  %5512 = vmatpush1.msra.mxu0 %v5511
  %5513 = vmatprep.subr.mxu0 0.0
  %5514 = vmatpush1.msra.mxu0 0.0
  %5515 = vmatprep.subr.mxu0 0.0
  %5516 = vmatpush1.msra.mxu0 0.0
  %5517 = vmatprep.subr.mxu0 0.0
  %5518 = vmatpush1.msra.mxu0 0.0
  %5519 = vmatprep.subr.mxu0 0.0
  %5520 = vmatpush1.msra.mxu0 0.0
  %5521 = vmatprep.subr.mxu0 0.0
  %5522 = vmatpush1.msra.mxu0 0.0
  %5523 = vmatprep.subr.mxu0 0.0
  %5524 = vmatpush1.msra.mxu0 0.0
  %5525 = vmatprep.subr.mxu0 0.0
  %5526 = vmatpush1.msra.mxu0 0.0
  %5527 = vmatprep.subr.mxu0 0.0
  %5528 = vmatpush1.msra.mxu0 0.0
  %5529 = vmatprep.subr.mxu0 0.0
  %5530 = vmatpush1.msra.mxu0 0.0
  %5531 = vmatprep.subr.mxu0 0.0
  %5532 = vmatpush1.msra.mxu0 0.0
  %5533 = vmatprep.subr.mxu0 0.0
  %5534 = vmatpush1.msra.mxu0 0.0
  %5535 = vmatprep.subr.mxu0 0.0
  %5536 = vmatpush1.msra.mxu0 0.0
  %5537 = vmatprep.subr.mxu0 0.0
  %5538 = vmatpush1.msra.mxu0 0.0
  %5539 = vmatprep.subr.mxu0 0.0
  %5540 = vmatpush1.msra.mxu0 0.0
  %5541 = vmatprep.subr.mxu0 0.0
  %5542 = vmatpush1.msra.mxu0 0.0
  %5543 = vmatprep.subr.mxu0 0.0
  %5544 = vmatpush1.msra.mxu0 0.0
  %5545 = vmatprep.subr.mxu0 0.0
  %5546 = vmatpush1.msra.mxu0 0.0
  %5547 = vmatprep.subr.mxu0 0.0
  %5548 = vmatpush1.msra.mxu0 0.0
  %5549 = vmatprep.subr.mxu0 0.0
  %5550 = vmatpush1.msra.mxu0 0.0
  %5551 = vmatprep.subr.mxu0 0.0
  %5552 = vmatpush1.msra.mxu0 0.0
  %5553 = vmatprep.subr.mxu0 0.0
  %5554 = vmatpush1.msra.mxu0 0.0
  %5555 = vmatprep.subr.mxu0 0.0
  %5556 = vmatpush1.msra.mxu0 0.0
  %5557 = vmatprep.subr.mxu0 0.0
  %5558 = vmatpush1.msra.mxu0 0.0
  %5559 = vmatprep.subr.mxu0 0.0
  %5560 = vmatpush1.msra.mxu0 0.0
  %5561 = vmatprep.subr.mxu0 0.0
  %5562 = vmatpush1.msra.mxu0 0.0
  %5563 = vmatprep.subr.mxu0 0.0
  %5564 = vmatpush1.msra.mxu0 0.0
  %5565 = vmatprep.subr.mxu0 0.0
  %5566 = vmatpush1.msra.mxu0 0.0
  %5567 = vmatprep.subr.mxu0 0.0
  %5568 = vmatpush1.msra.mxu0 0.0
  %5569 = vmatprep.mubr.f32.mxu0 0.0
  %v5570 = vand.u32 %v5249, 4294901760
  %v5571 = vsub.f32 %v5249, %v5570
  %v5572 = vand.u32 %v5571, 4294901760
  %5573 = vmatmul.mubr.f32.gmra.mrb[0].mxu0 %v5572
  %v5574 = vpop.f32.mrb[0].mxu0
  %v5575 = vadd.f32 %v5498, %v5574
  %v5576 = vpop.f32.mrb[0].mxu0
  %5577 = vdwg.mxu0
  %5578 = vmatprep.subr.mxu0 0.0
  %v5579 = vand.u32 %v5239, 4294901760
  %v5580 = vsub.f32 %v5239, %v5579
  %v5581 = vand.u32 %v5580, 4294901760
  %5582 = vmatpush1.msra.mxu0 %v5581
  %5583 = vmatprep.subr.mxu0 0.0
  %v5584 = vand.u32 %v5240, 4294901760
  %v5585 = vsub.f32 %v5240, %v5584
  %v5586 = vand.u32 %v5585, 4294901760
  %5587 = vmatpush1.msra.mxu0 %v5586
  %5588 = vmatprep.subr.mxu0 0.0
  %v5589 = vand.u32 %v5241, 4294901760
  %v5590 = vsub.f32 %v5241, %v5589
  %v5591 = vand.u32 %v5590, 4294901760
  %5592 = vmatpush1.msra.mxu0 %v5591
  %5593 = vmatprep.subr.mxu0 0.0
  %v5594 = vand.u32 %v5242, 4294901760
  %v5595 = vsub.f32 %v5242, %v5594
  %v5596 = vand.u32 %v5595, 4294901760
  %5597 = vmatpush1.msra.mxu0 %v5596
  %5598 = vmatprep.subr.mxu0 0.0
  %5599 = vmatpush1.msra.mxu0 0.0
  %5600 = vmatprep.subr.mxu0 0.0
  %5601 = vmatpush1.msra.mxu0 0.0
  %5602 = vmatprep.subr.mxu0 0.0
  %5603 = vmatpush1.msra.mxu0 0.0
  %5604 = vmatprep.subr.mxu0 0.0
  %5605 = vmatpush1.msra.mxu0 0.0
  %5606 = vmatprep.subr.mxu0 0.0
  %5607 = vmatpush1.msra.mxu0 0.0
  %5608 = vmatprep.subr.mxu0 0.0
  %5609 = vmatpush1.msra.mxu0 0.0
  %5610 = vmatprep.subr.mxu0 0.0
  %5611 = vmatpush1.msra.mxu0 0.0
  %5612 = vmatprep.subr.mxu0 0.0
  %5613 = vmatpush1.msra.mxu0 0.0
  %5614 = vmatprep.subr.mxu0 0.0
  %5615 = vmatpush1.msra.mxu0 0.0
  %5616 = vmatprep.subr.mxu0 0.0
  %5617 = vmatpush1.msra.mxu0 0.0
  %5618 = vmatprep.subr.mxu0 0.0
  %5619 = vmatpush1.msra.mxu0 0.0
  %5620 = vmatprep.subr.mxu0 0.0
  %5621 = vmatpush1.msra.mxu0 0.0
  %5622 = vmatprep.subr.mxu0 0.0
  %5623 = vmatpush1.msra.mxu0 0.0
  %5624 = vmatprep.subr.mxu0 0.0
  %5625 = vmatpush1.msra.mxu0 0.0
  %5626 = vmatprep.subr.mxu0 0.0
  %5627 = vmatpush1.msra.mxu0 0.0
  %5628 = vmatprep.subr.mxu0 0.0
  %5629 = vmatpush1.msra.mxu0 0.0
  %5630 = vmatprep.subr.mxu0 0.0
  %5631 = vmatpush1.msra.mxu0 0.0
  %5632 = vmatprep.subr.mxu0 0.0
  %5633 = vmatpush1.msra.mxu0 0.0
  %5634 = vmatprep.subr.mxu0 0.0
  %5635 = vmatpush1.msra.mxu0 0.0
  %5636 = vmatprep.subr.mxu0 0.0
  %5637 = vmatpush1.msra.mxu0 0.0
  %5638 = vmatprep.subr.mxu0 0.0
  %5639 = vmatpush1.msra.mxu0 0.0
  %5640 = vmatprep.subr.mxu0 0.0
  %5641 = vmatpush1.msra.mxu0 0.0
  %5642 = vmatprep.subr.mxu0 0.0
  %5643 = vmatpush1.msra.mxu0 0.0
  %5644 = vmatprep.subr.mxu0 0.0
  %5645 = vmatpush1.msra.mxu0 0.0
  %5646 = vmatprep.subr.mxu0 0.0
  %5647 = vmatpush1.msra.mxu0 0.0
  %5648 = vmatprep.subr.mxu0 0.0
  %5649 = vmatpush1.msra.mxu0 0.0
  %5650 = vmatprep.subr.mxu0 0.0
  %5651 = vmatpush1.msra.mxu0 0.0
  %5652 = vmatprep.subr.mxu0 0.0
  %5653 = vmatpush1.msra.mxu0 0.0
  %5654 = vmatprep.mubr.f32.mxu0 0.0
  %v5655 = vand.u32 %v5249, 4294901760
  %5656 = vmatmul.mubr.f32.gmra.mrb[0].mxu0 %v5655
  %v5657 = vpop.f32.mrb[0].mxu0
  %v5658 = vadd.f32 %v5575, %v5657
  %v5659 = vpop.f32.mrb[0].mxu0
  %5660 = vdwg.mxu0
  %5661 = vmatprep.subr.mxu0 0.0
  %v5662 = vand.u32 %v5239, 4294901760
  %5663 = vmatpush1.msra.mxu0 %v5662
  %5664 = vmatprep.subr.mxu0 0.0
  %v5665 = vand.u32 %v5240, 4294901760
  %5666 = vmatpush1.msra.mxu0 %v5665
  %5667 = vmatprep.subr.mxu0 0.0
  %v5668 = vand.u32 %v5241, 4294901760
  %5669 = vmatpush1.msra.mxu0 %v5668
  %5670 = vmatprep.subr.mxu0 0.0
  %v5671 = vand.u32 %v5242, 4294901760
  %5672 = vmatpush1.msra.mxu0 %v5671
  %5673 = vmatprep.subr.mxu0 0.0
  %5674 = vmatpush1.msra.mxu0 0.0
  %5675 = vmatprep.subr.mxu0 0.0
  %5676 = vmatpush1.msra.mxu0 0.0
  %5677 = vmatprep.subr.mxu0 0.0
  %5678 = vmatpush1.msra.mxu0 0.0
  %5679 = vmatprep.subr.mxu0 0.0
  %5680 = vmatpush1.msra.mxu0 0.0
  %5681 = vmatprep.subr.mxu0 0.0
  %5682 = vmatpush1.msra.mxu0 0.0
  %5683 = vmatprep.subr.mxu0 0.0
  %5684 = vmatpush1.msra.mxu0 0.0
  %5685 = vmatprep.subr.mxu0 0.0
  %5686 = vmatpush1.msra.mxu0 0.0
  %5687 = vmatprep.subr.mxu0 0.0
  %5688 = vmatpush1.msra.mxu0 0.0
  %5689 = vmatprep.subr.mxu0 0.0
  %5690 = vmatpush1.msra.mxu0 0.0
  %5691 = vmatprep.subr.mxu0 0.0
  %5692 = vmatpush1.msra.mxu0 0.0
  %5693 = vmatprep.subr.mxu0 0.0
  %5694 = vmatpush1.msra.mxu0 0.0
  %5695 = vmatprep.subr.mxu0 0.0
  %5696 = vmatpush1.msra.mxu0 0.0
  %5697 = vmatprep.subr.mxu0 0.0
  %5698 = vmatpush1.msra.mxu0 0.0
  %5699 = vmatprep.subr.mxu0 0.0
  %5700 = vmatpush1.msra.mxu0 0.0
  %5701 = vmatprep.subr.mxu0 0.0
  %5702 = vmatpush1.msra.mxu0 0.0
  %5703 = vmatprep.subr.mxu0 0.0
  %5704 = vmatpush1.msra.mxu0 0.0
  %5705 = vmatprep.subr.mxu0 0.0
  %5706 = vmatpush1.msra.mxu0 0.0
  %5707 = vmatprep.subr.mxu0 0.0
  %5708 = vmatpush1.msra.mxu0 0.0
  %5709 = vmatprep.subr.mxu0 0.0
  %5710 = vmatpush1.msra.mxu0 0.0
  %5711 = vmatprep.subr.mxu0 0.0
  %5712 = vmatpush1.msra.mxu0 0.0
  %5713 = vmatprep.subr.mxu0 0.0
  %5714 = vmatpush1.msra.mxu0 0.0
  %5715 = vmatprep.subr.mxu0 0.0
  %5716 = vmatpush1.msra.mxu0 0.0
  %5717 = vmatprep.subr.mxu0 0.0
  %5718 = vmatpush1.msra.mxu0 0.0
  %5719 = vmatprep.subr.mxu0 0.0
  %5720 = vmatpush1.msra.mxu0 0.0
  %5721 = vmatprep.subr.mxu0 0.0
  %5722 = vmatpush1.msra.mxu0 0.0
  %5723 = vmatprep.subr.mxu0 0.0
  %5724 = vmatpush1.msra.mxu0 0.0
  %5725 = vmatprep.subr.mxu0 0.0
  %5726 = vmatpush1.msra.mxu0 0.0
  %5727 = vmatprep.subr.mxu0 0.0
  %5728 = vmatpush1.msra.mxu0 0.0
  %5729 = vmatprep.mubr.f32.mxu0 0.0
  %v5730 = vand.u32 %v5249, 4294901760
  %5731 = vmatmul.mubr.f32.gmra.mrb[0].mxu0 %v5730
  %v5732 = vpop.f32.mrb[0].mxu0
  %v5733 = vadd.f32 %v5658, %v5732
  %v5734 = vpop.f32.mrb[0].mxu0
  %5735 = vdwg.mxu0
  %v5736 = vmax.f32 %v5733, 0.0
  %v5737 = vld [vmem:[%s1 + $0x158] sm:$0xff]
  %v5738 = vld [vmem:[%s1 + $0x160] sm:$0xff]
  %v5739 = vld [vmem:[%s1 + $0x168] sm:$0x1]
  %v5740 = vlaneseq
  %v5741 = vshrl.u32 %v5740, 7
  %v5742 = vsub.s32 0, %v5741
  %v5743 = vrot.slane %v5739, %v5742
  %vm5744 = vcmask 130048
  %v5746 = vsel %vm5744, %v5736, 0
  %5748 = vmatprep.subr.mxu0 0.0
  %v5749 = vand.u32 %v5737, 4294901760
  %5750 = vmatpush1.msra.mxu0 %v5749
  %5751 = vmatprep.subr.mxu0 0.0
  %v5752 = vand.u32 %v5738, 4294901760
  %5753 = vmatpush1.msra.mxu0 %v5752
  %5754 = vmatprep.subr.mxu0 0.0
  %5755 = vmatpush1.msra.mxu0 0.0
  %5756 = vmatprep.subr.mxu0 0.0
  %5757 = vmatpush1.msra.mxu0 0.0
  %5758 = vmatprep.subr.mxu0 0.0
  %5759 = vmatpush1.msra.mxu0 0.0
  %5760 = vmatprep.subr.mxu0 0.0
  %5761 = vmatpush1.msra.mxu0 0.0
  %5762 = vmatprep.subr.mxu0 0.0
  %5763 = vmatpush1.msra.mxu0 0.0
  %5764 = vmatprep.subr.mxu0 0.0
  %5765 = vmatpush1.msra.mxu0 0.0
  %5766 = vmatprep.subr.mxu0 0.0
  %5767 = vmatpush1.msra.mxu0 0.0
  %5768 = vmatprep.subr.mxu0 0.0
  %5769 = vmatpush1.msra.mxu0 0.0
  %5770 = vmatprep.subr.mxu0 0.0
  %5771 = vmatpush1.msra.mxu0 0.0
  %5772 = vmatprep.subr.mxu0 0.0
  %5773 = vmatpush1.msra.mxu0 0.0
  %5774 = vmatprep.subr.mxu0 0.0
  %5775 = vmatpush1.msra.mxu0 0.0
  %5776 = vmatprep.subr.mxu0 0.0
  %5777 = vmatpush1.msra.mxu0 0.0
  %5778 = vmatprep.subr.mxu0 0.0
  %5779 = vmatpush1.msra.mxu0 0.0
  %5780 = vmatprep.subr.mxu0 0.0
  %5781 = vmatpush1.msra.mxu0 0.0
  %5782 = vmatprep.subr.mxu0 0.0
  %5783 = vmatpush1.msra.mxu0 0.0
  %5784 = vmatprep.subr.mxu0 0.0
  %5785 = vmatpush1.msra.mxu0 0.0
  %5786 = vmatprep.subr.mxu0 0.0
  %5787 = vmatpush1.msra.mxu0 0.0
  %5788 = vmatprep.subr.mxu0 0.0
  %5789 = vmatpush1.msra.mxu0 0.0
  %5790 = vmatprep.subr.mxu0 0.0
  %5791 = vmatpush1.msra.mxu0 0.0
  %5792 = vmatprep.subr.mxu0 0.0
  %5793 = vmatpush1.msra.mxu0 0.0
  %5794 = vmatprep.subr.mxu0 0.0
  %5795 = vmatpush1.msra.mxu0 0.0
  %5796 = vmatprep.subr.mxu0 0.0
  %5797 = vmatpush1.msra.mxu0 0.0
  %5798 = vmatprep.subr.mxu0 0.0
  %5799 = vmatpush1.msra.mxu0 0.0
  %5800 = vmatprep.subr.mxu0 0.0
  %5801 = vmatpush1.msra.mxu0 0.0
  %5802 = vmatprep.subr.mxu0 0.0
  %5803 = vmatpush1.msra.mxu0 0.0
  %5804 = vmatprep.subr.mxu0 0.0
  %5805 = vmatpush1.msra.mxu0 0.0
  %5806 = vmatprep.subr.mxu0 0.0
  %5807 = vmatpush1.msra.mxu0 0.0
  %5808 = vmatprep.subr.mxu0 0.0
  %5809 = vmatpush1.msra.mxu0 0.0
  %5810 = vmatprep.subr.mxu0 0.0
  %5811 = vmatpush1.msra.mxu0 0.0
  %5812 = vmatprep.subr.mxu0 0.0
  %5813 = vmatpush1.msra.mxu0 0.0
  %5814 = vmatprep.mubr.f32.mxu0 0.0
  %v5815 = vand.u32 %v5746, 4294901760
  %v5816 = vsub.f32 %v5746, %v5815
  %v5817 = vand.u32 %v5816, 4294901760
  %v5818 = vsub.f32 %v5816, %v5817
  %v5819 = vand.u32 %v5818, 4294901760
  %5820 = vmatmul.mubr.f32.gmra.mrb[0].mxu0 %v5819
  %v5821 = vpop.f32.mrb[0].mxu0
  %v5822 = vadd.f32 %v5743, %v5821
  %v5823 = vpop.f32.mrb[0].mxu0
  %5824 = vdwg.mxu0
  %5825 = vmatprep.subr.mxu0 0.0
  %v5826 = vand.u32 %v5737, 4294901760
  %v5827 = vsub.f32 %v5737, %v5826
  %v5828 = vand.u32 %v5827, 4294901760
  %v5829 = vsub.f32 %v5827, %v5828
  %v5830 = vand.u32 %v5829, 4294901760
  %5831 = vmatpush1.msra.mxu0 %v5830
  %5832 = vmatprep.subr.mxu0 0.0
  %v5833 = vand.u32 %v5738, 4294901760
  %v5834 = vsub.f32 %v5738, %v5833
  %v5835 = vand.u32 %v5834, 4294901760
  %v5836 = vsub.f32 %v5834, %v5835
  %v5837 = vand.u32 %v5836, 4294901760
  %5838 = vmatpush1.msra.mxu0 %v5837
  %5839 = vmatprep.subr.mxu0 0.0
  %5840 = vmatpush1.msra.mxu0 0.0
  %5841 = vmatprep.subr.mxu0 0.0
  %5842 = vmatpush1.msra.mxu0 0.0
  %5843 = vmatprep.subr.mxu0 0.0
  %5844 = vmatpush1.msra.mxu0 0.0
  %5845 = vmatprep.subr.mxu0 0.0
  %5846 = vmatpush1.msra.mxu0 0.0
  %5847 = vmatprep.subr.mxu0 0.0
  %5848 = vmatpush1.msra.mxu0 0.0
  %5849 = vmatprep.subr.mxu0 0.0
  %5850 = vmatpush1.msra.mxu0 0.0
  %5851 = vmatprep.subr.mxu0 0.0
  %5852 = vmatpush1.msra.mxu0 0.0
  %5853 = vmatprep.subr.mxu0 0.0
  %5854 = vmatpush1.msra.mxu0 0.0
  %5855 = vmatprep.subr.mxu0 0.0
  %5856 = vmatpush1.msra.mxu0 0.0
  %5857 = vmatprep.subr.mxu0 0.0
  %5858 = vmatpush1.msra.mxu0 0.0
  %5859 = vmatprep.subr.mxu0 0.0
  %5860 = vmatpush1.msra.mxu0 0.0
  %5861 = vmatprep.subr.mxu0 0.0
  %5862 = vmatpush1.msra.mxu0 0.0
  %5863 = vmatprep.subr.mxu0 0.0
  %5864 = vmatpush1.msra.mxu0 0.0
  %5865 = vmatprep.subr.mxu0 0.0
  %5866 = vmatpush1.msra.mxu0 0.0
  %5867 = vmatprep.subr.mxu0 0.0
  %5868 = vmatpush1.msra.mxu0 0.0
  %5869 = vmatprep.subr.mxu0 0.0
  %5870 = vmatpush1.msra.mxu0 0.0
  %5871 = vmatprep.subr.mxu0 0.0
  %5872 = vmatpush1.msra.mxu0 0.0
  %5873 = vmatprep.subr.mxu0 0.0
  %5874 = vmatpush1.msra.mxu0 0.0
  %5875 = vmatprep.subr.mxu0 0.0
  %5876 = vmatpush1.msra.mxu0 0.0
  %5877 = vmatprep.subr.mxu0 0.0
  %5878 = vmatpush1.msra.mxu0 0.0
  %5879 = vmatprep.subr.mxu0 0.0
  %5880 = vmatpush1.msra.mxu0 0.0
  %5881 = vmatprep.subr.mxu0 0.0
  %5882 = vmatpush1.msra.mxu0 0.0
  %5883 = vmatprep.subr.mxu0 0.0
  %5884 = vmatpush1.msra.mxu0 0.0
  %5885 = vmatprep.subr.mxu0 0.0
  %5886 = vmatpush1.msra.mxu0 0.0
  %5887 = vmatprep.subr.mxu0 0.0
  %5888 = vmatpush1.msra.mxu0 0.0
  %5889 = vmatprep.subr.mxu0 0.0
  %5890 = vmatpush1.msra.mxu0 0.0
  %5891 = vmatprep.subr.mxu0 0.0
  %5892 = vmatpush1.msra.mxu0 0.0
  %5893 = vmatprep.subr.mxu0 0.0
  %5894 = vmatpush1.msra.mxu0 0.0
  %5895 = vmatprep.subr.mxu0 0.0
  %5896 = vmatpush1.msra.mxu0 0.0
  %5897 = vmatprep.subr.mxu0 0.0
  %5898 = vmatpush1.msra.mxu0 0.0
  %5899 = vmatprep.mubr.f32.mxu0 0.0
  %v5900 = vand.u32 %v5746, 4294901760
  %5901 = vmatmul.mubr.f32.gmra.mrb[0].mxu0 %v5900
  %v5902 = vpop.f32.mrb[0].mxu0
  %v5903 = vadd.f32 %v5822, %v5902
  %v5904 = vpop.f32.mrb[0].mxu0
  %5905 = vdwg.mxu0
  %5906 = vmatprep.subr.mxu0 0.0
  %v5907 = vand.u32 %v5737, 4294901760
  %v5908 = vsub.f32 %v5737, %v5907
  %5909 = vmatpush1.msra.mxu0 %v5908
  %5910 = vmatprep.subr.mxu0 0.0
  %v5911 = vand.u32 %v5738, 4294901760
  %v5912 = vsub.f32 %v5738, %v5911
  %5913 = vmatpush1.msra.mxu0 %v5912
  %5914 = vmatprep.subr.mxu0 0.0
  %5915 = vmatpush1.msra.mxu0 0.0
  %5916 = vmatprep.subr.mxu0 0.0
  %5917 = vmatpush1.msra.mxu0 0.0
  %5918 = vmatprep.subr.mxu0 0.0
  %5919 = vmatpush1.msra.mxu0 0.0
  %5920 = vmatprep.subr.mxu0 0.0
  %5921 = vmatpush1.msra.mxu0 0.0
  %5922 = vmatprep.subr.mxu0 0.0
  %5923 = vmatpush1.msra.mxu0 0.0
  %5924 = vmatprep.subr.mxu0 0.0
  %5925 = vmatpush1.msra.mxu0 0.0
  %5926 = vmatprep.subr.mxu0 0.0
  %5927 = vmatpush1.msra.mxu0 0.0
  %5928 = vmatprep.subr.mxu0 0.0
  %5929 = vmatpush1.msra.mxu0 0.0
  %5930 = vmatprep.subr.mxu0 0.0
  %5931 = vmatpush1.msra.mxu0 0.0
  %5932 = vmatprep.subr.mxu0 0.0
  %5933 = vmatpush1.msra.mxu0 0.0
  %5934 = vmatprep.subr.mxu0 0.0
  %5935 = vmatpush1.msra.mxu0 0.0
  %5936 = vmatprep.subr.mxu0 0.0
  %5937 = vmatpush1.msra.mxu0 0.0
  %5938 = vmatprep.subr.mxu0 0.0
  %5939 = vmatpush1.msra.mxu0 0.0
  %5940 = vmatprep.subr.mxu0 0.0
  %5941 = vmatpush1.msra.mxu0 0.0
  %5942 = vmatprep.subr.mxu0 0.0
  %5943 = vmatpush1.msra.mxu0 0.0
  %5944 = vmatprep.subr.mxu0 0.0
  %5945 = vmatpush1.msra.mxu0 0.0
  %5946 = vmatprep.subr.mxu0 0.0
  %5947 = vmatpush1.msra.mxu0 0.0
  %5948 = vmatprep.subr.mxu0 0.0
  %5949 = vmatpush1.msra.mxu0 0.0
  %5950 = vmatprep.subr.mxu0 0.0
  %5951 = vmatpush1.msra.mxu0 0.0
  %5952 = vmatprep.subr.mxu0 0.0
  %5953 = vmatpush1.msra.mxu0 0.0
  %5954 = vmatprep.subr.mxu0 0.0
  %5955 = vmatpush1.msra.mxu0 0.0
  %5956 = vmatprep.subr.mxu0 0.0
  %5957 = vmatpush1.msra.mxu0 0.0
  %5958 = vmatprep.subr.mxu0 0.0
  %5959 = vmatpush1.msra.mxu0 0.0
  %5960 = vmatprep.subr.mxu0 0.0
  %5961 = vmatpush1.msra.mxu0 0.0
  %5962 = vmatprep.subr.mxu0 0.0
  %5963 = vmatpush1.msra.mxu0 0.0
  %5964 = vmatprep.subr.mxu0 0.0
  %5965 = vmatpush1.msra.mxu0 0.0
  %5966 = vmatprep.subr.mxu0 0.0
  %5967 = vmatpush1.msra.mxu0 0.0
  %5968 = vmatprep.subr.mxu0 0.0
  %5969 = vmatpush1.msra.mxu0 0.0
  %5970 = vmatprep.subr.mxu0 0.0
  %5971 = vmatpush1.msra.mxu0 0.0
  %5972 = vmatprep.subr.mxu0 0.0
  %5973 = vmatpush1.msra.mxu0 0.0
  %5974 = vmatprep.mubr.f32.mxu0 0.0
  %v5975 = vand.u32 %v5746, 4294901760
  %v5976 = vsub.f32 %v5746, %v5975
  %5977 = vmatmul.mubr.f32.gmra.mrb[0].mxu0 %v5976
  %v5978 = vpop.f32.mrb[0].mxu0
  %v5979 = vadd.f32 %v5903, %v5978
  %v5980 = vpop.f32.mrb[0].mxu0
  %5981 = vdwg.mxu0
  %5982 = vmatprep.subr.mxu0 0.0
  %v5983 = vand.u32 %v5737, 4294901760
  %5984 = vmatpush1.msra.mxu0 %v5983
  %5985 = vmatprep.subr.mxu0 0.0
  %v5986 = vand.u32 %v5738, 4294901760
  %5987 = vmatpush1.msra.mxu0 %v5986
  %5988 = vmatprep.subr.mxu0 0.0
  %5989 = vmatpush1.msra.mxu0 0.0
  %5990 = vmatprep.subr.mxu0 0.0
  %5991 = vmatpush1.msra.mxu0 0.0
  %5992 = vmatprep.subr.mxu0 0.0
  %5993 = vmatpush1.msra.mxu0 0.0
  %5994 = vmatprep.subr.mxu0 0.0
  %5995 = vmatpush1.msra.mxu0 0.0
  %5996 = vmatprep.subr.mxu0 0.0
  %5997 = vmatpush1.msra.mxu0 0.0
  %5998 = vmatprep.subr.mxu0 0.0
  %5999 = vmatpush1.msra.mxu0 0.0
  %6000 = vmatprep.subr.mxu0 0.0
  %6001 = vmatpush1.msra.mxu0 0.0
  %6002 = vmatprep.subr.mxu0 0.0
  %6003 = vmatpush1.msra.mxu0 0.0
  %6004 = vmatprep.subr.mxu0 0.0
  %6005 = vmatpush1.msra.mxu0 0.0
  %6006 = vmatprep.subr.mxu0 0.0
  %6007 = vmatpush1.msra.mxu0 0.0
  %6008 = vmatprep.subr.mxu0 0.0
  %6009 = vmatpush1.msra.mxu0 0.0
  %6010 = vmatprep.subr.mxu0 0.0
  %6011 = vmatpush1.msra.mxu0 0.0
  %6012 = vmatprep.subr.mxu0 0.0
  %6013 = vmatpush1.msra.mxu0 0.0
  %6014 = vmatprep.subr.mxu0 0.0
  %6015 = vmatpush1.msra.mxu0 0.0
  %6016 = vmatprep.subr.mxu0 0.0
  %6017 = vmatpush1.msra.mxu0 0.0
  %6018 = vmatprep.subr.mxu0 0.0
  %6019 = vmatpush1.msra.mxu0 0.0
  %6020 = vmatprep.subr.mxu0 0.0
  %6021 = vmatpush1.msra.mxu0 0.0
  %6022 = vmatprep.subr.mxu0 0.0
  %6023 = vmatpush1.msra.mxu0 0.0
  %6024 = vmatprep.subr.mxu0 0.0
  %6025 = vmatpush1.msra.mxu0 0.0
  %6026 = vmatprep.subr.mxu0 0.0
  %6027 = vmatpush1.msra.mxu0 0.0
  %6028 = vmatprep.subr.mxu0 0.0
  %6029 = vmatpush1.msra.mxu0 0.0
  %6030 = vmatprep.subr.mxu0 0.0
  %6031 = vmatpush1.msra.mxu0 0.0
  %6032 = vmatprep.subr.mxu0 0.0
  %6033 = vmatpush1.msra.mxu0 0.0
  %6034 = vmatprep.subr.mxu0 0.0
  %6035 = vmatpush1.msra.mxu0 0.0
  %6036 = vmatprep.subr.mxu0 0.0
  %6037 = vmatpush1.msra.mxu0 0.0
  %6038 = vmatprep.subr.mxu0 0.0
  %6039 = vmatpush1.msra.mxu0 0.0
  %6040 = vmatprep.subr.mxu0 0.0
  %6041 = vmatpush1.msra.mxu0 0.0
  %6042 = vmatprep.subr.mxu0 0.0
  %6043 = vmatpush1.msra.mxu0 0.0
  %6044 = vmatprep.subr.mxu0 0.0
  %6045 = vmatpush1.msra.mxu0 0.0
  %6046 = vmatprep.subr.mxu0 0.0
  %6047 = vmatpush1.msra.mxu0 0.0
  %6048 = vmatprep.mubr.f32.mxu0 0.0
  %v6049 = vand.u32 %v5746, 4294901760
  %v6050 = vsub.f32 %v5746, %v6049
  %v6051 = vand.u32 %v6050, 4294901760
  %6052 = vmatmul.mubr.f32.gmra.mrb[0].mxu0 %v6051
  %v6053 = vpop.f32.mrb[0].mxu0
  %v6054 = vadd.f32 %v5979, %v6053
  %v6055 = vpop.f32.mrb[0].mxu0
  %6056 = vdwg.mxu0
  %6057 = vmatprep.subr.mxu0 0.0
  %v6058 = vand.u32 %v5737, 4294901760
  %v6059 = vsub.f32 %v5737, %v6058
  %v6060 = vand.u32 %v6059, 4294901760
  %6061 = vmatpush1.msra.mxu0 %v6060
  %6062 = vmatprep.subr.mxu0 0.0
  %v6063 = vand.u32 %v5738, 4294901760
  %v6064 = vsub.f32 %v5738, %v6063
  %v6065 = vand.u32 %v6064, 4294901760
  %6066 = vmatpush1.msra.mxu0 %v6065
  %6067 = vmatprep.subr.mxu0 0.0
  %6068 = vmatpush1.msra.mxu0 0.0
  %6069 = vmatprep.subr.mxu0 0.0
  %6070 = vmatpush1.msra.mxu0 0.0
  %6071 = vmatprep.subr.mxu0 0.0
  %6072 = vmatpush1.msra.mxu0 0.0
  %6073 = vmatprep.subr.mxu0 0.0
  %6074 = vmatpush1.msra.mxu0 0.0
  %6075 = vmatprep.subr.mxu0 0.0
  %6076 = vmatpush1.msra.mxu0 0.0
  %6077 = vmatprep.subr.mxu0 0.0
  %6078 = vmatpush1.msra.mxu0 0.0
  %6079 = vmatprep.subr.mxu0 0.0
  %6080 = vmatpush1.msra.mxu0 0.0
  %6081 = vmatprep.subr.mxu0 0.0
  %6082 = vmatpush1.msra.mxu0 0.0
  %6083 = vmatprep.subr.mxu0 0.0
  %6084 = vmatpush1.msra.mxu0 0.0
  %6085 = vmatprep.subr.mxu0 0.0
  %6086 = vmatpush1.msra.mxu0 0.0
  %6087 = vmatprep.subr.mxu0 0.0
  %6088 = vmatpush1.msra.mxu0 0.0
  %6089 = vmatprep.subr.mxu0 0.0
  %6090 = vmatpush1.msra.mxu0 0.0
  %6091 = vmatprep.subr.mxu0 0.0
  %6092 = vmatpush1.msra.mxu0 0.0
  %6093 = vmatprep.subr.mxu0 0.0
  %6094 = vmatpush1.msra.mxu0 0.0
  %6095 = vmatprep.subr.mxu0 0.0
  %6096 = vmatpush1.msra.mxu0 0.0
  %6097 = vmatprep.subr.mxu0 0.0
  %6098 = vmatpush1.msra.mxu0 0.0
  %6099 = vmatprep.subr.mxu0 0.0
  %6100 = vmatpush1.msra.mxu0 0.0
  %6101 = vmatprep.subr.mxu0 0.0
  %6102 = vmatpush1.msra.mxu0 0.0
  %6103 = vmatprep.subr.mxu0 0.0
  %6104 = vmatpush1.msra.mxu0 0.0
  %6105 = vmatprep.subr.mxu0 0.0
  %6106 = vmatpush1.msra.mxu0 0.0
  %6107 = vmatprep.subr.mxu0 0.0
  %6108 = vmatpush1.msra.mxu0 0.0
  %6109 = vmatprep.subr.mxu0 0.0
  %6110 = vmatpush1.msra.mxu0 0.0
  %6111 = vmatprep.subr.mxu0 0.0
  %6112 = vmatpush1.msra.mxu0 0.0
  %6113 = vmatprep.subr.mxu0 0.0
  %6114 = vmatpush1.msra.mxu0 0.0
  %6115 = vmatprep.subr.mxu0 0.0
  %6116 = vmatpush1.msra.mxu0 0.0
  %6117 = vmatprep.subr.mxu0 0.0
  %6118 = vmatpush1.msra.mxu0 0.0
  %6119 = vmatprep.subr.mxu0 0.0
  %6120 = vmatpush1.msra.mxu0 0.0
  %6121 = vmatprep.subr.mxu0 0.0
  %6122 = vmatpush1.msra.mxu0 0.0
  %6123 = vmatprep.subr.mxu0 0.0
  %6124 = vmatpush1.msra.mxu0 0.0
  %6125 = vmatprep.subr.mxu0 0.0
  %6126 = vmatpush1.msra.mxu0 0.0
  %6127 = vmatprep.mubr.f32.mxu0 0.0
  %v6128 = vand.u32 %v5746, 4294901760
  %6129 = vmatmul.mubr.f32.gmra.mrb[0].mxu0 %v6128
  %v6130 = vpop.f32.mrb[0].mxu0
  %v6131 = vadd.f32 %v6054, %v6130
  %v6132 = vpop.f32.mrb[0].mxu0
  %6133 = vdwg.mxu0
  %6134 = vmatprep.subr.mxu0 0.0
  %v6135 = vand.u32 %v5737, 4294901760
  %6136 = vmatpush1.msra.mxu0 %v6135
  %6137 = vmatprep.subr.mxu0 0.0
  %v6138 = vand.u32 %v5738, 4294901760
  %6139 = vmatpush1.msra.mxu0 %v6138
  %6140 = vmatprep.subr.mxu0 0.0
  %6141 = vmatpush1.msra.mxu0 0.0
  %6142 = vmatprep.subr.mxu0 0.0
  %6143 = vmatpush1.msra.mxu0 0.0
  %6144 = vmatprep.subr.mxu0 0.0
  %6145 = vmatpush1.msra.mxu0 0.0
  %6146 = vmatprep.subr.mxu0 0.0
  %6147 = vmatpush1.msra.mxu0 0.0
  %6148 = vmatprep.subr.mxu0 0.0
  %6149 = vmatpush1.msra.mxu0 0.0
  %6150 = vmatprep.subr.mxu0 0.0
  %6151 = vmatpush1.msra.mxu0 0.0
  %6152 = vmatprep.subr.mxu0 0.0
  %6153 = vmatpush1.msra.mxu0 0.0
  %6154 = vmatprep.subr.mxu0 0.0
  %6155 = vmatpush1.msra.mxu0 0.0
  %6156 = vmatprep.subr.mxu0 0.0
  %6157 = vmatpush1.msra.mxu0 0.0
  %6158 = vmatprep.subr.mxu0 0.0
  %6159 = vmatpush1.msra.mxu0 0.0
  %6160 = vmatprep.subr.mxu0 0.0
  %6161 = vmatpush1.msra.mxu0 0.0
  %6162 = vmatprep.subr.mxu0 0.0
  %6163 = vmatpush1.msra.mxu0 0.0
  %6164 = vmatprep.subr.mxu0 0.0
  %6165 = vmatpush1.msra.mxu0 0.0
  %6166 = vmatprep.subr.mxu0 0.0
  %6167 = vmatpush1.msra.mxu0 0.0
  %6168 = vmatprep.subr.mxu0 0.0
  %6169 = vmatpush1.msra.mxu0 0.0
  %6170 = vmatprep.subr.mxu0 0.0
  %6171 = vmatpush1.msra.mxu0 0.0
  %6172 = vmatprep.subr.mxu0 0.0
  %6173 = vmatpush1.msra.mxu0 0.0
  %6174 = vmatprep.subr.mxu0 0.0
  %6175 = vmatpush1.msra.mxu0 0.0
  %6176 = vmatprep.subr.mxu0 0.0
  %6177 = vmatpush1.msra.mxu0 0.0
  %6178 = vmatprep.subr.mxu0 0.0
  %6179 = vmatpush1.msra.mxu0 0.0
  %6180 = vmatprep.subr.mxu0 0.0
  %6181 = vmatpush1.msra.mxu0 0.0
  %6182 = vmatprep.subr.mxu0 0.0
  %6183 = vmatpush1.msra.mxu0 0.0
  %6184 = vmatprep.subr.mxu0 0.0
  %6185 = vmatpush1.msra.mxu0 0.0
  %6186 = vmatprep.subr.mxu0 0.0
  %6187 = vmatpush1.msra.mxu0 0.0
  %6188 = vmatprep.subr.mxu0 0.0
  %6189 = vmatpush1.msra.mxu0 0.0
  %6190 = vmatprep.subr.mxu0 0.0
  %6191 = vmatpush1.msra.mxu0 0.0
  %6192 = vmatprep.subr.mxu0 0.0
  %6193 = vmatpush1.msra.mxu0 0.0
  %6194 = vmatprep.subr.mxu0 0.0
  %6195 = vmatpush1.msra.mxu0 0.0
  %6196 = vmatprep.subr.mxu0 0.0
  %6197 = vmatpush1.msra.mxu0 0.0
  %6198 = vmatprep.subr.mxu0 0.0
  %6199 = vmatpush1.msra.mxu0 0.0
  %6200 = vmatprep.mubr.f32.mxu0 0.0
  %v6201 = vand.u32 %v5746, 4294901760
  %6202 = vmatmul.mubr.f32.gmra.mrb[0].mxu0 %v6201
  %v6203 = vpop.f32.mrb[0].mxu0
  %v6204 = vadd.f32 %v6131, %v6203
  %v6205 = vpop.f32.mrb[0].mxu0
  %6206 = vdwg.mxu0
  %vm6207 = vcmask 1024
  %6208 = vst.msk [vmem:[%s2] sm:$0x3] %vm6207, %v6204
  // Predicated region
  $region10: #{slidenet_forward.1} parent=0 // pred_check
    _
  $region11: #{slidenet_forward.1} parent=0 // pred_check_branch
    %6210 = sbr.rel (0) target = $region13
  $region12: #{slidenet_forward.1} parent=0 // pred_region
    _
  $region13: #{slidenet_forward.1} parent=0 // pred_fallthru
    _
  // Predicated region
  $region14: #{slidenet_forward.1} parent=0 // pred_check
    _
  $region15: #{slidenet_forward.1} parent=0 // pred_check_branch
    %6212 = sbr.rel (0) target = $region17
  $region16: #{slidenet_forward.1} parent=0 // pred_region
    _
  $region17: #{slidenet_forward.1} parent=0 // pred_fallthru
    _

</llo_original>
